<compile_context>
chip_gen: v7x
topology: tpu7x:2x2x1
jax: 0.10.0
libtpu: 0.0.40
codegen_flags: <defaults>
</compile_context>

<pallas_src>
import functools

import jax
import jax.numpy as jnp
from jax import lax
from jax.experimental import pallas as pl
from jax.experimental.pallas import tpu as pltpu


def _round_up(x, m):
    return (x + m - 1) // m * m


# ----------------------------------------------------------------------------
# Kernel: all num_convs blocks fused, activations lane-dense (C, L).
# ----------------------------------------------------------------------------
def _stacked_kernel(*refs, num_convs, H, W, neg_slope, compute_dtype):
    # refs = (x, w0, [w_rest], b_all, mask, out)
    if num_convs > 1:
        x_ref, w0_ref, wr_ref, b_ref, m_ref, o_ref = refs
    else:
        x_ref, w0_ref, b_ref, m_ref, o_ref = refs
        wr_ref = None

    Wp = W + 2
    Cout = b_ref.shape[1]          # channel-padded Cout
    L = x_ref.shape[2]             # flattened padded spatial grid (multiple of 128)

    def shift_left(a, off):
        # a[:, off:] extended with zeros -> xs[p] = a[p + off]
        if off == 0:
            return a
        z = jnp.zeros((a.shape[0], off), a.dtype)
        return jnp.concatenate([a[:, off:], z], axis=1)

    def shift_right(a, off):
        # zeros prepended -> out[p] = a[p - off] (front border becomes 0)
        z = jnp.zeros((a.shape[0], off), a.dtype)
        return jnp.concatenate([z, a[:, : a.shape[1] - off]], axis=1)

    def conv_block(src, w_blk, bias):
        # src: (Cin_k, L); w_blk[k]: (Cout, Cin_k); 9 accumulated MXU dots, f32 acc.
        acc = jnp.zeros((Cout, L), jnp.float32)
        for kh in range(3):
            for kw in range(3):
                xs = shift_left(src, kh * Wp + kw)
                acc = acc + jnp.dot(w_blk[kh * 3 + kw].astype(compute_dtype), xs,
                                    preferred_element_type=jnp.float32)
        y = acc + bias                                     # folded conv+BN bias
        return jnp.where(y >= 0, y, neg_slope * y)         # LeakyReLU(0.01)

    src = x_ref[0].astype(compute_dtype)                   # (Cin_p, L)
    for k in range(num_convs):
        w_blk = w0_ref if k == 0 else wr_ref[k - 1]
        y = conv_block(src, w_blk, b_ref[k])               # (Cout_p, L) f32
        if k == num_convs - 1:
            o_ref[0] = y                                   # full-lane, unmasked store
        else:
            # Rebuild the zero-bordered padded activation for the next block:
            # mask kills the garbage / border columns, then a right shift by
            # (W+2)+1 lanes places the interior at (h+1, w+1) of the padded grid.
            y = y * m_ref[...]
            src = shift_right(y, Wp + 1).astype(compute_dtype)


# ----------------------------------------------------------------------------
# Wrapper: BN folding, lane-dense layout construction, single pallas_call.
# ----------------------------------------------------------------------------
def _fold_bn_into_conv(w, b, gamma, beta, rmean, rvar, eps):
    scale = gamma * lax.rsqrt(rvar + eps)                  # (Cout,)
    w_f = w * scale                                        # (3,3,Cin,Cout)
    b_f = (b - rmean) * scale + beta                       # (Cout,)
    return w_f, b_f


def stacked_conv_layers(x_nchw, params, *, eps=1e-5, neg_slope=0.01,
                        compute_dtype=jnp.float32, batch_tile=None):
    """StackedConvLayers forward (eval). x_nchw: (N, Cin, H, W) -> (N, Cout, H, W)."""
    N, Cin, H, W = x_nchw.shape
    Cout = params[0]["w"].shape[-1]
    num_convs = len(params)
    Hp, Wp = H + 2, W + 2
    PP = Hp * Wp

    if batch_tile is None:
        batch_tile = N                                     # all batch in one grid step
    assert N % batch_tile == 0, "pad the batch to a multiple of batch_tile"
    n_tiles = N // batch_tile

    Cin_p = _round_up(Cin, 8)
    Cout_p = _round_up(Cout, 8)
    L_valid = batch_tile * PP
    L = max(_round_up(L_valid, 128), 128)

    # ---- input: NCHW -> zero-pad spatial -> lane-dense (tiles, Cin_p, L) ----
    xp = jnp.pad(x_nchw, ((0, 0), (0, Cin_p - Cin), (1, 1), (1, 1)))
    xp = xp.reshape(n_tiles, batch_tile, Cin_p, PP)
    xp = jnp.transpose(xp, (0, 2, 1, 3)).reshape(n_tiles, Cin_p, L_valid)
    xp = jnp.pad(xp, ((0, 0), (0, 0), (0, L - L_valid))).astype(compute_dtype)

    # ---- weights: fold BN, pad channels, layout (9, Cout_p, Cin_k_p) ----
    w_blocks, b_rows = [], []
    for i, prm in enumerate(params):
        ci = Cin if i == 0 else Cout
        ci_p = Cin_p if i == 0 else Cout_p
        w_f, b_f = _fold_bn_into_conv(prm["w"], prm["b"], prm["gamma"], prm["beta"],
                                      prm["running_mean"], prm["running_var"], eps)
        w_f = jnp.pad(w_f, ((0, 0), (0, 0), (0, ci_p - ci), (0, Cout_p - Cout)))
        w_f = jnp.transpose(w_f, (0, 1, 3, 2)).reshape(9, Cout_p, ci_p)   # [k](co,ci)
        w_blocks.append(w_f.astype(compute_dtype))
        b_rows.append(jnp.pad(b_f, (0, Cout_p - Cout)).astype(jnp.float32))
    w0 = w_blocks[0]
    b_all = jnp.stack(b_rows, 0).reshape(num_convs, Cout_p, 1)

    # ---- validity mask over the flattened padded grid (1 = real conv output) ----
    p_idx = jnp.arange(L)
    rc = p_idx % PP
    mask = ((p_idx < L_valid) & (rc // Wp < H) & (rc % Wp < W))
    mask = mask.astype(jnp.float32).reshape(1, L)

    kernel = functools.partial(_stacked_kernel, num_convs=num_convs, H=H, W=W,
                               neg_slope=neg_slope, compute_dtype=compute_dtype)

    in_specs = [pl.BlockSpec((1, Cin_p, L), lambda t: (t, 0, 0)),
                pl.BlockSpec((9, Cout_p, Cin_p), lambda t: (0, 0, 0))]
    args = [xp, w0]
    if num_convs > 1:
        w_rest = jnp.stack(w_blocks[1:], 0)                # (num_convs-1, 9, Cout_p, Cout_p)
        in_specs.append(pl.BlockSpec((num_convs - 1, 9, Cout_p, Cout_p),
                                     lambda t: (0, 0, 0, 0)))
        args.append(w_rest)
    in_specs.append(pl.BlockSpec((num_convs, Cout_p, 1), lambda t: (0, 0, 0)))
    args.append(b_all)
    in_specs.append(pl.BlockSpec((1, L), lambda t: (0, 0)))
    args.append(mask)

    out = pl.pallas_call(
        kernel,
        out_shape=jax.ShapeDtypeStruct((n_tiles, Cout_p, L), jnp.float32),
        grid=(n_tiles,),
        in_specs=in_specs,
        out_specs=pl.BlockSpec((1, Cout_p, L), lambda t: (t, 0, 0)),
        compiler_params=pltpu.CompilerParams(dimension_semantics=("parallel",)),
    )(*args)

    # ---- extract valid pixels: flat p = n_local*PP + h*(W+2) + w, h<H, w<W ----
    out = out[:, :Cout, :L_valid]
    out = out.reshape(n_tiles, Cout, batch_tile, Hp, Wp)[..., :H, :W]
    out = jnp.transpose(out, (0, 2, 1, 3, 4)).reshape(N, Cout, H, W)
    return out


# ----------------------------------------------------------------------------
# Synthetic parameters + pure-JAX reference.
# ----------------------------------------------------------------------------
def init_params(key, in_ch, out_ch, num_convs):
    params = []
    cin = in_ch
    for i in range(num_convs):
        k = jax.random.fold_in(key, i)
        kw, kb, kg, kbe, km, kv = jax.random.split(k, 6)
        params.append(dict(
            w=0.1 * jax.random.normal(kw, (3, 3, cin, out_ch), jnp.float32),  # HWIO
            b=0.1 * jax.random.normal(kb, (out_ch,), jnp.float32),
            gamma=1.0 + 0.1 * jax.random.normal(kg, (out_ch,), jnp.float32),
            beta=0.1 * jax.random.normal(kbe, (out_ch,), jnp.float32),
            running_mean=0.05 * jax.random.normal(km, (out_ch,), jnp.float32),
            running_var=1.0 + 0.1 * jax.random.uniform(kv, (out_ch,), jnp.float32),
        ))
        cin = out_ch
    return params


def reference_forward(x_nchw, params, eps=1e-5, neg_slope=0.01):
    """Unfused pure-JAX reference (lax.conv + eval BN + LeakyReLU)."""
    x = jnp.transpose(x_nchw, (0, 2, 3, 1))
    for p in params:
        y = lax.conv_general_dilated(
            x, p["w"], window_strides=(1, 1), padding=((1, 1), (1, 1)),
            dimension_numbers=("NHWC", "HWIO", "NHWC"))
        y = y + p["b"]
        y = (y - p["running_mean"]) * (p["gamma"] *
             lax.rsqrt(p["running_var"] + eps)) + p["beta"]
        x = jnp.where(y >= 0, y, neg_slope * y)
    return jnp.transpose(x, (0, 3, 1, 2))


if __name__ == "__main__":
    # StackedConvLayers(input_feature_channels=4, output_feature_channels=8, num_convs=2)
    N, Cin, H, W = 2, 4, 16, 16
    Cout, num_convs = 8, 2

    key = jax.random.PRNGKey(0)
    kx, kp = jax.random.split(key)
    x = jax.random.normal(kx, (N, Cin, H, W), jnp.float32)   # NCHW, like PyTorch
    params = init_params(kp, Cin, Cout, num_convs)

    ref = reference_forward(x, params)

    # f32 operands (bit-tight check).
    out = jax.block_until_ready(stacked_conv_layers(x, params))
    assert out.shape == (N, Cout, H, W)
    assert jnp.allclose(out, ref, atol=1e-3, rtol=1e-3), "f32 mismatch vs JAX reference"

    # bf16 MXU operands / bf16 inter-block activations, f32 accumulation
    # (recommended on v6e/v7x) -- looser tolerance is expected, not a bug.
    out_bf16 = jax.block_until_ready(
        stacked_conv_layers(x, params, compute_dtype=jnp.bfloat16))
    assert jnp.allclose(out_bf16, ref, atol=5e-2, rtol=5e-2), "bf16 mismatch vs reference"

    print("KERNEL_OK")
</pallas_src>

<mosaic_0001>
module attributes {stable_mosaic.version = 11 : i64} {
  func.func @_stacked_kernel(%arg0: i32, %arg1: memref<1x8x768xf32, #tpu.memory_space<vmem>>, %arg2: memref<9x8x8xf32, #tpu.memory_space<vmem>>, %arg3: memref<1x9x8x8xf32, #tpu.memory_space<vmem>>, %arg4: memref<2x8x1xf32, #tpu.memory_space<vmem>>, %arg5: memref<1x768xf32, #tpu.memory_space<vmem>>, %arg6: memref<1x8x768xf32, #tpu.memory_space<vmem>>) attributes {dimension_semantics = [#tpu.dimension_semantics<parallel>], iteration_bounds = array<i64: 1>, scalar_prefetch = 0 : i64, scratch_operands = 0 : i64, tpu.core_type = #tpu.core_type<tc>, window_params = [{transform_indices = @transform_0, window_bounds = array<i64: 1, 8, 768>}, {pipeline_mode = #tpu.pipeline_mode<synchronous>, transform_indices = @transform_1, window_bounds = array<i64: 9, 8, 8>}, {pipeline_mode = #tpu.pipeline_mode<synchronous>, transform_indices = @transform_2, window_bounds = array<i64: 1, 9, 8, 8>}, {pipeline_mode = #tpu.pipeline_mode<synchronous>, transform_indices = @transform_3, window_bounds = array<i64: 2, 8, 1>}, {pipeline_mode = #tpu.pipeline_mode<synchronous>, transform_indices = @transform_4, window_bounds = array<i64: 1, 768>}, {transform_indices = @transform_5, window_bounds = array<i64: 1, 8, 768>}]} {
    %c0 = arith.constant 0 : index
    %c0_0 = arith.constant 0 : index
    %c0_1 = arith.constant 0 : index
    %0 = vector.load %arg1[%c0, %c0_0, %c0_1] : memref<1x8x768xf32, #tpu.memory_space<vmem>>, vector<1x8x768xf32>
    %1 = vector.shape_cast %0 : vector<1x8x768xf32> to vector<8x768xf32>
    %c0_2 = arith.constant 0 : index
    %c0_3 = arith.constant 0 : index
    %c0_4 = arith.constant 0 : index
    %2 = vector.load %arg4[%c0_2, %c0_3, %c0_4] : memref<2x8x1xf32, #tpu.memory_space<vmem>>, vector<1x8x1xf32>
    %3 = vector.shape_cast %2 : vector<1x8x1xf32> to vector<8x1xf32>
    %cst = arith.constant 0.000000e+00 : f32
    %4 = vector.broadcast %cst : f32 to vector<8x768xf32>
    %c0_5 = arith.constant 0 : index
    %c0_6 = arith.constant 0 : index
    %c0_7 = arith.constant 0 : index
    %5 = vector.load %arg2[%c0_5, %c0_6, %c0_7] : memref<9x8x8xf32, #tpu.memory_space<vmem>>, vector<1x8x8xf32>
    %6 = vector.shape_cast %5 : vector<1x8x8xf32> to vector<8x8xf32>
    %cst_8 = arith.constant dense<0.000000e+00> : vector<8x768xf32>
    %7 = tpu.matmul %6, %1, %cst_8 {dimension_numbers = #tpu.dot_dimension_numbers<[1], [0], [0], [1], [0, 0, 1, 1], [], []>} : vector<8x8xf32>, vector<8x768xf32>, vector<8x768xf32> -> vector<8x768xf32>
    %8 = arith.addf %4, %7 : vector<8x768xf32>
    %cst_9 = arith.constant 0.000000e+00 : f32
    %9 = vector.broadcast %cst_9 : f32 to vector<8x1xf32>
    %10 = vector.extract_strided_slice %1 {offsets = [0, 1], sizes = [8, 767], strides = [1, 1]} : vector<8x768xf32> to vector<8x767xf32>
    %11 = tpu.concatenate %10, %9 in 1 : vector<8x767xf32>, vector<8x1xf32> -> vector<8x768xf32>
    %c1 = arith.constant 1 : index
    %c0_10 = arith.constant 0 : index
    %c0_11 = arith.constant 0 : index
    %12 = vector.load %arg2[%c1, %c0_10, %c0_11] : memref<9x8x8xf32, #tpu.memory_space<vmem>>, vector<1x8x8xf32>
    %13 = vector.shape_cast %12 : vector<1x8x8xf32> to vector<8x8xf32>
    %cst_12 = arith.constant dense<0.000000e+00> : vector<8x768xf32>
    %14 = tpu.matmul %13, %11, %cst_12 {dimension_numbers = #tpu.dot_dimension_numbers<[1], [0], [0], [1], [0, 0, 1, 1], [], []>} : vector<8x8xf32>, vector<8x768xf32>, vector<8x768xf32> -> vector<8x768xf32>
    %15 = arith.addf %8, %14 : vector<8x768xf32>
    %cst_13 = arith.constant 0.000000e+00 : f32
    %16 = vector.broadcast %cst_13 : f32 to vector<8x2xf32>
    %17 = vector.extract_strided_slice %1 {offsets = [0, 2], sizes = [8, 766], strides = [1, 1]} : vector<8x768xf32> to vector<8x766xf32>
    %18 = tpu.concatenate %17, %16 in 1 : vector<8x766xf32>, vector<8x2xf32> -> vector<8x768xf32>
    %c2 = arith.constant 2 : index
    %c0_14 = arith.constant 0 : index
    %c0_15 = arith.constant 0 : index
    %19 = vector.load %arg2[%c2, %c0_14, %c0_15] : memref<9x8x8xf32, #tpu.memory_space<vmem>>, vector<1x8x8xf32>
    %20 = vector.shape_cast %19 : vector<1x8x8xf32> to vector<8x8xf32>
    %cst_16 = arith.constant dense<0.000000e+00> : vector<8x768xf32>
    %21 = tpu.matmul %20, %18, %cst_16 {dimension_numbers = #tpu.dot_dimension_numbers<[1], [0], [0], [1], [0, 0, 1, 1], [], []>} : vector<8x8xf32>, vector<8x768xf32>, vector<8x768xf32> -> vector<8x768xf32>
    %22 = arith.addf %15, %21 : vector<8x768xf32>
    %cst_17 = arith.constant 0.000000e+00 : f32
    %23 = vector.broadcast %cst_17 : f32 to vector<8x18xf32>
    %24 = vector.extract_strided_slice %1 {offsets = [0, 18], sizes = [8, 750], strides = [1, 1]} : vector<8x768xf32> to vector<8x750xf32>
    %25 = tpu.concatenate %24, %23 in 1 : vector<8x750xf32>, vector<8x18xf32> -> vector<8x768xf32>
    %c3 = arith.constant 3 : index
    %c0_18 = arith.constant 0 : index
    %c0_19 = arith.constant 0 : index
    %26 = vector.load %arg2[%c3, %c0_18, %c0_19] : memref<9x8x8xf32, #tpu.memory_space<vmem>>, vector<1x8x8xf32>
    %27 = vector.shape_cast %26 : vector<1x8x8xf32> to vector<8x8xf32>
    %cst_20 = arith.constant dense<0.000000e+00> : vector<8x768xf32>
    %28 = tpu.matmul %27, %25, %cst_20 {dimension_numbers = #tpu.dot_dimension_numbers<[1], [0], [0], [1], [0, 0, 1, 1], [], []>} : vector<8x8xf32>, vector<8x768xf32>, vector<8x768xf32> -> vector<8x768xf32>
    %29 = arith.addf %22, %28 : vector<8x768xf32>
    %cst_21 = arith.constant 0.000000e+00 : f32
    %30 = vector.broadcast %cst_21 : f32 to vector<8x19xf32>
    %31 = vector.extract_strided_slice %1 {offsets = [0, 19], sizes = [8, 749], strides = [1, 1]} : vector<8x768xf32> to vector<8x749xf32>
    %32 = tpu.concatenate %31, %30 in 1 : vector<8x749xf32>, vector<8x19xf32> -> vector<8x768xf32>
    %c4 = arith.constant 4 : index
    %c0_22 = arith.constant 0 : index
    %c0_23 = arith.constant 0 : index
    %33 = vector.load %arg2[%c4, %c0_22, %c0_23] : memref<9x8x8xf32, #tpu.memory_space<vmem>>, vector<1x8x8xf32>
    %34 = vector.shape_cast %33 : vector<1x8x8xf32> to vector<8x8xf32>
    %cst_24 = arith.constant dense<0.000000e+00> : vector<8x768xf32>
    %35 = tpu.matmul %34, %32, %cst_24 {dimension_numbers = #tpu.dot_dimension_numbers<[1], [0], [0], [1], [0, 0, 1, 1], [], []>} : vector<8x8xf32>, vector<8x768xf32>, vector<8x768xf32> -> vector<8x768xf32>
    %36 = arith.addf %29, %35 : vector<8x768xf32>
    %cst_25 = arith.constant 0.000000e+00 : f32
    %37 = vector.broadcast %cst_25 : f32 to vector<8x20xf32>
    %38 = vector.extract_strided_slice %1 {offsets = [0, 20], sizes = [8, 748], strides = [1, 1]} : vector<8x768xf32> to vector<8x748xf32>
    %39 = tpu.concatenate %38, %37 in 1 : vector<8x748xf32>, vector<8x20xf32> -> vector<8x768xf32>
    %c5 = arith.constant 5 : index
    %c0_26 = arith.constant 0 : index
    %c0_27 = arith.constant 0 : index
    %40 = vector.load %arg2[%c5, %c0_26, %c0_27] : memref<9x8x8xf32, #tpu.memory_space<vmem>>, vector<1x8x8xf32>
    %41 = vector.shape_cast %40 : vector<1x8x8xf32> to vector<8x8xf32>
    %cst_28 = arith.constant dense<0.000000e+00> : vector<8x768xf32>
    %42 = tpu.matmul %41, %39, %cst_28 {dimension_numbers = #tpu.dot_dimension_numbers<[1], [0], [0], [1], [0, 0, 1, 1], [], []>} : vector<8x8xf32>, vector<8x768xf32>, vector<8x768xf32> -> vector<8x768xf32>
    %43 = arith.addf %36, %42 : vector<8x768xf32>
    %cst_29 = arith.constant 0.000000e+00 : f32
    %44 = vector.broadcast %cst_29 : f32 to vector<8x36xf32>
    %45 = vector.extract_strided_slice %1 {offsets = [0, 36], sizes = [8, 732], strides = [1, 1]} : vector<8x768xf32> to vector<8x732xf32>
    %46 = tpu.concatenate %45, %44 in 1 : vector<8x732xf32>, vector<8x36xf32> -> vector<8x768xf32>
    %c6 = arith.constant 6 : index
    %c0_30 = arith.constant 0 : index
    %c0_31 = arith.constant 0 : index
    %47 = vector.load %arg2[%c6, %c0_30, %c0_31] : memref<9x8x8xf32, #tpu.memory_space<vmem>>, vector<1x8x8xf32>
    %48 = vector.shape_cast %47 : vector<1x8x8xf32> to vector<8x8xf32>
    %cst_32 = arith.constant dense<0.000000e+00> : vector<8x768xf32>
    %49 = tpu.matmul %48, %46, %cst_32 {dimension_numbers = #tpu.dot_dimension_numbers<[1], [0], [0], [1], [0, 0, 1, 1], [], []>} : vector<8x8xf32>, vector<8x768xf32>, vector<8x768xf32> -> vector<8x768xf32>
    %50 = arith.addf %43, %49 : vector<8x768xf32>
    %cst_33 = arith.constant 0.000000e+00 : f32
    %51 = vector.broadcast %cst_33 : f32 to vector<8x37xf32>
    %52 = vector.extract_strided_slice %1 {offsets = [0, 37], sizes = [8, 731], strides = [1, 1]} : vector<8x768xf32> to vector<8x731xf32>
    %53 = tpu.concatenate %52, %51 in 1 : vector<8x731xf32>, vector<8x37xf32> -> vector<8x768xf32>
    %c7 = arith.constant 7 : index
    %c0_34 = arith.constant 0 : index
    %c0_35 = arith.constant 0 : index
    %54 = vector.load %arg2[%c7, %c0_34, %c0_35] : memref<9x8x8xf32, #tpu.memory_space<vmem>>, vector<1x8x8xf32>
    %55 = vector.shape_cast %54 : vector<1x8x8xf32> to vector<8x8xf32>
    %cst_36 = arith.constant dense<0.000000e+00> : vector<8x768xf32>
    %56 = tpu.matmul %55, %53, %cst_36 {dimension_numbers = #tpu.dot_dimension_numbers<[1], [0], [0], [1], [0, 0, 1, 1], [], []>} : vector<8x8xf32>, vector<8x768xf32>, vector<8x768xf32> -> vector<8x768xf32>
    %57 = arith.addf %50, %56 : vector<8x768xf32>
    %cst_37 = arith.constant 0.000000e+00 : f32
    %58 = vector.broadcast %cst_37 : f32 to vector<8x38xf32>
    %59 = vector.extract_strided_slice %1 {offsets = [0, 38], sizes = [8, 730], strides = [1, 1]} : vector<8x768xf32> to vector<8x730xf32>
    %60 = tpu.concatenate %59, %58 in 1 : vector<8x730xf32>, vector<8x38xf32> -> vector<8x768xf32>
    %c8 = arith.constant 8 : index
    %c0_38 = arith.constant 0 : index
    %c0_39 = arith.constant 0 : index
    %61 = vector.load %arg2[%c8, %c0_38, %c0_39] : memref<9x8x8xf32, #tpu.memory_space<vmem>>, vector<1x8x8xf32>
    %62 = vector.shape_cast %61 : vector<1x8x8xf32> to vector<8x8xf32>
    %cst_40 = arith.constant dense<0.000000e+00> : vector<8x768xf32>
    %63 = tpu.matmul %62, %60, %cst_40 {dimension_numbers = #tpu.dot_dimension_numbers<[1], [0], [0], [1], [0, 0, 1, 1], [], []>} : vector<8x8xf32>, vector<8x768xf32>, vector<8x768xf32> -> vector<8x768xf32>
    %64 = arith.addf %57, %63 : vector<8x768xf32>
    %65 = vector.broadcast %3 : vector<8x1xf32> to vector<8x768xf32>
    %66 = arith.addf %64, %65 : vector<8x768xf32>
    %cst_41 = arith.constant 0.000000e+00 : f32
    %67 = vector.broadcast %cst_41 : f32 to vector<8x768xf32>
    %68 = arith.cmpf oge, %66, %67 : vector<8x768xf32>
    %cst_42 = arith.constant 0.00999999977 : f32
    %69 = vector.broadcast %cst_42 : f32 to vector<8x768xf32>
    %70 = arith.mulf %69, %66 : vector<8x768xf32>
    %71 = arith.select %68, %66, %70 : vector<8x768xi1>, vector<8x768xf32>
    %c0_43 = arith.constant 0 : index
    %c0_44 = arith.constant 0 : index
    %72 = vector.load %arg5[%c0_43, %c0_44] : memref<1x768xf32, #tpu.memory_space<vmem>>, vector<1x768xf32>
    %73 = vector.broadcast %72 : vector<1x768xf32> to vector<8x768xf32>
    %74 = arith.mulf %71, %73 : vector<8x768xf32>
    %cst_45 = arith.constant 0.000000e+00 : f32
    %75 = vector.broadcast %cst_45 : f32 to vector<8x19xf32>
    %76 = vector.extract_strided_slice %74 {offsets = [0, 0], sizes = [8, 749], strides = [1, 1]} : vector<8x768xf32> to vector<8x749xf32>
    %77 = tpu.concatenate %75, %76 in 1 : vector<8x19xf32>, vector<8x749xf32> -> vector<8x768xf32>
    %c0_46 = arith.constant 0 : index
    %c0_47 = arith.constant 0 : index
    %c0_48 = arith.constant 0 : index
    %c0_49 = arith.constant 0 : index
    %78 = vector.load %arg3[%c0_46, %c0_47, %c0_48, %c0_49] : memref<1x9x8x8xf32, #tpu.memory_space<vmem>>, vector<1x9x8x8xf32>
    %79 = vector.shape_cast %78 : vector<1x9x8x8xf32> to vector<9x8x8xf32>
    %c1_50 = arith.constant 1 : index
    %c0_51 = arith.constant 0 : index
    %c0_52 = arith.constant 0 : index
    %80 = vector.load %arg4[%c1_50, %c0_51, %c0_52] : memref<2x8x1xf32, #tpu.memory_space<vmem>>, vector<1x8x1xf32>
    %81 = vector.shape_cast %80 : vector<1x8x1xf32> to vector<8x1xf32>
    %cst_53 = arith.constant 0.000000e+00 : f32
    %82 = vector.broadcast %cst_53 : f32 to vector<8x768xf32>
    %83 = vector.extract_strided_slice %79 {offsets = [0, 0, 0], sizes = [1, 8, 8], strides = [1, 1, 1]} : vector<9x8x8xf32> to vector<1x8x8xf32>
    %84 = vector.shape_cast %83 : vector<1x8x8xf32> to vector<8x8xf32>
    %cst_54 = arith.constant dense<0.000000e+00> : vector<8x768xf32>
    %85 = tpu.matmul %84, %77, %cst_54 {dimension_numbers = #tpu.dot_dimension_numbers<[1], [0], [0], [1], [0, 0, 1, 1], [], []>} : vector<8x8xf32>, vector<8x768xf32>, vector<8x768xf32> -> vector<8x768xf32>
    %86 = arith.addf %82, %85 : vector<8x768xf32>
    %cst_55 = arith.constant 0.000000e+00 : f32
    %87 = vector.broadcast %cst_55 : f32 to vector<8x1xf32>
    %88 = vector.extract_strided_slice %77 {offsets = [0, 1], sizes = [8, 767], strides = [1, 1]} : vector<8x768xf32> to vector<8x767xf32>
    %89 = tpu.concatenate %88, %87 in 1 : vector<8x767xf32>, vector<8x1xf32> -> vector<8x768xf32>
    %90 = vector.extract_strided_slice %79 {offsets = [1, 0, 0], sizes = [1, 8, 8], strides = [1, 1, 1]} : vector<9x8x8xf32> to vector<1x8x8xf32>
    %91 = vector.shape_cast %90 : vector<1x8x8xf32> to vector<8x8xf32>
    %cst_56 = arith.constant dense<0.000000e+00> : vector<8x768xf32>
    %92 = tpu.matmul %91, %89, %cst_56 {dimension_numbers = #tpu.dot_dimension_numbers<[1], [0], [0], [1], [0, 0, 1, 1], [], []>} : vector<8x8xf32>, vector<8x768xf32>, vector<8x768xf32> -> vector<8x768xf32>
    %93 = arith.addf %86, %92 : vector<8x768xf32>
    %cst_57 = arith.constant 0.000000e+00 : f32
    %94 = vector.broadcast %cst_57 : f32 to vector<8x2xf32>
    %95 = vector.extract_strided_slice %77 {offsets = [0, 2], sizes = [8, 766], strides = [1, 1]} : vector<8x768xf32> to vector<8x766xf32>
    %96 = tpu.concatenate %95, %94 in 1 : vector<8x766xf32>, vector<8x2xf32> -> vector<8x768xf32>
    %97 = vector.extract_strided_slice %79 {offsets = [2, 0, 0], sizes = [1, 8, 8], strides = [1, 1, 1]} : vector<9x8x8xf32> to vector<1x8x8xf32>
    %98 = vector.shape_cast %97 : vector<1x8x8xf32> to vector<8x8xf32>
    %cst_58 = arith.constant dense<0.000000e+00> : vector<8x768xf32>
    %99 = tpu.matmul %98, %96, %cst_58 {dimension_numbers = #tpu.dot_dimension_numbers<[1], [0], [0], [1], [0, 0, 1, 1], [], []>} : vector<8x8xf32>, vector<8x768xf32>, vector<8x768xf32> -> vector<8x768xf32>
    %100 = arith.addf %93, %99 : vector<8x768xf32>
    %cst_59 = arith.constant 0.000000e+00 : f32
    %101 = vector.broadcast %cst_59 : f32 to vector<8x18xf32>
    %102 = vector.extract_strided_slice %77 {offsets = [0, 18], sizes = [8, 750], strides = [1, 1]} : vector<8x768xf32> to vector<8x750xf32>
    %103 = tpu.concatenate %102, %101 in 1 : vector<8x750xf32>, vector<8x18xf32> -> vector<8x768xf32>
    %104 = vector.extract_strided_slice %79 {offsets = [3, 0, 0], sizes = [1, 8, 8], strides = [1, 1, 1]} : vector<9x8x8xf32> to vector<1x8x8xf32>
    %105 = vector.shape_cast %104 : vector<1x8x8xf32> to vector<8x8xf32>
    %cst_60 = arith.constant dense<0.000000e+00> : vector<8x768xf32>
    %106 = tpu.matmul %105, %103, %cst_60 {dimension_numbers = #tpu.dot_dimension_numbers<[1], [0], [0], [1], [0, 0, 1, 1], [], []>} : vector<8x8xf32>, vector<8x768xf32>, vector<8x768xf32> -> vector<8x768xf32>
    %107 = arith.addf %100, %106 : vector<8x768xf32>
    %cst_61 = arith.constant 0.000000e+00 : f32
    %108 = vector.broadcast %cst_61 : f32 to vector<8x19xf32>
    %109 = vector.extract_strided_slice %77 {offsets = [0, 19], sizes = [8, 749], strides = [1, 1]} : vector<8x768xf32> to vector<8x749xf32>
    %110 = tpu.concatenate %109, %108 in 1 : vector<8x749xf32>, vector<8x19xf32> -> vector<8x768xf32>
    %111 = vector.extract_strided_slice %79 {offsets = [4, 0, 0], sizes = [1, 8, 8], strides = [1, 1, 1]} : vector<9x8x8xf32> to vector<1x8x8xf32>
    %112 = vector.shape_cast %111 : vector<1x8x8xf32> to vector<8x8xf32>
    %cst_62 = arith.constant dense<0.000000e+00> : vector<8x768xf32>
    %113 = tpu.matmul %112, %110, %cst_62 {dimension_numbers = #tpu.dot_dimension_numbers<[1], [0], [0], [1], [0, 0, 1, 1], [], []>} : vector<8x8xf32>, vector<8x768xf32>, vector<8x768xf32> -> vector<8x768xf32>
    %114 = arith.addf %107, %113 : vector<8x768xf32>
    %cst_63 = arith.constant 0.000000e+00 : f32
    %115 = vector.broadcast %cst_63 : f32 to vector<8x20xf32>
    %116 = vector.extract_strided_slice %77 {offsets = [0, 20], sizes = [8, 748], strides = [1, 1]} : vector<8x768xf32> to vector<8x748xf32>
    %117 = tpu.concatenate %116, %115 in 1 : vector<8x748xf32>, vector<8x20xf32> -> vector<8x768xf32>
    %118 = vector.extract_strided_slice %79 {offsets = [5, 0, 0], sizes = [1, 8, 8], strides = [1, 1, 1]} : vector<9x8x8xf32> to vector<1x8x8xf32>
    %119 = vector.shape_cast %118 : vector<1x8x8xf32> to vector<8x8xf32>
    %cst_64 = arith.constant dense<0.000000e+00> : vector<8x768xf32>
    %120 = tpu.matmul %119, %117, %cst_64 {dimension_numbers = #tpu.dot_dimension_numbers<[1], [0], [0], [1], [0, 0, 1, 1], [], []>} : vector<8x8xf32>, vector<8x768xf32>, vector<8x768xf32> -> vector<8x768xf32>
    %121 = arith.addf %114, %120 : vector<8x768xf32>
    %cst_65 = arith.constant 0.000000e+00 : f32
    %122 = vector.broadcast %cst_65 : f32 to vector<8x36xf32>
    %123 = vector.extract_strided_slice %77 {offsets = [0, 36], sizes = [8, 732], strides = [1, 1]} : vector<8x768xf32> to vector<8x732xf32>
    %124 = tpu.concatenate %123, %122 in 1 : vector<8x732xf32>, vector<8x36xf32> -> vector<8x768xf32>
    %125 = vector.extract_strided_slice %79 {offsets = [6, 0, 0], sizes = [1, 8, 8], strides = [1, 1, 1]} : vector<9x8x8xf32> to vector<1x8x8xf32>
    %126 = vector.shape_cast %125 : vector<1x8x8xf32> to vector<8x8xf32>
    %cst_66 = arith.constant dense<0.000000e+00> : vector<8x768xf32>
    %127 = tpu.matmul %126, %124, %cst_66 {dimension_numbers = #tpu.dot_dimension_numbers<[1], [0], [0], [1], [0, 0, 1, 1], [], []>} : vector<8x8xf32>, vector<8x768xf32>, vector<8x768xf32> -> vector<8x768xf32>
    %128 = arith.addf %121, %127 : vector<8x768xf32>
    %cst_67 = arith.constant 0.000000e+00 : f32
    %129 = vector.broadcast %cst_67 : f32 to vector<8x37xf32>
    %130 = vector.extract_strided_slice %77 {offsets = [0, 37], sizes = [8, 731], strides = [1, 1]} : vector<8x768xf32> to vector<8x731xf32>
    %131 = tpu.concatenate %130, %129 in 1 : vector<8x731xf32>, vector<8x37xf32> -> vector<8x768xf32>
    %132 = vector.extract_strided_slice %79 {offsets = [7, 0, 0], sizes = [1, 8, 8], strides = [1, 1, 1]} : vector<9x8x8xf32> to vector<1x8x8xf32>
    %133 = vector.shape_cast %132 : vector<1x8x8xf32> to vector<8x8xf32>
    %cst_68 = arith.constant dense<0.000000e+00> : vector<8x768xf32>
    %134 = tpu.matmul %133, %131, %cst_68 {dimension_numbers = #tpu.dot_dimension_numbers<[1], [0], [0], [1], [0, 0, 1, 1], [], []>} : vector<8x8xf32>, vector<8x768xf32>, vector<8x768xf32> -> vector<8x768xf32>
    %135 = arith.addf %128, %134 : vector<8x768xf32>
    %cst_69 = arith.constant 0.000000e+00 : f32
    %136 = vector.broadcast %cst_69 : f32 to vector<8x38xf32>
    %137 = vector.extract_strided_slice %77 {offsets = [0, 38], sizes = [8, 730], strides = [1, 1]} : vector<8x768xf32> to vector<8x730xf32>
    %138 = tpu.concatenate %137, %136 in 1 : vector<8x730xf32>, vector<8x38xf32> -> vector<8x768xf32>
    %139 = vector.extract_strided_slice %79 {offsets = [8, 0, 0], sizes = [1, 8, 8], strides = [1, 1, 1]} : vector<9x8x8xf32> to vector<1x8x8xf32>
    %140 = vector.shape_cast %139 : vector<1x8x8xf32> to vector<8x8xf32>
    %cst_70 = arith.constant dense<0.000000e+00> : vector<8x768xf32>
    %141 = tpu.matmul %140, %138, %cst_70 {dimension_numbers = #tpu.dot_dimension_numbers<[1], [0], [0], [1], [0, 0, 1, 1], [], []>} : vector<8x8xf32>, vector<8x768xf32>, vector<8x768xf32> -> vector<8x768xf32>
    %142 = arith.addf %135, %141 : vector<8x768xf32>
    %143 = vector.broadcast %81 : vector<8x1xf32> to vector<8x768xf32>
    %144 = arith.addf %142, %143 : vector<8x768xf32>
    %cst_71 = arith.constant 0.000000e+00 : f32
    %145 = vector.broadcast %cst_71 : f32 to vector<8x768xf32>
    %146 = arith.cmpf oge, %144, %145 : vector<8x768xf32>
    %cst_72 = arith.constant 0.00999999977 : f32
    %147 = vector.broadcast %cst_72 : f32 to vector<8x768xf32>
    %148 = arith.mulf %147, %144 : vector<8x768xf32>
    %149 = arith.select %146, %144, %148 : vector<8x768xi1>, vector<8x768xf32>
    %c0_73 = arith.constant 0 : index
    %c0_74 = arith.constant 0 : index
    %c0_75 = arith.constant 0 : index
    %150 = vector.load %arg6[%c0_73, %c0_74, %c0_75] : memref<1x8x768xf32, #tpu.memory_space<vmem>>, vector<1x8x768xf32>
    %151 = vector.shape_cast %150 : vector<1x8x768xf32> to vector<8x768xf32>
    %152 = vector.shape_cast %149 : vector<8x768xf32> to vector<1x8x768xf32>
    tpu.vector_store %arg6[%c0_73, %c0_74, %c0_75], %152 {strides = array<i32>} : memref<1x8x768xf32, #tpu.memory_space<vmem>>, vector<1x8x768xf32>,
    return
  }
  func.func @transform_0(%arg0: i32) -> (i32, i32, i32) {
    %c0_i32 = arith.constant 0 : i32
    %c0_i32_0 = arith.constant 0 : i32
    %c0_i32_1 = arith.constant 0 : i32
    return %arg0, %c0_i32, %c0_i32_0 : i32, i32, i32
  }
  func.func @transform_1(%arg0: i32) -> (i32, i32, i32) {
    %c0_i32 = arith.constant 0 : i32
    %c0_i32_0 = arith.constant 0 : i32
    %c0_i32_1 = arith.constant 0 : i32
    %c0_i32_2 = arith.constant 0 : i32
    return %c0_i32, %c0_i32_0, %c0_i32_1 : i32, i32, i32
  }
  func.func @transform_2(%arg0: i32) -> (i32, i32, i32, i32) {
    %c0_i32 = arith.constant 0 : i32
    %c0_i32_0 = arith.constant 0 : i32
    %c0_i32_1 = arith.constant 0 : i32
    %c0_i32_2 = arith.constant 0 : i32
    %c0_i32_3 = arith.constant 0 : i32
    return %c0_i32, %c0_i32_0, %c0_i32_1, %c0_i32_2 : i32, i32, i32, i32
  }
  func.func @transform_3(%arg0: i32) -> (i32, i32, i32) {
    %c0_i32 = arith.constant 0 : i32
    %c0_i32_0 = arith.constant 0 : i32
    %c0_i32_1 = arith.constant 0 : i32
    %c0_i32_2 = arith.constant 0 : i32
    return %c0_i32, %c0_i32_0, %c0_i32_1 : i32, i32, i32
  }
  func.func @transform_4(%arg0: i32) -> (i32, i32) {
    %c0_i32 = arith.constant 0 : i32
    %c0_i32_0 = arith.constant 0 : i32
    %c0_i32_1 = arith.constant 0 : i32
    return %c0_i32, %c0_i32_0 : i32, i32
  }
  func.func @transform_5(%arg0: i32) -> (i32, i32, i32) {
    %c0_i32 = arith.constant 0 : i32
    %c0_i32_0 = arith.constant 0 : i32
    %c0_i32_1 = arith.constant 0 : i32
    return %arg0, %c0_i32, %c0_i32_0 : i32, i32, i32
  }
}

</mosaic_0001>

<llo_original>
// kernel: tpu_custom_call.1
$region0: #{tpu_custom_call.1}
  #allocation0 [shape = 'u32[]', space=smem, size = 0x4, offset = 0x4, fixed_abs, tag = 'smem constant byte address 0x4 - core index']
  #allocation1 [shape = 'u32[144,128]{1,0:T(1,128)}', space=vmem, size = 0x12000, scoped, tag = 'internal scratch']
  %s0 = inlined_call_operand.vmem [shape: f32[1,8,768], index: 0, kind: input, shape index: {}]
  %s1 = inlined_call_operand.vmem [shape: f32[9,8,8], index: 1, kind: input, shape index: {}]
  %s2 = inlined_call_operand.vmem [shape: f32[1,9,8,8], index: 2, kind: input, shape index: {}]
  %s3 = inlined_call_operand.vmem [shape: f32[2,8,1], index: 3, kind: input, shape index: {}]
  %s4 = inlined_call_operand.vmem [shape: f32[1,768], index: 4, kind: input, shape index: {}]
  %s5 = inlined_call_operand.hbm [shape: f32[1,8,768], index: 5, kind: output, shape index: {}]
  %s6 = sld [smem:[#allocation0]]
  $region30: #{tpu_custom_call.1} parent=0
    _
  %s8 = ssub.s32 1, %s6
  %s9 = scalar_select 0, %s8, %s6
  $region1: #{tpu_custom_call.1} parent=0
    #allocation2 [shape = 'u8[24576]{0}', space=vmem, size = 0x6000, scoped, tag = 'output window, operand 0, single buffered']
    #allocation3 [shape = 's32[1]{0}', space=sflag, size = 0x4, scoped, tag = 'scoped memory for tpu_custom_call.1']
    %10 = vsyncpa [#allocation3], 0
    // Predicated region
    $region2: #{tpu_custom_call.1} parent=1 // pred_check
      _
    $region3: #{tpu_custom_call.1} parent=1 // pred_check_branch
      %12 = sbr.rel (0) target = $region5
    $region4: #{tpu_custom_call.1} parent=1 // pred_region
      _
    $region5: #{tpu_custom_call.1} parent=1 // pred_fallthru
      _
    // Predicated region
    $region6: #{tpu_custom_call.1} parent=1 // pred_check
      _
    $region7: #{tpu_custom_call.1} parent=1 // pred_check_branch
      %14 = sbr.rel (0) target = $region9
    $region8: #{tpu_custom_call.1} parent=1 // pred_region
      _
    $region9: #{tpu_custom_call.1} parent=1 // pred_fallthru
      _
    // Predicated region
    $region10: #{tpu_custom_call.1} parent=1 // pred_check
      _
    $region11: #{tpu_custom_call.1} parent=1 // pred_check_branch
      %16 = sbr.rel (0) target = $region13
    $region12: #{tpu_custom_call.1} parent=1 // pred_region
      _
    $region13: #{tpu_custom_call.1} parent=1 // pred_fallthru
      _
    // Predicated region
    $region14: #{tpu_custom_call.1} parent=1 // pred_check
      _
    $region15: #{tpu_custom_call.1} parent=1 // pred_check_branch
      %18 = sbr.rel (0) target = $region17
    $region16: #{tpu_custom_call.1} parent=1 // pred_region
      _
    $region17: #{tpu_custom_call.1} parent=1 // pred_fallthru
      _
    // Predicated region
    $region18: #{tpu_custom_call.1} parent=1 // pred_check
      _
    $region19: #{tpu_custom_call.1} parent=1 // pred_check_branch
      %20 = sbr.rel (0) target = $region21
    $region20: #{tpu_custom_call.1} parent=1 // pred_region
      _
    $region21: #{tpu_custom_call.1} parent=1 // pred_fallthru
      _
    %v21 = vld [vmem:[%s0] sm:$0xff]
    %v22 = vld [vmem:[%s0 + $0x8] sm:$0xff]
    %v23 = vld [vmem:[%s0 + $0x10] sm:$0xff]
    %v24 = vld [vmem:[%s0 + $0x18] sm:$0xff]
    %v25 = vld [vmem:[%s0 + $0x20] sm:$0xff]
    %v26 = vld [vmem:[%s0 + $0x28] sm:$0xff]
    %v27 = vld [vmem:[%s3] sm:$0xff]
    %v28 = vld [vmem:[%s1] sm:$0xff]
    %35 = vrot.lane.b32.xlu0 %v21, 127
    %v36 = vpop.permute.xlu0 %35
    %37 = vrot.lane.b32.xlu0 %v22, 127
    %v38 = vpop.permute.xlu0 %37
    %39 = vrot.lane.b32.xlu0 %v23, 127
    %v40 = vpop.permute.xlu0 %39
    %41 = vrot.lane.b32.xlu0 %v24, 127
    %v42 = vpop.permute.xlu0 %41
    %43 = vrot.lane.b32.xlu0 %v25, 127
    %v44 = vpop.permute.xlu0 %43
    %45 = vrot.lane.b32.xlu0 %v26, 127
    %v46 = vpop.permute.xlu0 %45
    %vm47 = vcmask 1039360
    %v48 = vsel %vm47, %v36, %v38
    %v49 = vsel %vm47, %v38, %v40
    %v50 = vsel %vm47, %v40, %v42
    %v51 = vsel %vm47, %v42, %v44
    %v52 = vsel %vm47, %v44, %v46
    %v59 = vsel %vm47, %v46, 0.0
    %s60 = scalar_lea.vmem %s1, 8
    %v61 = vld [vmem:[%s60] sm:$0xff]
    %vm62 = vcmask 64512
    %v64 = vsel %vm62, %v61, 0
    %66 = vmatprep.subr.mxu0 %v49
    %67 = vmatpush1.msra.mxu0 %v48
    %68 = vmatprep.subr.mxu0 0.0
    %69 = vmatpush1.msra.mxu0 0.0
    %70 = vmatprep.subr.mxu0 0.0
    %71 = vmatpush1.msra.mxu0 0.0
    %72 = vmatprep.subr.mxu0 0.0
    %73 = vmatpush1.msra.mxu0 0.0
    %74 = vmatprep.subr.mxu0 0.0
    %75 = vmatpush1.msra.mxu0 0.0
    %76 = vmatprep.subr.mxu0 0.0
    %77 = vmatpush1.msra.mxu0 0.0
    %78 = vmatprep.subr.mxu0 0.0
    %79 = vmatpush1.msra.mxu0 0.0
    %80 = vmatprep.subr.mxu0 0.0
    %81 = vmatpush1.msra.mxu0 0.0
    %82 = vmatprep.subr.mxu0 0.0
    %83 = vmatpush1.msra.mxu0 0.0
    %84 = vmatprep.subr.mxu0 0.0
    %85 = vmatpush1.msra.mxu0 0.0
    %86 = vmatprep.subr.mxu0 0.0
    %87 = vmatpush1.msra.mxu0 0.0
    %88 = vmatprep.subr.mxu0 0.0
    %89 = vmatpush1.msra.mxu0 0.0
    %90 = vmatprep.subr.mxu0 0.0
    %91 = vmatpush1.msra.mxu0 0.0
    %92 = vmatprep.subr.mxu0 0.0
    %93 = vmatpush1.msra.mxu0 0.0
    %94 = vmatprep.subr.mxu0 0.0
    %95 = vmatpush1.msra.mxu0 0.0
    %96 = vmatprep.subr.mxu0 0.0
    %97 = vmatpush1.msra.mxu0 0.0
    %98 = vmatprep.subr.mxu0 0.0
    %99 = vmatpush1.msra.mxu0 0.0
    %100 = vmatprep.subr.mxu0 0.0
    %101 = vmatpush1.msra.mxu0 0.0
    %102 = vmatprep.subr.mxu0 0.0
    %103 = vmatpush1.msra.mxu0 0.0
    %104 = vmatprep.subr.mxu0 0.0
    %105 = vmatpush1.msra.mxu0 0.0
    %106 = vmatprep.subr.mxu0 0.0
    %107 = vmatpush1.msra.mxu0 0.0
    %108 = vmatprep.subr.mxu0 0.0
    %109 = vmatpush1.msra.mxu0 0.0
    %110 = vmatprep.subr.mxu0 0.0
    %111 = vmatpush1.msra.mxu0 0.0
    %112 = vmatprep.subr.mxu0 0.0
    %113 = vmatpush1.msra.mxu0 0.0
    %114 = vmatprep.subr.mxu0 0.0
    %115 = vmatpush1.msra.mxu0 0.0
    %116 = vmatprep.subr.mxu0 0.0
    %117 = vmatpush1.msra.mxu0 0.0
    %118 = vmatprep.subr.mxu0 0.0
    %119 = vmatpush1.msra.mxu0 0.0
    %120 = vmatprep.subr.mxu0 0.0
    %121 = vmatpush1.msra.mxu0 0.0
    %122 = vmatprep.subr.mxu0 0.0
    %123 = vmatpush1.msra.mxu0 0.0
    %124 = vmatprep.subr.mxu0 0.0
    %125 = vmatpush1.msra.mxu0 0.0
    %126 = vmatprep.subr.mxu0 0.0
    %127 = vmatpush1.msra.mxu0 0.0
    %128 = vmatprep.subr.mxu0 0.0
    %129 = vmatpush1.msra.mxu0 0.0
    %130 = vmatprep.mubr.f32.mxu0 0.0
    %131 = vmatmul.mubr.f32.gmra.mrb[0].mxu0 %v64
    %v132 = vpop.f32.mrb[0].mxu0
    %v133 = vadd.f32 0.0, %v132
    %v134 = vpop.f32.mrb[0].mxu0
    %v135 = vadd.f32 0.0, %v134
    %136 = vdwg.mxu0
    %137 = vmatprep.subr.mxu0 %v51
    %138 = vmatpush1.msra.mxu0 %v50
    %139 = vmatprep.subr.mxu0 0.0
    %140 = vmatpush1.msra.mxu0 0.0
    %141 = vmatprep.subr.mxu0 0.0
    %142 = vmatpush1.msra.mxu0 0.0
    %143 = vmatprep.subr.mxu0 0.0
    %144 = vmatpush1.msra.mxu0 0.0
    %145 = vmatprep.subr.mxu0 0.0
    %146 = vmatpush1.msra.mxu0 0.0
    %147 = vmatprep.subr.mxu0 0.0
    %148 = vmatpush1.msra.mxu0 0.0
    %149 = vmatprep.subr.mxu0 0.0
    %150 = vmatpush1.msra.mxu0 0.0
    %151 = vmatprep.subr.mxu0 0.0
    %152 = vmatpush1.msra.mxu0 0.0
    %153 = vmatprep.subr.mxu0 0.0
    %154 = vmatpush1.msra.mxu0 0.0
    %155 = vmatprep.subr.mxu0 0.0
    %156 = vmatpush1.msra.mxu0 0.0
    %157 = vmatprep.subr.mxu0 0.0
    %158 = vmatpush1.msra.mxu0 0.0
    %159 = vmatprep.subr.mxu0 0.0
    %160 = vmatpush1.msra.mxu0 0.0
    %161 = vmatprep.subr.mxu0 0.0
    %162 = vmatpush1.msra.mxu0 0.0
    %163 = vmatprep.subr.mxu0 0.0
    %164 = vmatpush1.msra.mxu0 0.0
    %165 = vmatprep.subr.mxu0 0.0
    %166 = vmatpush1.msra.mxu0 0.0
    %167 = vmatprep.subr.mxu0 0.0
    %168 = vmatpush1.msra.mxu0 0.0
    %169 = vmatprep.subr.mxu0 0.0
    %170 = vmatpush1.msra.mxu0 0.0
    %171 = vmatprep.subr.mxu0 0.0
    %172 = vmatpush1.msra.mxu0 0.0
    %173 = vmatprep.subr.mxu0 0.0
    %174 = vmatpush1.msra.mxu0 0.0
    %175 = vmatprep.subr.mxu0 0.0
    %176 = vmatpush1.msra.mxu0 0.0
    %177 = vmatprep.subr.mxu0 0.0
    %178 = vmatpush1.msra.mxu0 0.0
    %179 = vmatprep.subr.mxu0 0.0
    %180 = vmatpush1.msra.mxu0 0.0
    %181 = vmatprep.subr.mxu0 0.0
    %182 = vmatpush1.msra.mxu0 0.0
    %183 = vmatprep.subr.mxu0 0.0
    %184 = vmatpush1.msra.mxu0 0.0
    %185 = vmatprep.subr.mxu0 0.0
    %186 = vmatpush1.msra.mxu0 0.0
    %187 = vmatprep.subr.mxu0 0.0
    %188 = vmatpush1.msra.mxu0 0.0
    %189 = vmatprep.subr.mxu0 0.0
    %190 = vmatpush1.msra.mxu0 0.0
    %191 = vmatprep.subr.mxu0 0.0
    %192 = vmatpush1.msra.mxu0 0.0
    %193 = vmatprep.subr.mxu0 0.0
    %194 = vmatpush1.msra.mxu0 0.0
    %195 = vmatprep.subr.mxu0 0.0
    %196 = vmatpush1.msra.mxu0 0.0
    %197 = vmatprep.subr.mxu0 0.0
    %198 = vmatpush1.msra.mxu0 0.0
    %199 = vmatprep.subr.mxu0 0.0
    %200 = vmatpush1.msra.mxu0 0.0
    %201 = vmatprep.mubr.f32.mxu0 0.0
    %202 = vmatmul.mubr.f32.gmra.mrb[0].mxu0 %v64
    %v203 = vpop.f32.mrb[0].mxu0
    %v204 = vadd.f32 0.0, %v203
    %v205 = vpop.f32.mrb[0].mxu0
    %v206 = vadd.f32 0.0, %v205
    %207 = vdwg.mxu0
    %208 = vmatprep.subr.mxu0 %v59
    %209 = vmatpush1.msra.mxu0 %v52
    %210 = vmatprep.subr.mxu0 0.0
    %211 = vmatpush1.msra.mxu0 0.0
    %212 = vmatprep.subr.mxu0 0.0
    %213 = vmatpush1.msra.mxu0 0.0
    %214 = vmatprep.subr.mxu0 0.0
    %215 = vmatpush1.msra.mxu0 0.0
    %216 = vmatprep.subr.mxu0 0.0
    %217 = vmatpush1.msra.mxu0 0.0
    %218 = vmatprep.subr.mxu0 0.0
    %219 = vmatpush1.msra.mxu0 0.0
    %220 = vmatprep.subr.mxu0 0.0
    %221 = vmatpush1.msra.mxu0 0.0
    %222 = vmatprep.subr.mxu0 0.0
    %223 = vmatpush1.msra.mxu0 0.0
    %224 = vmatprep.subr.mxu0 0.0
    %225 = vmatpush1.msra.mxu0 0.0
    %226 = vmatprep.subr.mxu0 0.0
    %227 = vmatpush1.msra.mxu0 0.0
    %228 = vmatprep.subr.mxu0 0.0
    %229 = vmatpush1.msra.mxu0 0.0
    %230 = vmatprep.subr.mxu0 0.0
    %231 = vmatpush1.msra.mxu0 0.0
    %232 = vmatprep.subr.mxu0 0.0
    %233 = vmatpush1.msra.mxu0 0.0
    %234 = vmatprep.subr.mxu0 0.0
    %235 = vmatpush1.msra.mxu0 0.0
    %236 = vmatprep.subr.mxu0 0.0
    %237 = vmatpush1.msra.mxu0 0.0
    %238 = vmatprep.subr.mxu0 0.0
    %239 = vmatpush1.msra.mxu0 0.0
    %240 = vmatprep.subr.mxu0 0.0
    %241 = vmatpush1.msra.mxu0 0.0
    %242 = vmatprep.subr.mxu0 0.0
    %243 = vmatpush1.msra.mxu0 0.0
    %244 = vmatprep.subr.mxu0 0.0
    %245 = vmatpush1.msra.mxu0 0.0
    %246 = vmatprep.subr.mxu0 0.0
    %247 = vmatpush1.msra.mxu0 0.0
    %248 = vmatprep.subr.mxu0 0.0
    %249 = vmatpush1.msra.mxu0 0.0
    %250 = vmatprep.subr.mxu0 0.0
    %251 = vmatpush1.msra.mxu0 0.0
    %252 = vmatprep.subr.mxu0 0.0
    %253 = vmatpush1.msra.mxu0 0.0
    %254 = vmatprep.subr.mxu0 0.0
    %255 = vmatpush1.msra.mxu0 0.0
    %256 = vmatprep.subr.mxu0 0.0
    %257 = vmatpush1.msra.mxu0 0.0
    %258 = vmatprep.subr.mxu0 0.0
    %259 = vmatpush1.msra.mxu0 0.0
    %260 = vmatprep.subr.mxu0 0.0
    %261 = vmatpush1.msra.mxu0 0.0
    %262 = vmatprep.subr.mxu0 0.0
    %263 = vmatpush1.msra.mxu0 0.0
    %264 = vmatprep.subr.mxu0 0.0
    %265 = vmatpush1.msra.mxu0 0.0
    %266 = vmatprep.subr.mxu0 0.0
    %267 = vmatpush1.msra.mxu0 0.0
    %268 = vmatprep.subr.mxu0 0.0
    %269 = vmatpush1.msra.mxu0 0.0
    %270 = vmatprep.subr.mxu0 0.0
    %271 = vmatpush1.msra.mxu0 0.0
    %272 = vmatprep.mubr.f32.mxu0 0.0
    %273 = vmatmul.mubr.f32.gmra.mrb[0].mxu0 %v64
    %v274 = vpop.f32.mrb[0].mxu0
    %v275 = vadd.f32 0.0, %v274
    %v276 = vpop.f32.mrb[0].mxu0
    %v277 = vadd.f32 0.0, %v276
    %278 = vdwg.mxu0
    %v280 = vsel %vm62, %v28, 0
    %282 = vmatprep.subr.mxu0 %v22
    %283 = vmatpush1.msra.mxu0 %v21
    %284 = vmatprep.subr.mxu0 0.0
    %285 = vmatpush1.msra.mxu0 0.0
    %286 = vmatprep.subr.mxu0 0.0
    %287 = vmatpush1.msra.mxu0 0.0
    %288 = vmatprep.subr.mxu0 0.0
    %289 = vmatpush1.msra.mxu0 0.0
    %290 = vmatprep.subr.mxu0 0.0
    %291 = vmatpush1.msra.mxu0 0.0
    %292 = vmatprep.subr.mxu0 0.0
    %293 = vmatpush1.msra.mxu0 0.0
    %294 = vmatprep.subr.mxu0 0.0
    %295 = vmatpush1.msra.mxu0 0.0
    %296 = vmatprep.subr.mxu0 0.0
    %297 = vmatpush1.msra.mxu0 0.0
    %298 = vmatprep.subr.mxu0 0.0
    %299 = vmatpush1.msra.mxu0 0.0
    %300 = vmatprep.subr.mxu0 0.0
    %301 = vmatpush1.msra.mxu0 0.0
    %302 = vmatprep.subr.mxu0 0.0
    %303 = vmatpush1.msra.mxu0 0.0
    %304 = vmatprep.subr.mxu0 0.0
    %305 = vmatpush1.msra.mxu0 0.0
    %306 = vmatprep.subr.mxu0 0.0
    %307 = vmatpush1.msra.mxu0 0.0
    %308 = vmatprep.subr.mxu0 0.0
    %309 = vmatpush1.msra.mxu0 0.0
    %310 = vmatprep.subr.mxu0 0.0
    %311 = vmatpush1.msra.mxu0 0.0
    %312 = vmatprep.subr.mxu0 0.0
    %313 = vmatpush1.msra.mxu0 0.0
    %314 = vmatprep.subr.mxu0 0.0
    %315 = vmatpush1.msra.mxu0 0.0
    %316 = vmatprep.subr.mxu0 0.0
    %317 = vmatpush1.msra.mxu0 0.0
    %318 = vmatprep.subr.mxu0 0.0
    %319 = vmatpush1.msra.mxu0 0.0
    %320 = vmatprep.subr.mxu0 0.0
    %321 = vmatpush1.msra.mxu0 0.0
    %322 = vmatprep.subr.mxu0 0.0
    %323 = vmatpush1.msra.mxu0 0.0
    %324 = vmatprep.subr.mxu0 0.0
    %325 = vmatpush1.msra.mxu0 0.0
    %326 = vmatprep.subr.mxu0 0.0
    %327 = vmatpush1.msra.mxu0 0.0
    %328 = vmatprep.subr.mxu0 0.0
    %329 = vmatpush1.msra.mxu0 0.0
    %330 = vmatprep.subr.mxu0 0.0
    %331 = vmatpush1.msra.mxu0 0.0
    %332 = vmatprep.subr.mxu0 0.0
    %333 = vmatpush1.msra.mxu0 0.0
    %334 = vmatprep.subr.mxu0 0.0
    %335 = vmatpush1.msra.mxu0 0.0
    %336 = vmatprep.subr.mxu0 0.0
    %337 = vmatpush1.msra.mxu0 0.0
    %338 = vmatprep.subr.mxu0 0.0
    %339 = vmatpush1.msra.mxu0 0.0
    %340 = vmatprep.subr.mxu0 0.0
    %341 = vmatpush1.msra.mxu0 0.0
    %342 = vmatprep.subr.mxu0 0.0
    %343 = vmatpush1.msra.mxu0 0.0
    %344 = vmatprep.subr.mxu0 0.0
    %345 = vmatpush1.msra.mxu0 0.0
    %346 = vmatprep.mubr.f32.mxu0 0.0
    %347 = vmatmul.mubr.f32.gmra.mrb[0].mxu0 %v280
    %v348 = vpop.f32.mrb[0].mxu0
    %v349 = vadd.f32 %v133, %v348
    %v350 = vpop.f32.mrb[0].mxu0
    %v351 = vadd.f32 %v135, %v350
    %352 = vdwg.mxu0
    %353 = vmatprep.subr.mxu0 %v24
    %354 = vmatpush1.msra.mxu0 %v23
    %355 = vmatprep.subr.mxu0 0.0
    %356 = vmatpush1.msra.mxu0 0.0
    %357 = vmatprep.subr.mxu0 0.0
    %358 = vmatpush1.msra.mxu0 0.0
    %359 = vmatprep.subr.mxu0 0.0
    %360 = vmatpush1.msra.mxu0 0.0
    %361 = vmatprep.subr.mxu0 0.0
    %362 = vmatpush1.msra.mxu0 0.0
    %363 = vmatprep.subr.mxu0 0.0
    %364 = vmatpush1.msra.mxu0 0.0
    %365 = vmatprep.subr.mxu0 0.0
    %366 = vmatpush1.msra.mxu0 0.0
    %367 = vmatprep.subr.mxu0 0.0
    %368 = vmatpush1.msra.mxu0 0.0
    %369 = vmatprep.subr.mxu0 0.0
    %370 = vmatpush1.msra.mxu0 0.0
    %371 = vmatprep.subr.mxu0 0.0
    %372 = vmatpush1.msra.mxu0 0.0
    %373 = vmatprep.subr.mxu0 0.0
    %374 = vmatpush1.msra.mxu0 0.0
    %375 = vmatprep.subr.mxu0 0.0
    %376 = vmatpush1.msra.mxu0 0.0
    %377 = vmatprep.subr.mxu0 0.0
    %378 = vmatpush1.msra.mxu0 0.0
    %379 = vmatprep.subr.mxu0 0.0
    %380 = vmatpush1.msra.mxu0 0.0
    %381 = vmatprep.subr.mxu0 0.0
    %382 = vmatpush1.msra.mxu0 0.0
    %383 = vmatprep.subr.mxu0 0.0
    %384 = vmatpush1.msra.mxu0 0.0
    %385 = vmatprep.subr.mxu0 0.0
    %386 = vmatpush1.msra.mxu0 0.0
    %387 = vmatprep.subr.mxu0 0.0
    %388 = vmatpush1.msra.mxu0 0.0
    %389 = vmatprep.subr.mxu0 0.0
    %390 = vmatpush1.msra.mxu0 0.0
    %391 = vmatprep.subr.mxu0 0.0
    %392 = vmatpush1.msra.mxu0 0.0
    %393 = vmatprep.subr.mxu0 0.0
    %394 = vmatpush1.msra.mxu0 0.0
    %395 = vmatprep.subr.mxu0 0.0
    %396 = vmatpush1.msra.mxu0 0.0
    %397 = vmatprep.subr.mxu0 0.0
    %398 = vmatpush1.msra.mxu0 0.0
    %399 = vmatprep.subr.mxu0 0.0
    %400 = vmatpush1.msra.mxu0 0.0
    %401 = vmatprep.subr.mxu0 0.0
    %402 = vmatpush1.msra.mxu0 0.0
    %403 = vmatprep.subr.mxu0 0.0
    %404 = vmatpush1.msra.mxu0 0.0
    %405 = vmatprep.subr.mxu0 0.0
    %406 = vmatpush1.msra.mxu0 0.0
    %407 = vmatprep.subr.mxu0 0.0
    %408 = vmatpush1.msra.mxu0 0.0
    %409 = vmatprep.subr.mxu0 0.0
    %410 = vmatpush1.msra.mxu0 0.0
    %411 = vmatprep.subr.mxu0 0.0
    %412 = vmatpush1.msra.mxu0 0.0
    %413 = vmatprep.subr.mxu0 0.0
    %414 = vmatpush1.msra.mxu0 0.0
    %415 = vmatprep.subr.mxu0 0.0
    %416 = vmatpush1.msra.mxu0 0.0
    %417 = vmatprep.mubr.f32.mxu0 0.0
    %418 = vmatmul.mubr.f32.gmra.mrb[0].mxu0 %v280
    %v419 = vpop.f32.mrb[0].mxu0
    %v420 = vadd.f32 %v204, %v419
    %v421 = vpop.f32.mrb[0].mxu0
    %v422 = vadd.f32 %v206, %v421
    %423 = vdwg.mxu0
    %424 = vmatprep.subr.mxu0 %v26
    %425 = vmatpush1.msra.mxu0 %v25
    %426 = vmatprep.subr.mxu0 0.0
    %427 = vmatpush1.msra.mxu0 0.0
    %428 = vmatprep.subr.mxu0 0.0
    %429 = vmatpush1.msra.mxu0 0.0
    %430 = vmatprep.subr.mxu0 0.0
    %431 = vmatpush1.msra.mxu0 0.0
    %432 = vmatprep.subr.mxu0 0.0
    %433 = vmatpush1.msra.mxu0 0.0
    %434 = vmatprep.subr.mxu0 0.0
    %435 = vmatpush1.msra.mxu0 0.0
    %436 = vmatprep.subr.mxu0 0.0
    %437 = vmatpush1.msra.mxu0 0.0
    %438 = vmatprep.subr.mxu0 0.0
    %439 = vmatpush1.msra.mxu0 0.0
    %440 = vmatprep.subr.mxu0 0.0
    %441 = vmatpush1.msra.mxu0 0.0
    %442 = vmatprep.subr.mxu0 0.0
    %443 = vmatpush1.msra.mxu0 0.0
    %444 = vmatprep.subr.mxu0 0.0
    %445 = vmatpush1.msra.mxu0 0.0
    %446 = vmatprep.subr.mxu0 0.0
    %447 = vmatpush1.msra.mxu0 0.0
    %448 = vmatprep.subr.mxu0 0.0
    %449 = vmatpush1.msra.mxu0 0.0
    %450 = vmatprep.subr.mxu0 0.0
    %451 = vmatpush1.msra.mxu0 0.0
    %452 = vmatprep.subr.mxu0 0.0
    %453 = vmatpush1.msra.mxu0 0.0
    %454 = vmatprep.subr.mxu0 0.0
    %455 = vmatpush1.msra.mxu0 0.0
    %456 = vmatprep.subr.mxu0 0.0
    %457 = vmatpush1.msra.mxu0 0.0
    %458 = vmatprep.subr.mxu0 0.0
    %459 = vmatpush1.msra.mxu0 0.0
    %460 = vmatprep.subr.mxu0 0.0
    %461 = vmatpush1.msra.mxu0 0.0
    %462 = vmatprep.subr.mxu0 0.0
    %463 = vmatpush1.msra.mxu0 0.0
    %464 = vmatprep.subr.mxu0 0.0
    %465 = vmatpush1.msra.mxu0 0.0
    %466 = vmatprep.subr.mxu0 0.0
    %467 = vmatpush1.msra.mxu0 0.0
    %468 = vmatprep.subr.mxu0 0.0
    %469 = vmatpush1.msra.mxu0 0.0
    %470 = vmatprep.subr.mxu0 0.0
    %471 = vmatpush1.msra.mxu0 0.0
    %472 = vmatprep.subr.mxu0 0.0
    %473 = vmatpush1.msra.mxu0 0.0
    %474 = vmatprep.subr.mxu0 0.0
    %475 = vmatpush1.msra.mxu0 0.0
    %476 = vmatprep.subr.mxu0 0.0
    %477 = vmatpush1.msra.mxu0 0.0
    %478 = vmatprep.subr.mxu0 0.0
    %479 = vmatpush1.msra.mxu0 0.0
    %480 = vmatprep.subr.mxu0 0.0
    %481 = vmatpush1.msra.mxu0 0.0
    %482 = vmatprep.subr.mxu0 0.0
    %483 = vmatpush1.msra.mxu0 0.0
    %484 = vmatprep.subr.mxu0 0.0
    %485 = vmatpush1.msra.mxu0 0.0
    %486 = vmatprep.subr.mxu0 0.0
    %487 = vmatpush1.msra.mxu0 0.0
    %488 = vmatprep.mubr.f32.mxu0 0.0
    %489 = vmatmul.mubr.f32.gmra.mrb[0].mxu0 %v280
    %v490 = vpop.f32.mrb[0].mxu0
    %v491 = vadd.f32 %v275, %v490
    %v492 = vpop.f32.mrb[0].mxu0
    %v493 = vadd.f32 %v277, %v492
    %494 = vdwg.mxu0
    %495 = vrot.lane.b32.xlu0 %v21, 126
    %v496 = vpop.permute.xlu0 %495
    %497 = vrot.lane.b32.xlu0 %v22, 126
    %v498 = vpop.permute.xlu0 %497
    %499 = vrot.lane.b32.xlu0 %v23, 126
    %v500 = vpop.permute.xlu0 %499
    %501 = vrot.lane.b32.xlu0 %v24, 126
    %v502 = vpop.permute.xlu0 %501
    %503 = vrot.lane.b32.xlu0 %v25, 126
    %v504 = vpop.permute.xlu0 %503
    %505 = vrot.lane.b32.xlu0 %v26, 126
    %v506 = vpop.permute.xlu0 %505
    %vm507 = vcmask 1031168
    %v508 = vsel %vm507, %v496, %v498
    %v509 = vsel %vm507, %v498, %v500
    %v510 = vsel %vm507, %v500, %v502
    %v511 = vsel %vm507, %v502, %v504
    %v512 = vsel %vm507, %v504, %v506
    %v519 = vsel %vm507, %v506, 0.0
    %s520 = scalar_lea.vmem %s1, 16
    %v521 = vld [vmem:[%s520] sm:$0xff]
    %v523 = vsel %vm62, %v521, 0
    %525 = vmatprep.subr.mxu0 %v509
    %526 = vmatpush1.msra.mxu0 %v508
    %527 = vmatprep.subr.mxu0 0.0
    %528 = vmatpush1.msra.mxu0 0.0
    %529 = vmatprep.subr.mxu0 0.0
    %530 = vmatpush1.msra.mxu0 0.0
    %531 = vmatprep.subr.mxu0 0.0
    %532 = vmatpush1.msra.mxu0 0.0
    %533 = vmatprep.subr.mxu0 0.0
    %534 = vmatpush1.msra.mxu0 0.0
    %535 = vmatprep.subr.mxu0 0.0
    %536 = vmatpush1.msra.mxu0 0.0
    %537 = vmatprep.subr.mxu0 0.0
    %538 = vmatpush1.msra.mxu0 0.0
    %539 = vmatprep.subr.mxu0 0.0
    %540 = vmatpush1.msra.mxu0 0.0
    %541 = vmatprep.subr.mxu0 0.0
    %542 = vmatpush1.msra.mxu0 0.0
    %543 = vmatprep.subr.mxu0 0.0
    %544 = vmatpush1.msra.mxu0 0.0
    %545 = vmatprep.subr.mxu0 0.0
    %546 = vmatpush1.msra.mxu0 0.0
    %547 = vmatprep.subr.mxu0 0.0
    %548 = vmatpush1.msra.mxu0 0.0
    %549 = vmatprep.subr.mxu0 0.0
    %550 = vmatpush1.msra.mxu0 0.0
    %551 = vmatprep.subr.mxu0 0.0
    %552 = vmatpush1.msra.mxu0 0.0
    %553 = vmatprep.subr.mxu0 0.0
    %554 = vmatpush1.msra.mxu0 0.0
    %555 = vmatprep.subr.mxu0 0.0
    %556 = vmatpush1.msra.mxu0 0.0
    %557 = vmatprep.subr.mxu0 0.0
    %558 = vmatpush1.msra.mxu0 0.0
    %559 = vmatprep.subr.mxu0 0.0
    %560 = vmatpush1.msra.mxu0 0.0
    %561 = vmatprep.subr.mxu0 0.0
    %562 = vmatpush1.msra.mxu0 0.0
    %563 = vmatprep.subr.mxu0 0.0
    %564 = vmatpush1.msra.mxu0 0.0
    %565 = vmatprep.subr.mxu0 0.0
    %566 = vmatpush1.msra.mxu0 0.0
    %567 = vmatprep.subr.mxu0 0.0
    %568 = vmatpush1.msra.mxu0 0.0
    %569 = vmatprep.subr.mxu0 0.0
    %570 = vmatpush1.msra.mxu0 0.0
    %571 = vmatprep.subr.mxu0 0.0
    %572 = vmatpush1.msra.mxu0 0.0
    %573 = vmatprep.subr.mxu0 0.0
    %574 = vmatpush1.msra.mxu0 0.0
    %575 = vmatprep.subr.mxu0 0.0
    %576 = vmatpush1.msra.mxu0 0.0
    %577 = vmatprep.subr.mxu0 0.0
    %578 = vmatpush1.msra.mxu0 0.0
    %579 = vmatprep.subr.mxu0 0.0
    %580 = vmatpush1.msra.mxu0 0.0
    %581 = vmatprep.subr.mxu0 0.0
    %582 = vmatpush1.msra.mxu0 0.0
    %583 = vmatprep.subr.mxu0 0.0
    %584 = vmatpush1.msra.mxu0 0.0
    %585 = vmatprep.subr.mxu0 0.0
    %586 = vmatpush1.msra.mxu0 0.0
    %587 = vmatprep.subr.mxu0 0.0
    %588 = vmatpush1.msra.mxu0 0.0
    %589 = vmatprep.mubr.f32.mxu0 0.0
    %590 = vmatmul.mubr.f32.gmra.mrb[0].mxu0 %v523
    %v591 = vpop.f32.mrb[0].mxu0
    %v592 = vadd.f32 0.0, %v591
    %v593 = vpop.f32.mrb[0].mxu0
    %v594 = vadd.f32 0.0, %v593
    %595 = vdwg.mxu0
    %596 = vmatprep.subr.mxu0 %v511
    %597 = vmatpush1.msra.mxu0 %v510
    %598 = vmatprep.subr.mxu0 0.0
    %599 = vmatpush1.msra.mxu0 0.0
    %600 = vmatprep.subr.mxu0 0.0
    %601 = vmatpush1.msra.mxu0 0.0
    %602 = vmatprep.subr.mxu0 0.0
    %603 = vmatpush1.msra.mxu0 0.0
    %604 = vmatprep.subr.mxu0 0.0
    %605 = vmatpush1.msra.mxu0 0.0
    %606 = vmatprep.subr.mxu0 0.0
    %607 = vmatpush1.msra.mxu0 0.0
    %608 = vmatprep.subr.mxu0 0.0
    %609 = vmatpush1.msra.mxu0 0.0
    %610 = vmatprep.subr.mxu0 0.0
    %611 = vmatpush1.msra.mxu0 0.0
    %612 = vmatprep.subr.mxu0 0.0
    %613 = vmatpush1.msra.mxu0 0.0
    %614 = vmatprep.subr.mxu0 0.0
    %615 = vmatpush1.msra.mxu0 0.0
    %616 = vmatprep.subr.mxu0 0.0
    %617 = vmatpush1.msra.mxu0 0.0
    %618 = vmatprep.subr.mxu0 0.0
    %619 = vmatpush1.msra.mxu0 0.0
    %620 = vmatprep.subr.mxu0 0.0
    %621 = vmatpush1.msra.mxu0 0.0
    %622 = vmatprep.subr.mxu0 0.0
    %623 = vmatpush1.msra.mxu0 0.0
    %624 = vmatprep.subr.mxu0 0.0
    %625 = vmatpush1.msra.mxu0 0.0
    %626 = vmatprep.subr.mxu0 0.0
    %627 = vmatpush1.msra.mxu0 0.0
    %628 = vmatprep.subr.mxu0 0.0
    %629 = vmatpush1.msra.mxu0 0.0
    %630 = vmatprep.subr.mxu0 0.0
    %631 = vmatpush1.msra.mxu0 0.0
    %632 = vmatprep.subr.mxu0 0.0
    %633 = vmatpush1.msra.mxu0 0.0
    %634 = vmatprep.subr.mxu0 0.0
    %635 = vmatpush1.msra.mxu0 0.0
    %636 = vmatprep.subr.mxu0 0.0
    %637 = vmatpush1.msra.mxu0 0.0
    %638 = vmatprep.subr.mxu0 0.0
    %639 = vmatpush1.msra.mxu0 0.0
    %640 = vmatprep.subr.mxu0 0.0
    %641 = vmatpush1.msra.mxu0 0.0
    %642 = vmatprep.subr.mxu0 0.0
    %643 = vmatpush1.msra.mxu0 0.0
    %644 = vmatprep.subr.mxu0 0.0
    %645 = vmatpush1.msra.mxu0 0.0
    %646 = vmatprep.subr.mxu0 0.0
    %647 = vmatpush1.msra.mxu0 0.0
    %648 = vmatprep.subr.mxu0 0.0
    %649 = vmatpush1.msra.mxu0 0.0
    %650 = vmatprep.subr.mxu0 0.0
    %651 = vmatpush1.msra.mxu0 0.0
    %652 = vmatprep.subr.mxu0 0.0
    %653 = vmatpush1.msra.mxu0 0.0
    %654 = vmatprep.subr.mxu0 0.0
    %655 = vmatpush1.msra.mxu0 0.0
    %656 = vmatprep.subr.mxu0 0.0
    %657 = vmatpush1.msra.mxu0 0.0
    %658 = vmatprep.subr.mxu0 0.0
    %659 = vmatpush1.msra.mxu0 0.0
    %660 = vmatprep.mubr.f32.mxu0 0.0
    %661 = vmatmul.mubr.f32.gmra.mrb[0].mxu0 %v523
    %v662 = vpop.f32.mrb[0].mxu0
    %v663 = vadd.f32 0.0, %v662
    %v664 = vpop.f32.mrb[0].mxu0
    %v665 = vadd.f32 0.0, %v664
    %666 = vdwg.mxu0
    %667 = vmatprep.subr.mxu0 %v519
    %668 = vmatpush1.msra.mxu0 %v512
    %669 = vmatprep.subr.mxu0 0.0
    %670 = vmatpush1.msra.mxu0 0.0
    %671 = vmatprep.subr.mxu0 0.0
    %672 = vmatpush1.msra.mxu0 0.0
    %673 = vmatprep.subr.mxu0 0.0
    %674 = vmatpush1.msra.mxu0 0.0
    %675 = vmatprep.subr.mxu0 0.0
    %676 = vmatpush1.msra.mxu0 0.0
    %677 = vmatprep.subr.mxu0 0.0
    %678 = vmatpush1.msra.mxu0 0.0
    %679 = vmatprep.subr.mxu0 0.0
    %680 = vmatpush1.msra.mxu0 0.0
    %681 = vmatprep.subr.mxu0 0.0
    %682 = vmatpush1.msra.mxu0 0.0
    %683 = vmatprep.subr.mxu0 0.0
    %684 = vmatpush1.msra.mxu0 0.0
    %685 = vmatprep.subr.mxu0 0.0
    %686 = vmatpush1.msra.mxu0 0.0
    %687 = vmatprep.subr.mxu0 0.0
    %688 = vmatpush1.msra.mxu0 0.0
    %689 = vmatprep.subr.mxu0 0.0
    %690 = vmatpush1.msra.mxu0 0.0
    %691 = vmatprep.subr.mxu0 0.0
    %692 = vmatpush1.msra.mxu0 0.0
    %693 = vmatprep.subr.mxu0 0.0
    %694 = vmatpush1.msra.mxu0 0.0
    %695 = vmatprep.subr.mxu0 0.0
    %696 = vmatpush1.msra.mxu0 0.0
    %697 = vmatprep.subr.mxu0 0.0
    %698 = vmatpush1.msra.mxu0 0.0
    %699 = vmatprep.subr.mxu0 0.0
    %700 = vmatpush1.msra.mxu0 0.0
    %701 = vmatprep.subr.mxu0 0.0
    %702 = vmatpush1.msra.mxu0 0.0
    %703 = vmatprep.subr.mxu0 0.0
    %704 = vmatpush1.msra.mxu0 0.0
    %705 = vmatprep.subr.mxu0 0.0
    %706 = vmatpush1.msra.mxu0 0.0
    %707 = vmatprep.subr.mxu0 0.0
    %708 = vmatpush1.msra.mxu0 0.0
    %709 = vmatprep.subr.mxu0 0.0
    %710 = vmatpush1.msra.mxu0 0.0
    %711 = vmatprep.subr.mxu0 0.0
    %712 = vmatpush1.msra.mxu0 0.0
    %713 = vmatprep.subr.mxu0 0.0
    %714 = vmatpush1.msra.mxu0 0.0
    %715 = vmatprep.subr.mxu0 0.0
    %716 = vmatpush1.msra.mxu0 0.0
    %717 = vmatprep.subr.mxu0 0.0
    %718 = vmatpush1.msra.mxu0 0.0
    %719 = vmatprep.subr.mxu0 0.0
    %720 = vmatpush1.msra.mxu0 0.0
    %721 = vmatprep.subr.mxu0 0.0
    %722 = vmatpush1.msra.mxu0 0.0
    %723 = vmatprep.subr.mxu0 0.0
    %724 = vmatpush1.msra.mxu0 0.0
    %725 = vmatprep.subr.mxu0 0.0
    %726 = vmatpush1.msra.mxu0 0.0
    %727 = vmatprep.subr.mxu0 0.0
    %728 = vmatpush1.msra.mxu0 0.0
    %729 = vmatprep.subr.mxu0 0.0
    %730 = vmatpush1.msra.mxu0 0.0
    %731 = vmatprep.mubr.f32.mxu0 0.0
    %732 = vmatmul.mubr.f32.gmra.mrb[0].mxu0 %v523
    %v733 = vpop.f32.mrb[0].mxu0
    %v734 = vadd.f32 0.0, %v733
    %v735 = vpop.f32.mrb[0].mxu0
    %v736 = vadd.f32 0.0, %v735
    %737 = vdwg.mxu0
    %v738 = vadd.f32 %v349, %v592
    %v739 = vadd.f32 %v351, %v594
    %v740 = vadd.f32 %v420, %v663
    %v741 = vadd.f32 %v422, %v665
    %v742 = vadd.f32 %v491, %v734
    %v743 = vadd.f32 %v493, %v736
    %744 = vrot.lane.b32.xlu0 %v21, 110
    %v745 = vpop.permute.xlu0 %744
    %746 = vrot.lane.b32.xlu0 %v22, 110
    %v747 = vpop.permute.xlu0 %746
    %748 = vrot.lane.b32.xlu0 %v23, 110
    %v749 = vpop.permute.xlu0 %748
    %750 = vrot.lane.b32.xlu0 %v24, 110
    %v751 = vpop.permute.xlu0 %750
    %752 = vrot.lane.b32.xlu0 %v25, 110
    %v753 = vpop.permute.xlu0 %752
    %754 = vrot.lane.b32.xlu0 %v26, 110
    %v755 = vpop.permute.xlu0 %754
    %vm756 = vcmask 900096
    %v757 = vsel %vm756, %v745, %v747
    %v758 = vsel %vm756, %v747, %v749
    %v759 = vsel %vm756, %v749, %v751
    %v760 = vsel %vm756, %v751, %v753
    %v761 = vsel %vm756, %v753, %v755
    %v768 = vsel %vm756, %v755, 0.0
    %s769 = scalar_lea.vmem %s1, 24
    %v770 = vld [vmem:[%s769] sm:$0xff]
    %v772 = vsel %vm62, %v770, 0
    %774 = vmatprep.subr.mxu0 %v758
    %775 = vmatpush1.msra.mxu0 %v757
    %776 = vmatprep.subr.mxu0 0.0
    %777 = vmatpush1.msra.mxu0 0.0
    %778 = vmatprep.subr.mxu0 0.0
    %779 = vmatpush1.msra.mxu0 0.0
    %780 = vmatprep.subr.mxu0 0.0
    %781 = vmatpush1.msra.mxu0 0.0
    %782 = vmatprep.subr.mxu0 0.0
    %783 = vmatpush1.msra.mxu0 0.0
    %784 = vmatprep.subr.mxu0 0.0
    %785 = vmatpush1.msra.mxu0 0.0
    %786 = vmatprep.subr.mxu0 0.0
    %787 = vmatpush1.msra.mxu0 0.0
    %788 = vmatprep.subr.mxu0 0.0
    %789 = vmatpush1.msra.mxu0 0.0
    %790 = vmatprep.subr.mxu0 0.0
    %791 = vmatpush1.msra.mxu0 0.0
    %792 = vmatprep.subr.mxu0 0.0
    %793 = vmatpush1.msra.mxu0 0.0
    %794 = vmatprep.subr.mxu0 0.0
    %795 = vmatpush1.msra.mxu0 0.0
    %796 = vmatprep.subr.mxu0 0.0
    %797 = vmatpush1.msra.mxu0 0.0
    %798 = vmatprep.subr.mxu0 0.0
    %799 = vmatpush1.msra.mxu0 0.0
    %800 = vmatprep.subr.mxu0 0.0
    %801 = vmatpush1.msra.mxu0 0.0
    %802 = vmatprep.subr.mxu0 0.0
    %803 = vmatpush1.msra.mxu0 0.0
    %804 = vmatprep.subr.mxu0 0.0
    %805 = vmatpush1.msra.mxu0 0.0
    %806 = vmatprep.subr.mxu0 0.0
    %807 = vmatpush1.msra.mxu0 0.0
    %808 = vmatprep.subr.mxu0 0.0
    %809 = vmatpush1.msra.mxu0 0.0
    %810 = vmatprep.subr.mxu0 0.0
    %811 = vmatpush1.msra.mxu0 0.0
    %812 = vmatprep.subr.mxu0 0.0
    %813 = vmatpush1.msra.mxu0 0.0
    %814 = vmatprep.subr.mxu0 0.0
    %815 = vmatpush1.msra.mxu0 0.0
    %816 = vmatprep.subr.mxu0 0.0
    %817 = vmatpush1.msra.mxu0 0.0
    %818 = vmatprep.subr.mxu0 0.0
    %819 = vmatpush1.msra.mxu0 0.0
    %820 = vmatprep.subr.mxu0 0.0
    %821 = vmatpush1.msra.mxu0 0.0
    %822 = vmatprep.subr.mxu0 0.0
    %823 = vmatpush1.msra.mxu0 0.0
    %824 = vmatprep.subr.mxu0 0.0
    %825 = vmatpush1.msra.mxu0 0.0
    %826 = vmatprep.subr.mxu0 0.0
    %827 = vmatpush1.msra.mxu0 0.0
    %828 = vmatprep.subr.mxu0 0.0
    %829 = vmatpush1.msra.mxu0 0.0
    %830 = vmatprep.subr.mxu0 0.0
    %831 = vmatpush1.msra.mxu0 0.0
    %832 = vmatprep.subr.mxu0 0.0
    %833 = vmatpush1.msra.mxu0 0.0
    %834 = vmatprep.subr.mxu0 0.0
    %835 = vmatpush1.msra.mxu0 0.0
    %836 = vmatprep.subr.mxu0 0.0
    %837 = vmatpush1.msra.mxu0 0.0
    %838 = vmatprep.mubr.f32.mxu0 0.0
    %839 = vmatmul.mubr.f32.gmra.mrb[0].mxu0 %v772
    %v840 = vpop.f32.mrb[0].mxu0
    %v841 = vadd.f32 0.0, %v840
    %v842 = vpop.f32.mrb[0].mxu0
    %v843 = vadd.f32 0.0, %v842
    %844 = vdwg.mxu0
    %845 = vmatprep.subr.mxu0 %v760
    %846 = vmatpush1.msra.mxu0 %v759
    %847 = vmatprep.subr.mxu0 0.0
    %848 = vmatpush1.msra.mxu0 0.0
    %849 = vmatprep.subr.mxu0 0.0
    %850 = vmatpush1.msra.mxu0 0.0
    %851 = vmatprep.subr.mxu0 0.0
    %852 = vmatpush1.msra.mxu0 0.0
    %853 = vmatprep.subr.mxu0 0.0
    %854 = vmatpush1.msra.mxu0 0.0
    %855 = vmatprep.subr.mxu0 0.0
    %856 = vmatpush1.msra.mxu0 0.0
    %857 = vmatprep.subr.mxu0 0.0
    %858 = vmatpush1.msra.mxu0 0.0
    %859 = vmatprep.subr.mxu0 0.0
    %860 = vmatpush1.msra.mxu0 0.0
    %861 = vmatprep.subr.mxu0 0.0
    %862 = vmatpush1.msra.mxu0 0.0
    %863 = vmatprep.subr.mxu0 0.0
    %864 = vmatpush1.msra.mxu0 0.0
    %865 = vmatprep.subr.mxu0 0.0
    %866 = vmatpush1.msra.mxu0 0.0
    %867 = vmatprep.subr.mxu0 0.0
    %868 = vmatpush1.msra.mxu0 0.0
    %869 = vmatprep.subr.mxu0 0.0
    %870 = vmatpush1.msra.mxu0 0.0
    %871 = vmatprep.subr.mxu0 0.0
    %872 = vmatpush1.msra.mxu0 0.0
    %873 = vmatprep.subr.mxu0 0.0
    %874 = vmatpush1.msra.mxu0 0.0
    %875 = vmatprep.subr.mxu0 0.0
    %876 = vmatpush1.msra.mxu0 0.0
    %877 = vmatprep.subr.mxu0 0.0
    %878 = vmatpush1.msra.mxu0 0.0
    %879 = vmatprep.subr.mxu0 0.0
    %880 = vmatpush1.msra.mxu0 0.0
    %881 = vmatprep.subr.mxu0 0.0
    %882 = vmatpush1.msra.mxu0 0.0
    %883 = vmatprep.subr.mxu0 0.0
    %884 = vmatpush1.msra.mxu0 0.0
    %885 = vmatprep.subr.mxu0 0.0
    %886 = vmatpush1.msra.mxu0 0.0
    %887 = vmatprep.subr.mxu0 0.0
    %888 = vmatpush1.msra.mxu0 0.0
    %889 = vmatprep.subr.mxu0 0.0
    %890 = vmatpush1.msra.mxu0 0.0
    %891 = vmatprep.subr.mxu0 0.0
    %892 = vmatpush1.msra.mxu0 0.0
    %893 = vmatprep.subr.mxu0 0.0
    %894 = vmatpush1.msra.mxu0 0.0
    %895 = vmatprep.subr.mxu0 0.0
    %896 = vmatpush1.msra.mxu0 0.0
    %897 = vmatprep.subr.mxu0 0.0
    %898 = vmatpush1.msra.mxu0 0.0
    %899 = vmatprep.subr.mxu0 0.0
    %900 = vmatpush1.msra.mxu0 0.0
    %901 = vmatprep.subr.mxu0 0.0
    %902 = vmatpush1.msra.mxu0 0.0
    %903 = vmatprep.subr.mxu0 0.0
    %904 = vmatpush1.msra.mxu0 0.0
    %905 = vmatprep.subr.mxu0 0.0
    %906 = vmatpush1.msra.mxu0 0.0
    %907 = vmatprep.subr.mxu0 0.0
    %908 = vmatpush1.msra.mxu0 0.0
    %909 = vmatprep.mubr.f32.mxu0 0.0
    %910 = vmatmul.mubr.f32.gmra.mrb[0].mxu0 %v772
    %v911 = vpop.f32.mrb[0].mxu0
    %v912 = vadd.f32 0.0, %v911
    %v913 = vpop.f32.mrb[0].mxu0
    %v914 = vadd.f32 0.0, %v913
    %915 = vdwg.mxu0
    %916 = vmatprep.subr.mxu0 %v768
    %917 = vmatpush1.msra.mxu0 %v761
    %918 = vmatprep.subr.mxu0 0.0
    %919 = vmatpush1.msra.mxu0 0.0
    %920 = vmatprep.subr.mxu0 0.0
    %921 = vmatpush1.msra.mxu0 0.0
    %922 = vmatprep.subr.mxu0 0.0
    %923 = vmatpush1.msra.mxu0 0.0
    %924 = vmatprep.subr.mxu0 0.0
    %925 = vmatpush1.msra.mxu0 0.0
    %926 = vmatprep.subr.mxu0 0.0
    %927 = vmatpush1.msra.mxu0 0.0
    %928 = vmatprep.subr.mxu0 0.0
    %929 = vmatpush1.msra.mxu0 0.0
    %930 = vmatprep.subr.mxu0 0.0
    %931 = vmatpush1.msra.mxu0 0.0
    %932 = vmatprep.subr.mxu0 0.0
    %933 = vmatpush1.msra.mxu0 0.0
    %934 = vmatprep.subr.mxu0 0.0
    %935 = vmatpush1.msra.mxu0 0.0
    %936 = vmatprep.subr.mxu0 0.0
    %937 = vmatpush1.msra.mxu0 0.0
    %938 = vmatprep.subr.mxu0 0.0
    %939 = vmatpush1.msra.mxu0 0.0
    %940 = vmatprep.subr.mxu0 0.0
    %941 = vmatpush1.msra.mxu0 0.0
    %942 = vmatprep.subr.mxu0 0.0
    %943 = vmatpush1.msra.mxu0 0.0
    %944 = vmatprep.subr.mxu0 0.0
    %945 = vmatpush1.msra.mxu0 0.0
    %946 = vmatprep.subr.mxu0 0.0
    %947 = vmatpush1.msra.mxu0 0.0
    %948 = vmatprep.subr.mxu0 0.0
    %949 = vmatpush1.msra.mxu0 0.0
    %950 = vmatprep.subr.mxu0 0.0
    %951 = vmatpush1.msra.mxu0 0.0
    %952 = vmatprep.subr.mxu0 0.0
    %953 = vmatpush1.msra.mxu0 0.0
    %954 = vmatprep.subr.mxu0 0.0
    %955 = vmatpush1.msra.mxu0 0.0
    %956 = vmatprep.subr.mxu0 0.0
    %957 = vmatpush1.msra.mxu0 0.0
    %958 = vmatprep.subr.mxu0 0.0
    %959 = vmatpush1.msra.mxu0 0.0
    %960 = vmatprep.subr.mxu0 0.0
    %961 = vmatpush1.msra.mxu0 0.0
    %962 = vmatprep.subr.mxu0 0.0
    %963 = vmatpush1.msra.mxu0 0.0
    %964 = vmatprep.subr.mxu0 0.0
    %965 = vmatpush1.msra.mxu0 0.0
    %966 = vmatprep.subr.mxu0 0.0
    %967 = vmatpush1.msra.mxu0 0.0
    %968 = vmatprep.subr.mxu0 0.0
    %969 = vmatpush1.msra.mxu0 0.0
    %970 = vmatprep.subr.mxu0 0.0
    %971 = vmatpush1.msra.mxu0 0.0
    %972 = vmatprep.subr.mxu0 0.0
    %973 = vmatpush1.msra.mxu0 0.0
    %974 = vmatprep.subr.mxu0 0.0
    %975 = vmatpush1.msra.mxu0 0.0
    %976 = vmatprep.subr.mxu0 0.0
    %977 = vmatpush1.msra.mxu0 0.0
    %978 = vmatprep.subr.mxu0 0.0
    %979 = vmatpush1.msra.mxu0 0.0
    %980 = vmatprep.mubr.f32.mxu0 0.0
    %981 = vmatmul.mubr.f32.gmra.mrb[0].mxu0 %v772
    %v982 = vpop.f32.mrb[0].mxu0
    %v983 = vadd.f32 0.0, %v982
    %v984 = vpop.f32.mrb[0].mxu0
    %v985 = vadd.f32 0.0, %v984
    %986 = vdwg.mxu0
    %v987 = vadd.f32 %v738, %v841
    %v988 = vadd.f32 %v739, %v843
    %v989 = vadd.f32 %v740, %v912
    %v990 = vadd.f32 %v741, %v914
    %v991 = vadd.f32 %v742, %v983
    %v992 = vadd.f32 %v743, %v985
    %993 = vrot.lane.b32.xlu0 %v21, 109
    %v994 = vpop.permute.xlu0 %993
    %995 = vrot.lane.b32.xlu0 %v22, 109
    %v996 = vpop.permute.xlu0 %995
    %997 = vrot.lane.b32.xlu0 %v23, 109
    %v998 = vpop.permute.xlu0 %997
    %999 = vrot.lane.b32.xlu0 %v24, 109
    %v1000 = vpop.permute.xlu0 %999
    %1001 = vrot.lane.b32.xlu0 %v25, 109
    %v1002 = vpop.permute.xlu0 %1001
    %1003 = vrot.lane.b32.xlu0 %v26, 109
    %v1004 = vpop.permute.xlu0 %1003
    %vm1005 = vcmask 891904
    %v1006 = vsel %vm1005, %v994, %v996
    %v1007 = vsel %vm1005, %v996, %v998
    %v1008 = vsel %vm1005, %v998, %v1000
    %v1009 = vsel %vm1005, %v1000, %v1002
    %v1010 = vsel %vm1005, %v1002, %v1004
    %v1017 = vsel %vm1005, %v1004, 0.0
    %s1018 = scalar_lea.vmem %s1, 32
    %v1019 = vld [vmem:[%s1018] sm:$0xff]
    %v1021 = vsel %vm62, %v1019, 0
    %1023 = vmatprep.subr.mxu0 %v1007
    %1024 = vmatpush1.msra.mxu0 %v1006
    %1025 = vmatprep.subr.mxu0 0.0
    %1026 = vmatpush1.msra.mxu0 0.0
    %1027 = vmatprep.subr.mxu0 0.0
    %1028 = vmatpush1.msra.mxu0 0.0
    %1029 = vmatprep.subr.mxu0 0.0
    %1030 = vmatpush1.msra.mxu0 0.0
    %1031 = vmatprep.subr.mxu0 0.0
    %1032 = vmatpush1.msra.mxu0 0.0
    %1033 = vmatprep.subr.mxu0 0.0
    %1034 = vmatpush1.msra.mxu0 0.0
    %1035 = vmatprep.subr.mxu0 0.0
    %1036 = vmatpush1.msra.mxu0 0.0
    %1037 = vmatprep.subr.mxu0 0.0
    %1038 = vmatpush1.msra.mxu0 0.0
    %1039 = vmatprep.subr.mxu0 0.0
    %1040 = vmatpush1.msra.mxu0 0.0
    %1041 = vmatprep.subr.mxu0 0.0
    %1042 = vmatpush1.msra.mxu0 0.0
    %1043 = vmatprep.subr.mxu0 0.0
    %1044 = vmatpush1.msra.mxu0 0.0
    %1045 = vmatprep.subr.mxu0 0.0
    %1046 = vmatpush1.msra.mxu0 0.0
    %1047 = vmatprep.subr.mxu0 0.0
    %1048 = vmatpush1.msra.mxu0 0.0
    %1049 = vmatprep.subr.mxu0 0.0
    %1050 = vmatpush1.msra.mxu0 0.0
    %1051 = vmatprep.subr.mxu0 0.0
    %1052 = vmatpush1.msra.mxu0 0.0
    %1053 = vmatprep.subr.mxu0 0.0
    %1054 = vmatpush1.msra.mxu0 0.0
    %1055 = vmatprep.subr.mxu0 0.0
    %1056 = vmatpush1.msra.mxu0 0.0
    %1057 = vmatprep.subr.mxu0 0.0
    %1058 = vmatpush1.msra.mxu0 0.0
    %1059 = vmatprep.subr.mxu0 0.0
    %1060 = vmatpush1.msra.mxu0 0.0
    %1061 = vmatprep.subr.mxu0 0.0
    %1062 = vmatpush1.msra.mxu0 0.0
    %1063 = vmatprep.subr.mxu0 0.0
    %1064 = vmatpush1.msra.mxu0 0.0
    %1065 = vmatprep.subr.mxu0 0.0
    %1066 = vmatpush1.msra.mxu0 0.0
    %1067 = vmatprep.subr.mxu0 0.0
    %1068 = vmatpush1.msra.mxu0 0.0
    %1069 = vmatprep.subr.mxu0 0.0
    %1070 = vmatpush1.msra.mxu0 0.0
    %1071 = vmatprep.subr.mxu0 0.0
    %1072 = vmatpush1.msra.mxu0 0.0
    %1073 = vmatprep.subr.mxu0 0.0
    %1074 = vmatpush1.msra.mxu0 0.0
    %1075 = vmatprep.subr.mxu0 0.0
    %1076 = vmatpush1.msra.mxu0 0.0
    %1077 = vmatprep.subr.mxu0 0.0
    %1078 = vmatpush1.msra.mxu0 0.0
    %1079 = vmatprep.subr.mxu0 0.0
    %1080 = vmatpush1.msra.mxu0 0.0
    %1081 = vmatprep.subr.mxu0 0.0
    %1082 = vmatpush1.msra.mxu0 0.0
    %1083 = vmatprep.subr.mxu0 0.0
    %1084 = vmatpush1.msra.mxu0 0.0
    %1085 = vmatprep.subr.mxu0 0.0
    %1086 = vmatpush1.msra.mxu0 0.0
    %1087 = vmatprep.mubr.f32.mxu0 0.0
    %1088 = vmatmul.mubr.f32.gmra.mrb[0].mxu0 %v1021
    %v1089 = vpop.f32.mrb[0].mxu0
    %v1090 = vadd.f32 0.0, %v1089
    %v1091 = vpop.f32.mrb[0].mxu0
    %v1092 = vadd.f32 0.0, %v1091
    %1093 = vdwg.mxu0
    %1094 = vmatprep.subr.mxu0 %v1009
    %1095 = vmatpush1.msra.mxu0 %v1008
    %1096 = vmatprep.subr.mxu0 0.0
    %1097 = vmatpush1.msra.mxu0 0.0
    %1098 = vmatprep.subr.mxu0 0.0
    %1099 = vmatpush1.msra.mxu0 0.0
    %1100 = vmatprep.subr.mxu0 0.0
    %1101 = vmatpush1.msra.mxu0 0.0
    %1102 = vmatprep.subr.mxu0 0.0
    %1103 = vmatpush1.msra.mxu0 0.0
    %1104 = vmatprep.subr.mxu0 0.0
    %1105 = vmatpush1.msra.mxu0 0.0
    %1106 = vmatprep.subr.mxu0 0.0
    %1107 = vmatpush1.msra.mxu0 0.0
    %1108 = vmatprep.subr.mxu0 0.0
    %1109 = vmatpush1.msra.mxu0 0.0
    %1110 = vmatprep.subr.mxu0 0.0
    %1111 = vmatpush1.msra.mxu0 0.0
    %1112 = vmatprep.subr.mxu0 0.0
    %1113 = vmatpush1.msra.mxu0 0.0
    %1114 = vmatprep.subr.mxu0 0.0
    %1115 = vmatpush1.msra.mxu0 0.0
    %1116 = vmatprep.subr.mxu0 0.0
    %1117 = vmatpush1.msra.mxu0 0.0
    %1118 = vmatprep.subr.mxu0 0.0
    %1119 = vmatpush1.msra.mxu0 0.0
    %1120 = vmatprep.subr.mxu0 0.0
    %1121 = vmatpush1.msra.mxu0 0.0
    %1122 = vmatprep.subr.mxu0 0.0
    %1123 = vmatpush1.msra.mxu0 0.0
    %1124 = vmatprep.subr.mxu0 0.0
    %1125 = vmatpush1.msra.mxu0 0.0
    %1126 = vmatprep.subr.mxu0 0.0
    %1127 = vmatpush1.msra.mxu0 0.0
    %1128 = vmatprep.subr.mxu0 0.0
    %1129 = vmatpush1.msra.mxu0 0.0
    %1130 = vmatprep.subr.mxu0 0.0
    %1131 = vmatpush1.msra.mxu0 0.0
    %1132 = vmatprep.subr.mxu0 0.0
    %1133 = vmatpush1.msra.mxu0 0.0
    %1134 = vmatprep.subr.mxu0 0.0
    %1135 = vmatpush1.msra.mxu0 0.0
    %1136 = vmatprep.subr.mxu0 0.0
    %1137 = vmatpush1.msra.mxu0 0.0
    %1138 = vmatprep.subr.mxu0 0.0
    %1139 = vmatpush1.msra.mxu0 0.0
    %1140 = vmatprep.subr.mxu0 0.0
    %1141 = vmatpush1.msra.mxu0 0.0
    %1142 = vmatprep.subr.mxu0 0.0
    %1143 = vmatpush1.msra.mxu0 0.0
    %1144 = vmatprep.subr.mxu0 0.0
    %1145 = vmatpush1.msra.mxu0 0.0
    %1146 = vmatprep.subr.mxu0 0.0
    %1147 = vmatpush1.msra.mxu0 0.0
    %1148 = vmatprep.subr.mxu0 0.0
    %1149 = vmatpush1.msra.mxu0 0.0
    %1150 = vmatprep.subr.mxu0 0.0
    %1151 = vmatpush1.msra.mxu0 0.0
    %1152 = vmatprep.subr.mxu0 0.0
    %1153 = vmatpush1.msra.mxu0 0.0
    %1154 = vmatprep.subr.mxu0 0.0
    %1155 = vmatpush1.msra.mxu0 0.0
    %1156 = vmatprep.subr.mxu0 0.0
    %1157 = vmatpush1.msra.mxu0 0.0
    %1158 = vmatprep.mubr.f32.mxu0 0.0
    %1159 = vmatmul.mubr.f32.gmra.mrb[0].mxu0 %v1021
    %v1160 = vpop.f32.mrb[0].mxu0
    %v1161 = vadd.f32 0.0, %v1160
    %v1162 = vpop.f32.mrb[0].mxu0
    %v1163 = vadd.f32 0.0, %v1162
    %1164 = vdwg.mxu0
    %1165 = vmatprep.subr.mxu0 %v1017
    %1166 = vmatpush1.msra.mxu0 %v1010
    %1167 = vmatprep.subr.mxu0 0.0
    %1168 = vmatpush1.msra.mxu0 0.0
    %1169 = vmatprep.subr.mxu0 0.0
    %1170 = vmatpush1.msra.mxu0 0.0
    %1171 = vmatprep.subr.mxu0 0.0
    %1172 = vmatpush1.msra.mxu0 0.0
    %1173 = vmatprep.subr.mxu0 0.0
    %1174 = vmatpush1.msra.mxu0 0.0
    %1175 = vmatprep.subr.mxu0 0.0
    %1176 = vmatpush1.msra.mxu0 0.0
    %1177 = vmatprep.subr.mxu0 0.0
    %1178 = vmatpush1.msra.mxu0 0.0
    %1179 = vmatprep.subr.mxu0 0.0
    %1180 = vmatpush1.msra.mxu0 0.0
    %1181 = vmatprep.subr.mxu0 0.0
    %1182 = vmatpush1.msra.mxu0 0.0
    %1183 = vmatprep.subr.mxu0 0.0
    %1184 = vmatpush1.msra.mxu0 0.0
    %1185 = vmatprep.subr.mxu0 0.0
    %1186 = vmatpush1.msra.mxu0 0.0
    %1187 = vmatprep.subr.mxu0 0.0
    %1188 = vmatpush1.msra.mxu0 0.0
    %1189 = vmatprep.subr.mxu0 0.0
    %1190 = vmatpush1.msra.mxu0 0.0
    %1191 = vmatprep.subr.mxu0 0.0
    %1192 = vmatpush1.msra.mxu0 0.0
    %1193 = vmatprep.subr.mxu0 0.0
    %1194 = vmatpush1.msra.mxu0 0.0
    %1195 = vmatprep.subr.mxu0 0.0
    %1196 = vmatpush1.msra.mxu0 0.0
    %1197 = vmatprep.subr.mxu0 0.0
    %1198 = vmatpush1.msra.mxu0 0.0
    %1199 = vmatprep.subr.mxu0 0.0
    %1200 = vmatpush1.msra.mxu0 0.0
    %1201 = vmatprep.subr.mxu0 0.0
    %1202 = vmatpush1.msra.mxu0 0.0
    %1203 = vmatprep.subr.mxu0 0.0
    %1204 = vmatpush1.msra.mxu0 0.0
    %1205 = vmatprep.subr.mxu0 0.0
    %1206 = vmatpush1.msra.mxu0 0.0
    %1207 = vmatprep.subr.mxu0 0.0
    %1208 = vmatpush1.msra.mxu0 0.0
    %1209 = vmatprep.subr.mxu0 0.0
    %1210 = vmatpush1.msra.mxu0 0.0
    %1211 = vmatprep.subr.mxu0 0.0
    %1212 = vmatpush1.msra.mxu0 0.0
    %1213 = vmatprep.subr.mxu0 0.0
    %1214 = vmatpush1.msra.mxu0 0.0
    %1215 = vmatprep.subr.mxu0 0.0
    %1216 = vmatpush1.msra.mxu0 0.0
    %1217 = vmatprep.subr.mxu0 0.0
    %1218 = vmatpush1.msra.mxu0 0.0
    %1219 = vmatprep.subr.mxu0 0.0
    %1220 = vmatpush1.msra.mxu0 0.0
    %1221 = vmatprep.subr.mxu0 0.0
    %1222 = vmatpush1.msra.mxu0 0.0
    %1223 = vmatprep.subr.mxu0 0.0
    %1224 = vmatpush1.msra.mxu0 0.0
    %1225 = vmatprep.subr.mxu0 0.0
    %1226 = vmatpush1.msra.mxu0 0.0
    %1227 = vmatprep.subr.mxu0 0.0
    %1228 = vmatpush1.msra.mxu0 0.0
    %1229 = vmatprep.mubr.f32.mxu0 0.0
    %1230 = vmatmul.mubr.f32.gmra.mrb[0].mxu0 %v1021
    %v1231 = vpop.f32.mrb[0].mxu0
    %v1232 = vadd.f32 0.0, %v1231
    %v1233 = vpop.f32.mrb[0].mxu0
    %v1234 = vadd.f32 0.0, %v1233
    %1235 = vdwg.mxu0
    %v1236 = vadd.f32 %v987, %v1090
    %v1237 = vadd.f32 %v988, %v1092
    %v1238 = vadd.f32 %v989, %v1161
    %v1239 = vadd.f32 %v990, %v1163
    %v1240 = vadd.f32 %v991, %v1232
    %v1241 = vadd.f32 %v992, %v1234
    %1242 = vrot.lane.b32.xlu0 %v21, 108
    %v1243 = vpop.permute.xlu0 %1242
    %1244 = vrot.lane.b32.xlu0 %v22, 108
    %v1245 = vpop.permute.xlu0 %1244
    %1246 = vrot.lane.b32.xlu0 %v23, 108
    %v1247 = vpop.permute.xlu0 %1246
    %1248 = vrot.lane.b32.xlu0 %v24, 108
    %v1249 = vpop.permute.xlu0 %1248
    %1250 = vrot.lane.b32.xlu0 %v25, 108
    %v1251 = vpop.permute.xlu0 %1250
    %1252 = vrot.lane.b32.xlu0 %v26, 108
    %v1253 = vpop.permute.xlu0 %1252
    %vm1254 = vcmask 883712
    %v1255 = vsel %vm1254, %v1243, %v1245
    %v1256 = vsel %vm1254, %v1245, %v1247
    %v1257 = vsel %vm1254, %v1247, %v1249
    %v1258 = vsel %vm1254, %v1249, %v1251
    %v1259 = vsel %vm1254, %v1251, %v1253
    %v1266 = vsel %vm1254, %v1253, 0.0
    %s1267 = scalar_lea.vmem %s1, 40
    %v1268 = vld [vmem:[%s1267] sm:$0xff]
    %v1270 = vsel %vm62, %v1268, 0
    %1272 = vmatprep.subr.mxu0 %v1256
    %1273 = vmatpush1.msra.mxu0 %v1255
    %1274 = vmatprep.subr.mxu0 0.0
    %1275 = vmatpush1.msra.mxu0 0.0
    %1276 = vmatprep.subr.mxu0 0.0
    %1277 = vmatpush1.msra.mxu0 0.0
    %1278 = vmatprep.subr.mxu0 0.0
    %1279 = vmatpush1.msra.mxu0 0.0
    %1280 = vmatprep.subr.mxu0 0.0
    %1281 = vmatpush1.msra.mxu0 0.0
    %1282 = vmatprep.subr.mxu0 0.0
    %1283 = vmatpush1.msra.mxu0 0.0
    %1284 = vmatprep.subr.mxu0 0.0
    %1285 = vmatpush1.msra.mxu0 0.0
    %1286 = vmatprep.subr.mxu0 0.0
    %1287 = vmatpush1.msra.mxu0 0.0
    %1288 = vmatprep.subr.mxu0 0.0
    %1289 = vmatpush1.msra.mxu0 0.0
    %1290 = vmatprep.subr.mxu0 0.0
    %1291 = vmatpush1.msra.mxu0 0.0
    %1292 = vmatprep.subr.mxu0 0.0
    %1293 = vmatpush1.msra.mxu0 0.0
    %1294 = vmatprep.subr.mxu0 0.0
    %1295 = vmatpush1.msra.mxu0 0.0
    %1296 = vmatprep.subr.mxu0 0.0
    %1297 = vmatpush1.msra.mxu0 0.0
    %1298 = vmatprep.subr.mxu0 0.0
    %1299 = vmatpush1.msra.mxu0 0.0
    %1300 = vmatprep.subr.mxu0 0.0
    %1301 = vmatpush1.msra.mxu0 0.0
    %1302 = vmatprep.subr.mxu0 0.0
    %1303 = vmatpush1.msra.mxu0 0.0
    %1304 = vmatprep.subr.mxu0 0.0
    %1305 = vmatpush1.msra.mxu0 0.0
    %1306 = vmatprep.subr.mxu0 0.0
    %1307 = vmatpush1.msra.mxu0 0.0
    %1308 = vmatprep.subr.mxu0 0.0
    %1309 = vmatpush1.msra.mxu0 0.0
    %1310 = vmatprep.subr.mxu0 0.0
    %1311 = vmatpush1.msra.mxu0 0.0
    %1312 = vmatprep.subr.mxu0 0.0
    %1313 = vmatpush1.msra.mxu0 0.0
    %1314 = vmatprep.subr.mxu0 0.0
    %1315 = vmatpush1.msra.mxu0 0.0
    %1316 = vmatprep.subr.mxu0 0.0
    %1317 = vmatpush1.msra.mxu0 0.0
    %1318 = vmatprep.subr.mxu0 0.0
    %1319 = vmatpush1.msra.mxu0 0.0
    %1320 = vmatprep.subr.mxu0 0.0
    %1321 = vmatpush1.msra.mxu0 0.0
    %1322 = vmatprep.subr.mxu0 0.0
    %1323 = vmatpush1.msra.mxu0 0.0
    %1324 = vmatprep.subr.mxu0 0.0
    %1325 = vmatpush1.msra.mxu0 0.0
    %1326 = vmatprep.subr.mxu0 0.0
    %1327 = vmatpush1.msra.mxu0 0.0
    %1328 = vmatprep.subr.mxu0 0.0
    %1329 = vmatpush1.msra.mxu0 0.0
    %1330 = vmatprep.subr.mxu0 0.0
    %1331 = vmatpush1.msra.mxu0 0.0
    %1332 = vmatprep.subr.mxu0 0.0
    %1333 = vmatpush1.msra.mxu0 0.0
    %1334 = vmatprep.subr.mxu0 0.0
    %1335 = vmatpush1.msra.mxu0 0.0
    %1336 = vmatprep.mubr.f32.mxu0 0.0
    %1337 = vmatmul.mubr.f32.gmra.mrb[0].mxu0 %v1270
    %v1338 = vpop.f32.mrb[0].mxu0
    %v1339 = vadd.f32 0.0, %v1338
    %v1340 = vpop.f32.mrb[0].mxu0
    %v1341 = vadd.f32 0.0, %v1340
    %1342 = vdwg.mxu0
    %1343 = vmatprep.subr.mxu0 %v1258
    %1344 = vmatpush1.msra.mxu0 %v1257
    %1345 = vmatprep.subr.mxu0 0.0
    %1346 = vmatpush1.msra.mxu0 0.0
    %1347 = vmatprep.subr.mxu0 0.0
    %1348 = vmatpush1.msra.mxu0 0.0
    %1349 = vmatprep.subr.mxu0 0.0
    %1350 = vmatpush1.msra.mxu0 0.0
    %1351 = vmatprep.subr.mxu0 0.0
    %1352 = vmatpush1.msra.mxu0 0.0
    %1353 = vmatprep.subr.mxu0 0.0
    %1354 = vmatpush1.msra.mxu0 0.0
    %1355 = vmatprep.subr.mxu0 0.0
    %1356 = vmatpush1.msra.mxu0 0.0
    %1357 = vmatprep.subr.mxu0 0.0
    %1358 = vmatpush1.msra.mxu0 0.0
    %1359 = vmatprep.subr.mxu0 0.0
    %1360 = vmatpush1.msra.mxu0 0.0
    %1361 = vmatprep.subr.mxu0 0.0
    %1362 = vmatpush1.msra.mxu0 0.0
    %1363 = vmatprep.subr.mxu0 0.0
    %1364 = vmatpush1.msra.mxu0 0.0
    %1365 = vmatprep.subr.mxu0 0.0
    %1366 = vmatpush1.msra.mxu0 0.0
    %1367 = vmatprep.subr.mxu0 0.0
    %1368 = vmatpush1.msra.mxu0 0.0
    %1369 = vmatprep.subr.mxu0 0.0
    %1370 = vmatpush1.msra.mxu0 0.0
    %1371 = vmatprep.subr.mxu0 0.0
    %1372 = vmatpush1.msra.mxu0 0.0
    %1373 = vmatprep.subr.mxu0 0.0
    %1374 = vmatpush1.msra.mxu0 0.0
    %1375 = vmatprep.subr.mxu0 0.0
    %1376 = vmatpush1.msra.mxu0 0.0
    %1377 = vmatprep.subr.mxu0 0.0
    %1378 = vmatpush1.msra.mxu0 0.0
    %1379 = vmatprep.subr.mxu0 0.0
    %1380 = vmatpush1.msra.mxu0 0.0
    %1381 = vmatprep.subr.mxu0 0.0
    %1382 = vmatpush1.msra.mxu0 0.0
    %1383 = vmatprep.subr.mxu0 0.0
    %1384 = vmatpush1.msra.mxu0 0.0
    %1385 = vmatprep.subr.mxu0 0.0
    %1386 = vmatpush1.msra.mxu0 0.0
    %1387 = vmatprep.subr.mxu0 0.0
    %1388 = vmatpush1.msra.mxu0 0.0
    %1389 = vmatprep.subr.mxu0 0.0
    %1390 = vmatpush1.msra.mxu0 0.0
    %1391 = vmatprep.subr.mxu0 0.0
    %1392 = vmatpush1.msra.mxu0 0.0
    %1393 = vmatprep.subr.mxu0 0.0
    %1394 = vmatpush1.msra.mxu0 0.0
    %1395 = vmatprep.subr.mxu0 0.0
    %1396 = vmatpush1.msra.mxu0 0.0
    %1397 = vmatprep.subr.mxu0 0.0
    %1398 = vmatpush1.msra.mxu0 0.0
    %1399 = vmatprep.subr.mxu0 0.0
    %1400 = vmatpush1.msra.mxu0 0.0
    %1401 = vmatprep.subr.mxu0 0.0
    %1402 = vmatpush1.msra.mxu0 0.0
    %1403 = vmatprep.subr.mxu0 0.0
    %1404 = vmatpush1.msra.mxu0 0.0
    %1405 = vmatprep.subr.mxu0 0.0
    %1406 = vmatpush1.msra.mxu0 0.0
    %1407 = vmatprep.mubr.f32.mxu0 0.0
    %1408 = vmatmul.mubr.f32.gmra.mrb[0].mxu0 %v1270
    %v1409 = vpop.f32.mrb[0].mxu0
    %v1410 = vadd.f32 0.0, %v1409
    %v1411 = vpop.f32.mrb[0].mxu0
    %v1412 = vadd.f32 0.0, %v1411
    %1413 = vdwg.mxu0
    %1414 = vmatprep.subr.mxu0 %v1266
    %1415 = vmatpush1.msra.mxu0 %v1259
    %1416 = vmatprep.subr.mxu0 0.0
    %1417 = vmatpush1.msra.mxu0 0.0
    %1418 = vmatprep.subr.mxu0 0.0
    %1419 = vmatpush1.msra.mxu0 0.0
    %1420 = vmatprep.subr.mxu0 0.0
    %1421 = vmatpush1.msra.mxu0 0.0
    %1422 = vmatprep.subr.mxu0 0.0
    %1423 = vmatpush1.msra.mxu0 0.0
    %1424 = vmatprep.subr.mxu0 0.0
    %1425 = vmatpush1.msra.mxu0 0.0
    %1426 = vmatprep.subr.mxu0 0.0
    %1427 = vmatpush1.msra.mxu0 0.0
    %1428 = vmatprep.subr.mxu0 0.0
    %1429 = vmatpush1.msra.mxu0 0.0
    %1430 = vmatprep.subr.mxu0 0.0
    %1431 = vmatpush1.msra.mxu0 0.0
    %1432 = vmatprep.subr.mxu0 0.0
    %1433 = vmatpush1.msra.mxu0 0.0
    %1434 = vmatprep.subr.mxu0 0.0
    %1435 = vmatpush1.msra.mxu0 0.0
    %1436 = vmatprep.subr.mxu0 0.0
    %1437 = vmatpush1.msra.mxu0 0.0
    %1438 = vmatprep.subr.mxu0 0.0
    %1439 = vmatpush1.msra.mxu0 0.0
    %1440 = vmatprep.subr.mxu0 0.0
    %1441 = vmatpush1.msra.mxu0 0.0
    %1442 = vmatprep.subr.mxu0 0.0
    %1443 = vmatpush1.msra.mxu0 0.0
    %1444 = vmatprep.subr.mxu0 0.0
    %1445 = vmatpush1.msra.mxu0 0.0
    %1446 = vmatprep.subr.mxu0 0.0
    %1447 = vmatpush1.msra.mxu0 0.0
    %1448 = vmatprep.subr.mxu0 0.0
    %1449 = vmatpush1.msra.mxu0 0.0
    %1450 = vmatprep.subr.mxu0 0.0
    %1451 = vmatpush1.msra.mxu0 0.0
    %1452 = vmatprep.subr.mxu0 0.0
    %1453 = vmatpush1.msra.mxu0 0.0
    %1454 = vmatprep.subr.mxu0 0.0
    %1455 = vmatpush1.msra.mxu0 0.0
    %1456 = vmatprep.subr.mxu0 0.0
    %1457 = vmatpush1.msra.mxu0 0.0
    %1458 = vmatprep.subr.mxu0 0.0
    %1459 = vmatpush1.msra.mxu0 0.0
    %1460 = vmatprep.subr.mxu0 0.0
    %1461 = vmatpush1.msra.mxu0 0.0
    %1462 = vmatprep.subr.mxu0 0.0
    %1463 = vmatpush1.msra.mxu0 0.0
    %1464 = vmatprep.subr.mxu0 0.0
    %1465 = vmatpush1.msra.mxu0 0.0
    %1466 = vmatprep.subr.mxu0 0.0
    %1467 = vmatpush1.msra.mxu0 0.0
    %1468 = vmatprep.subr.mxu0 0.0
    %1469 = vmatpush1.msra.mxu0 0.0
    %1470 = vmatprep.subr.mxu0 0.0
    %1471 = vmatpush1.msra.mxu0 0.0
    %1472 = vmatprep.subr.mxu0 0.0
    %1473 = vmatpush1.msra.mxu0 0.0
    %1474 = vmatprep.subr.mxu0 0.0
    %1475 = vmatpush1.msra.mxu0 0.0
    %1476 = vmatprep.subr.mxu0 0.0
    %1477 = vmatpush1.msra.mxu0 0.0
    %1478 = vmatprep.mubr.f32.mxu0 0.0
    %1479 = vmatmul.mubr.f32.gmra.mrb[0].mxu0 %v1270
    %v1480 = vpop.f32.mrb[0].mxu0
    %v1481 = vadd.f32 0.0, %v1480
    %v1482 = vpop.f32.mrb[0].mxu0
    %v1483 = vadd.f32 0.0, %v1482
    %1484 = vdwg.mxu0
    %v1485 = vadd.f32 %v1236, %v1339
    %v1486 = vadd.f32 %v1237, %v1341
    %v1487 = vadd.f32 %v1238, %v1410
    %v1488 = vadd.f32 %v1239, %v1412
    %v1489 = vadd.f32 %v1240, %v1481
    %v1490 = vadd.f32 %v1241, %v1483
    %1491 = vrot.lane.b32.xlu0 %v21, 92
    %v1492 = vpop.permute.xlu0 %1491
    %1493 = vrot.lane.b32.xlu0 %v22, 92
    %v1494 = vpop.permute.xlu0 %1493
    %1495 = vrot.lane.b32.xlu0 %v23, 92
    %v1496 = vpop.permute.xlu0 %1495
    %1497 = vrot.lane.b32.xlu0 %v24, 92
    %v1498 = vpop.permute.xlu0 %1497
    %1499 = vrot.lane.b32.xlu0 %v25, 92
    %v1500 = vpop.permute.xlu0 %1499
    %1501 = vrot.lane.b32.xlu0 %v26, 92
    %v1502 = vpop.permute.xlu0 %1501
    %vm1503 = vcmask 752640
    %v1504 = vsel %vm1503, %v1492, %v1494
    %v1505 = vsel %vm1503, %v1494, %v1496
    %v1506 = vsel %vm1503, %v1496, %v1498
    %v1507 = vsel %vm1503, %v1498, %v1500
    %v1508 = vsel %vm1503, %v1500, %v1502
    %v1515 = vsel %vm1503, %v1502, 0.0
    %s1516 = scalar_lea.vmem %s1, 48
    %v1517 = vld [vmem:[%s1516] sm:$0xff]
    %v1519 = vsel %vm62, %v1517, 0
    %1521 = vmatprep.subr.mxu0 %v1505
    %1522 = vmatpush1.msra.mxu0 %v1504
    %1523 = vmatprep.subr.mxu0 0.0
    %1524 = vmatpush1.msra.mxu0 0.0
    %1525 = vmatprep.subr.mxu0 0.0
    %1526 = vmatpush1.msra.mxu0 0.0
    %1527 = vmatprep.subr.mxu0 0.0
    %1528 = vmatpush1.msra.mxu0 0.0
    %1529 = vmatprep.subr.mxu0 0.0
    %1530 = vmatpush1.msra.mxu0 0.0
    %1531 = vmatprep.subr.mxu0 0.0
    %1532 = vmatpush1.msra.mxu0 0.0
    %1533 = vmatprep.subr.mxu0 0.0
    %1534 = vmatpush1.msra.mxu0 0.0
    %1535 = vmatprep.subr.mxu0 0.0
    %1536 = vmatpush1.msra.mxu0 0.0
    %1537 = vmatprep.subr.mxu0 0.0
    %1538 = vmatpush1.msra.mxu0 0.0
    %1539 = vmatprep.subr.mxu0 0.0
    %1540 = vmatpush1.msra.mxu0 0.0
    %1541 = vmatprep.subr.mxu0 0.0
    %1542 = vmatpush1.msra.mxu0 0.0
    %1543 = vmatprep.subr.mxu0 0.0
    %1544 = vmatpush1.msra.mxu0 0.0
    %1545 = vmatprep.subr.mxu0 0.0
    %1546 = vmatpush1.msra.mxu0 0.0
    %1547 = vmatprep.subr.mxu0 0.0
    %1548 = vmatpush1.msra.mxu0 0.0
    %1549 = vmatprep.subr.mxu0 0.0
    %1550 = vmatpush1.msra.mxu0 0.0
    %1551 = vmatprep.subr.mxu0 0.0
    %1552 = vmatpush1.msra.mxu0 0.0
    %1553 = vmatprep.subr.mxu0 0.0
    %1554 = vmatpush1.msra.mxu0 0.0
    %1555 = vmatprep.subr.mxu0 0.0
    %1556 = vmatpush1.msra.mxu0 0.0
    %1557 = vmatprep.subr.mxu0 0.0
    %1558 = vmatpush1.msra.mxu0 0.0
    %1559 = vmatprep.subr.mxu0 0.0
    %1560 = vmatpush1.msra.mxu0 0.0
    %1561 = vmatprep.subr.mxu0 0.0
    %1562 = vmatpush1.msra.mxu0 0.0
    %1563 = vmatprep.subr.mxu0 0.0
    %1564 = vmatpush1.msra.mxu0 0.0
    %1565 = vmatprep.subr.mxu0 0.0
    %1566 = vmatpush1.msra.mxu0 0.0
    %1567 = vmatprep.subr.mxu0 0.0
    %1568 = vmatpush1.msra.mxu0 0.0
    %1569 = vmatprep.subr.mxu0 0.0
    %1570 = vmatpush1.msra.mxu0 0.0
    %1571 = vmatprep.subr.mxu0 0.0
    %1572 = vmatpush1.msra.mxu0 0.0
    %1573 = vmatprep.subr.mxu0 0.0
    %1574 = vmatpush1.msra.mxu0 0.0
    %1575 = vmatprep.subr.mxu0 0.0
    %1576 = vmatpush1.msra.mxu0 0.0
    %1577 = vmatprep.subr.mxu0 0.0
    %1578 = vmatpush1.msra.mxu0 0.0
    %1579 = vmatprep.subr.mxu0 0.0
    %1580 = vmatpush1.msra.mxu0 0.0
    %1581 = vmatprep.subr.mxu0 0.0
    %1582 = vmatpush1.msra.mxu0 0.0
    %1583 = vmatprep.subr.mxu0 0.0
    %1584 = vmatpush1.msra.mxu0 0.0
    %1585 = vmatprep.mubr.f32.mxu0 0.0
    %1586 = vmatmul.mubr.f32.gmra.mrb[0].mxu0 %v1519
    %v1587 = vpop.f32.mrb[0].mxu0
    %v1588 = vadd.f32 0.0, %v1587
    %v1589 = vpop.f32.mrb[0].mxu0
    %v1590 = vadd.f32 0.0, %v1589
    %1591 = vdwg.mxu0
    %1592 = vmatprep.subr.mxu0 %v1507
    %1593 = vmatpush1.msra.mxu0 %v1506
    %1594 = vmatprep.subr.mxu0 0.0
    %1595 = vmatpush1.msra.mxu0 0.0
    %1596 = vmatprep.subr.mxu0 0.0
    %1597 = vmatpush1.msra.mxu0 0.0
    %1598 = vmatprep.subr.mxu0 0.0
    %1599 = vmatpush1.msra.mxu0 0.0
    %1600 = vmatprep.subr.mxu0 0.0
    %1601 = vmatpush1.msra.mxu0 0.0
    %1602 = vmatprep.subr.mxu0 0.0
    %1603 = vmatpush1.msra.mxu0 0.0
    %1604 = vmatprep.subr.mxu0 0.0
    %1605 = vmatpush1.msra.mxu0 0.0
    %1606 = vmatprep.subr.mxu0 0.0
    %1607 = vmatpush1.msra.mxu0 0.0
    %1608 = vmatprep.subr.mxu0 0.0
    %1609 = vmatpush1.msra.mxu0 0.0
    %1610 = vmatprep.subr.mxu0 0.0
    %1611 = vmatpush1.msra.mxu0 0.0
    %1612 = vmatprep.subr.mxu0 0.0
    %1613 = vmatpush1.msra.mxu0 0.0
    %1614 = vmatprep.subr.mxu0 0.0
    %1615 = vmatpush1.msra.mxu0 0.0
    %1616 = vmatprep.subr.mxu0 0.0
    %1617 = vmatpush1.msra.mxu0 0.0
    %1618 = vmatprep.subr.mxu0 0.0
    %1619 = vmatpush1.msra.mxu0 0.0
    %1620 = vmatprep.subr.mxu0 0.0
    %1621 = vmatpush1.msra.mxu0 0.0
    %1622 = vmatprep.subr.mxu0 0.0
    %1623 = vmatpush1.msra.mxu0 0.0
    %1624 = vmatprep.subr.mxu0 0.0
    %1625 = vmatpush1.msra.mxu0 0.0
    %1626 = vmatprep.subr.mxu0 0.0
    %1627 = vmatpush1.msra.mxu0 0.0
    %1628 = vmatprep.subr.mxu0 0.0
    %1629 = vmatpush1.msra.mxu0 0.0
    %1630 = vmatprep.subr.mxu0 0.0
    %1631 = vmatpush1.msra.mxu0 0.0
    %1632 = vmatprep.subr.mxu0 0.0
    %1633 = vmatpush1.msra.mxu0 0.0
    %1634 = vmatprep.subr.mxu0 0.0
    %1635 = vmatpush1.msra.mxu0 0.0
    %1636 = vmatprep.subr.mxu0 0.0
    %1637 = vmatpush1.msra.mxu0 0.0
    %1638 = vmatprep.subr.mxu0 0.0
    %1639 = vmatpush1.msra.mxu0 0.0
    %1640 = vmatprep.subr.mxu0 0.0
    %1641 = vmatpush1.msra.mxu0 0.0
    %1642 = vmatprep.subr.mxu0 0.0
    %1643 = vmatpush1.msra.mxu0 0.0
    %1644 = vmatprep.subr.mxu0 0.0
    %1645 = vmatpush1.msra.mxu0 0.0
    %1646 = vmatprep.subr.mxu0 0.0
    %1647 = vmatpush1.msra.mxu0 0.0
    %1648 = vmatprep.subr.mxu0 0.0
    %1649 = vmatpush1.msra.mxu0 0.0
    %1650 = vmatprep.subr.mxu0 0.0
    %1651 = vmatpush1.msra.mxu0 0.0
    %1652 = vmatprep.subr.mxu0 0.0
    %1653 = vmatpush1.msra.mxu0 0.0
    %1654 = vmatprep.subr.mxu0 0.0
    %1655 = vmatpush1.msra.mxu0 0.0
    %1656 = vmatprep.mubr.f32.mxu0 0.0
    %1657 = vmatmul.mubr.f32.gmra.mrb[0].mxu0 %v1519
    %v1658 = vpop.f32.mrb[0].mxu0
    %v1659 = vadd.f32 0.0, %v1658
    %v1660 = vpop.f32.mrb[0].mxu0
    %v1661 = vadd.f32 0.0, %v1660
    %1662 = vdwg.mxu0
    %1663 = vmatprep.subr.mxu0 %v1515
    %1664 = vmatpush1.msra.mxu0 %v1508
    %1665 = vmatprep.subr.mxu0 0.0
    %1666 = vmatpush1.msra.mxu0 0.0
    %1667 = vmatprep.subr.mxu0 0.0
    %1668 = vmatpush1.msra.mxu0 0.0
    %1669 = vmatprep.subr.mxu0 0.0
    %1670 = vmatpush1.msra.mxu0 0.0
    %1671 = vmatprep.subr.mxu0 0.0
    %1672 = vmatpush1.msra.mxu0 0.0
    %1673 = vmatprep.subr.mxu0 0.0
    %1674 = vmatpush1.msra.mxu0 0.0
    %1675 = vmatprep.subr.mxu0 0.0
    %1676 = vmatpush1.msra.mxu0 0.0
    %1677 = vmatprep.subr.mxu0 0.0
    %1678 = vmatpush1.msra.mxu0 0.0
    %1679 = vmatprep.subr.mxu0 0.0
    %1680 = vmatpush1.msra.mxu0 0.0
    %1681 = vmatprep.subr.mxu0 0.0
    %1682 = vmatpush1.msra.mxu0 0.0
    %1683 = vmatprep.subr.mxu0 0.0
    %1684 = vmatpush1.msra.mxu0 0.0
    %1685 = vmatprep.subr.mxu0 0.0
    %1686 = vmatpush1.msra.mxu0 0.0
    %1687 = vmatprep.subr.mxu0 0.0
    %1688 = vmatpush1.msra.mxu0 0.0
    %1689 = vmatprep.subr.mxu0 0.0
    %1690 = vmatpush1.msra.mxu0 0.0
    %1691 = vmatprep.subr.mxu0 0.0
    %1692 = vmatpush1.msra.mxu0 0.0
    %1693 = vmatprep.subr.mxu0 0.0
    %1694 = vmatpush1.msra.mxu0 0.0
    %1695 = vmatprep.subr.mxu0 0.0
    %1696 = vmatpush1.msra.mxu0 0.0
    %1697 = vmatprep.subr.mxu0 0.0
    %1698 = vmatpush1.msra.mxu0 0.0
    %1699 = vmatprep.subr.mxu0 0.0
    %1700 = vmatpush1.msra.mxu0 0.0
    %1701 = vmatprep.subr.mxu0 0.0
    %1702 = vmatpush1.msra.mxu0 0.0
    %1703 = vmatprep.subr.mxu0 0.0
    %1704 = vmatpush1.msra.mxu0 0.0
    %1705 = vmatprep.subr.mxu0 0.0
    %1706 = vmatpush1.msra.mxu0 0.0
    %1707 = vmatprep.subr.mxu0 0.0
    %1708 = vmatpush1.msra.mxu0 0.0
    %1709 = vmatprep.subr.mxu0 0.0
    %1710 = vmatpush1.msra.mxu0 0.0
    %1711 = vmatprep.subr.mxu0 0.0
    %1712 = vmatpush1.msra.mxu0 0.0
    %1713 = vmatprep.subr.mxu0 0.0
    %1714 = vmatpush1.msra.mxu0 0.0
    %1715 = vmatprep.subr.mxu0 0.0
    %1716 = vmatpush1.msra.mxu0 0.0
    %1717 = vmatprep.subr.mxu0 0.0
    %1718 = vmatpush1.msra.mxu0 0.0
    %1719 = vmatprep.subr.mxu0 0.0
    %1720 = vmatpush1.msra.mxu0 0.0
    %1721 = vmatprep.subr.mxu0 0.0
    %1722 = vmatpush1.msra.mxu0 0.0
    %1723 = vmatprep.subr.mxu0 0.0
    %1724 = vmatpush1.msra.mxu0 0.0
    %1725 = vmatprep.subr.mxu0 0.0
    %1726 = vmatpush1.msra.mxu0 0.0
    %1727 = vmatprep.mubr.f32.mxu0 0.0
    %1728 = vmatmul.mubr.f32.gmra.mrb[0].mxu0 %v1519
    %v1729 = vpop.f32.mrb[0].mxu0
    %v1730 = vadd.f32 0.0, %v1729
    %v1731 = vpop.f32.mrb[0].mxu0
    %v1732 = vadd.f32 0.0, %v1731
    %1733 = vdwg.mxu0
    %v1734 = vadd.f32 %v1485, %v1588
    %v1735 = vadd.f32 %v1486, %v1590
    %v1736 = vadd.f32 %v1487, %v1659
    %v1737 = vadd.f32 %v1488, %v1661
    %v1738 = vadd.f32 %v1489, %v1730
    %v1739 = vadd.f32 %v1490, %v1732
    %1740 = vrot.lane.b32.xlu0 %v21, 91
    %v1741 = vpop.permute.xlu0 %1740
    %1742 = vrot.lane.b32.xlu0 %v22, 91
    %v1743 = vpop.permute.xlu0 %1742
    %1744 = vrot.lane.b32.xlu0 %v23, 91
    %v1745 = vpop.permute.xlu0 %1744
    %1746 = vrot.lane.b32.xlu0 %v24, 91
    %v1747 = vpop.permute.xlu0 %1746
    %1748 = vrot.lane.b32.xlu0 %v25, 91
    %v1749 = vpop.permute.xlu0 %1748
    %1750 = vrot.lane.b32.xlu0 %v26, 91
    %v1751 = vpop.permute.xlu0 %1750
    %vm1752 = vcmask 744448
    %v1753 = vsel %vm1752, %v1741, %v1743
    %v1754 = vsel %vm1752, %v1743, %v1745
    %v1755 = vsel %vm1752, %v1745, %v1747
    %v1756 = vsel %vm1752, %v1747, %v1749
    %v1757 = vsel %vm1752, %v1749, %v1751
    %v1764 = vsel %vm1752, %v1751, 0.0
    %s1765 = scalar_lea.vmem %s1, 56
    %v1766 = vld [vmem:[%s1765] sm:$0xff]
    %v1768 = vsel %vm62, %v1766, 0
    %1770 = vmatprep.subr.mxu0 %v1754
    %1771 = vmatpush1.msra.mxu0 %v1753
    %1772 = vmatprep.subr.mxu0 0.0
    %1773 = vmatpush1.msra.mxu0 0.0
    %1774 = vmatprep.subr.mxu0 0.0
    %1775 = vmatpush1.msra.mxu0 0.0
    %1776 = vmatprep.subr.mxu0 0.0
    %1777 = vmatpush1.msra.mxu0 0.0
    %1778 = vmatprep.subr.mxu0 0.0
    %1779 = vmatpush1.msra.mxu0 0.0
    %1780 = vmatprep.subr.mxu0 0.0
    %1781 = vmatpush1.msra.mxu0 0.0
    %1782 = vmatprep.subr.mxu0 0.0
    %1783 = vmatpush1.msra.mxu0 0.0
    %1784 = vmatprep.subr.mxu0 0.0
    %1785 = vmatpush1.msra.mxu0 0.0
    %1786 = vmatprep.subr.mxu0 0.0
    %1787 = vmatpush1.msra.mxu0 0.0
    %1788 = vmatprep.subr.mxu0 0.0
    %1789 = vmatpush1.msra.mxu0 0.0
    %1790 = vmatprep.subr.mxu0 0.0
    %1791 = vmatpush1.msra.mxu0 0.0
    %1792 = vmatprep.subr.mxu0 0.0
    %1793 = vmatpush1.msra.mxu0 0.0
    %1794 = vmatprep.subr.mxu0 0.0
    %1795 = vmatpush1.msra.mxu0 0.0
    %1796 = vmatprep.subr.mxu0 0.0
    %1797 = vmatpush1.msra.mxu0 0.0
    %1798 = vmatprep.subr.mxu0 0.0
    %1799 = vmatpush1.msra.mxu0 0.0
    %1800 = vmatprep.subr.mxu0 0.0
    %1801 = vmatpush1.msra.mxu0 0.0
    %1802 = vmatprep.subr.mxu0 0.0
    %1803 = vmatpush1.msra.mxu0 0.0
    %1804 = vmatprep.subr.mxu0 0.0
    %1805 = vmatpush1.msra.mxu0 0.0
    %1806 = vmatprep.subr.mxu0 0.0
    %1807 = vmatpush1.msra.mxu0 0.0
    %1808 = vmatprep.subr.mxu0 0.0
    %1809 = vmatpush1.msra.mxu0 0.0
    %1810 = vmatprep.subr.mxu0 0.0
    %1811 = vmatpush1.msra.mxu0 0.0
    %1812 = vmatprep.subr.mxu0 0.0
    %1813 = vmatpush1.msra.mxu0 0.0
    %1814 = vmatprep.subr.mxu0 0.0
    %1815 = vmatpush1.msra.mxu0 0.0
    %1816 = vmatprep.subr.mxu0 0.0
    %1817 = vmatpush1.msra.mxu0 0.0
    %1818 = vmatprep.subr.mxu0 0.0
    %1819 = vmatpush1.msra.mxu0 0.0
    %1820 = vmatprep.subr.mxu0 0.0
    %1821 = vmatpush1.msra.mxu0 0.0
    %1822 = vmatprep.subr.mxu0 0.0
    %1823 = vmatpush1.msra.mxu0 0.0
    %1824 = vmatprep.subr.mxu0 0.0
    %1825 = vmatpush1.msra.mxu0 0.0
    %1826 = vmatprep.subr.mxu0 0.0
    %1827 = vmatpush1.msra.mxu0 0.0
    %1828 = vmatprep.subr.mxu0 0.0
    %1829 = vmatpush1.msra.mxu0 0.0
    %1830 = vmatprep.subr.mxu0 0.0
    %1831 = vmatpush1.msra.mxu0 0.0
    %1832 = vmatprep.subr.mxu0 0.0
    %1833 = vmatpush1.msra.mxu0 0.0
    %1834 = vmatprep.mubr.f32.mxu0 0.0
    %1835 = vmatmul.mubr.f32.gmra.mrb[0].mxu0 %v1768
    %v1836 = vpop.f32.mrb[0].mxu0
    %v1837 = vadd.f32 0.0, %v1836
    %v1838 = vpop.f32.mrb[0].mxu0
    %v1839 = vadd.f32 0.0, %v1838
    %1840 = vdwg.mxu0
    %1841 = vmatprep.subr.mxu0 %v1756
    %1842 = vmatpush1.msra.mxu0 %v1755
    %1843 = vmatprep.subr.mxu0 0.0
    %1844 = vmatpush1.msra.mxu0 0.0
    %1845 = vmatprep.subr.mxu0 0.0
    %1846 = vmatpush1.msra.mxu0 0.0
    %1847 = vmatprep.subr.mxu0 0.0
    %1848 = vmatpush1.msra.mxu0 0.0
    %1849 = vmatprep.subr.mxu0 0.0
    %1850 = vmatpush1.msra.mxu0 0.0
    %1851 = vmatprep.subr.mxu0 0.0
    %1852 = vmatpush1.msra.mxu0 0.0
    %1853 = vmatprep.subr.mxu0 0.0
    %1854 = vmatpush1.msra.mxu0 0.0
    %1855 = vmatprep.subr.mxu0 0.0
    %1856 = vmatpush1.msra.mxu0 0.0
    %1857 = vmatprep.subr.mxu0 0.0
    %1858 = vmatpush1.msra.mxu0 0.0
    %1859 = vmatprep.subr.mxu0 0.0
    %1860 = vmatpush1.msra.mxu0 0.0
    %1861 = vmatprep.subr.mxu0 0.0
    %1862 = vmatpush1.msra.mxu0 0.0
    %1863 = vmatprep.subr.mxu0 0.0
    %1864 = vmatpush1.msra.mxu0 0.0
    %1865 = vmatprep.subr.mxu0 0.0
    %1866 = vmatpush1.msra.mxu0 0.0
    %1867 = vmatprep.subr.mxu0 0.0
    %1868 = vmatpush1.msra.mxu0 0.0
    %1869 = vmatprep.subr.mxu0 0.0
    %1870 = vmatpush1.msra.mxu0 0.0
    %1871 = vmatprep.subr.mxu0 0.0
    %1872 = vmatpush1.msra.mxu0 0.0
    %1873 = vmatprep.subr.mxu0 0.0
    %1874 = vmatpush1.msra.mxu0 0.0
    %1875 = vmatprep.subr.mxu0 0.0
    %1876 = vmatpush1.msra.mxu0 0.0
    %1877 = vmatprep.subr.mxu0 0.0
    %1878 = vmatpush1.msra.mxu0 0.0
    %1879 = vmatprep.subr.mxu0 0.0
    %1880 = vmatpush1.msra.mxu0 0.0
    %1881 = vmatprep.subr.mxu0 0.0
    %1882 = vmatpush1.msra.mxu0 0.0
    %1883 = vmatprep.subr.mxu0 0.0
    %1884 = vmatpush1.msra.mxu0 0.0
    %1885 = vmatprep.subr.mxu0 0.0
    %1886 = vmatpush1.msra.mxu0 0.0
    %1887 = vmatprep.subr.mxu0 0.0
    %1888 = vmatpush1.msra.mxu0 0.0
    %1889 = vmatprep.subr.mxu0 0.0
    %1890 = vmatpush1.msra.mxu0 0.0
    %1891 = vmatprep.subr.mxu0 0.0
    %1892 = vmatpush1.msra.mxu0 0.0
    %1893 = vmatprep.subr.mxu0 0.0
    %1894 = vmatpush1.msra.mxu0 0.0
    %1895 = vmatprep.subr.mxu0 0.0
    %1896 = vmatpush1.msra.mxu0 0.0
    %1897 = vmatprep.subr.mxu0 0.0
    %1898 = vmatpush1.msra.mxu0 0.0
    %1899 = vmatprep.subr.mxu0 0.0
    %1900 = vmatpush1.msra.mxu0 0.0
    %1901 = vmatprep.subr.mxu0 0.0
    %1902 = vmatpush1.msra.mxu0 0.0
    %1903 = vmatprep.subr.mxu0 0.0
    %1904 = vmatpush1.msra.mxu0 0.0
    %1905 = vmatprep.mubr.f32.mxu0 0.0
    %1906 = vmatmul.mubr.f32.gmra.mrb[0].mxu0 %v1768
    %v1907 = vpop.f32.mrb[0].mxu0
    %v1908 = vadd.f32 0.0, %v1907
    %v1909 = vpop.f32.mrb[0].mxu0
    %v1910 = vadd.f32 0.0, %v1909
    %1911 = vdwg.mxu0
    %1912 = vmatprep.subr.mxu0 %v1764
    %1913 = vmatpush1.msra.mxu0 %v1757
    %1914 = vmatprep.subr.mxu0 0.0
    %1915 = vmatpush1.msra.mxu0 0.0
    %1916 = vmatprep.subr.mxu0 0.0
    %1917 = vmatpush1.msra.mxu0 0.0
    %1918 = vmatprep.subr.mxu0 0.0
    %1919 = vmatpush1.msra.mxu0 0.0
    %1920 = vmatprep.subr.mxu0 0.0
    %1921 = vmatpush1.msra.mxu0 0.0
    %1922 = vmatprep.subr.mxu0 0.0
    %1923 = vmatpush1.msra.mxu0 0.0
    %1924 = vmatprep.subr.mxu0 0.0
    %1925 = vmatpush1.msra.mxu0 0.0
    %1926 = vmatprep.subr.mxu0 0.0
    %1927 = vmatpush1.msra.mxu0 0.0
    %1928 = vmatprep.subr.mxu0 0.0
    %1929 = vmatpush1.msra.mxu0 0.0
    %1930 = vmatprep.subr.mxu0 0.0
    %1931 = vmatpush1.msra.mxu0 0.0
    %1932 = vmatprep.subr.mxu0 0.0
    %1933 = vmatpush1.msra.mxu0 0.0
    %1934 = vmatprep.subr.mxu0 0.0
    %1935 = vmatpush1.msra.mxu0 0.0
    %1936 = vmatprep.subr.mxu0 0.0
    %1937 = vmatpush1.msra.mxu0 0.0
    %1938 = vmatprep.subr.mxu0 0.0
    %1939 = vmatpush1.msra.mxu0 0.0
    %1940 = vmatprep.subr.mxu0 0.0
    %1941 = vmatpush1.msra.mxu0 0.0
    %1942 = vmatprep.subr.mxu0 0.0
    %1943 = vmatpush1.msra.mxu0 0.0
    %1944 = vmatprep.subr.mxu0 0.0
    %1945 = vmatpush1.msra.mxu0 0.0
    %1946 = vmatprep.subr.mxu0 0.0
    %1947 = vmatpush1.msra.mxu0 0.0
    %1948 = vmatprep.subr.mxu0 0.0
    %1949 = vmatpush1.msra.mxu0 0.0
    %1950 = vmatprep.subr.mxu0 0.0
    %1951 = vmatpush1.msra.mxu0 0.0
    %1952 = vmatprep.subr.mxu0 0.0
    %1953 = vmatpush1.msra.mxu0 0.0
    %1954 = vmatprep.subr.mxu0 0.0
    %1955 = vmatpush1.msra.mxu0 0.0
    %1956 = vmatprep.subr.mxu0 0.0
    %1957 = vmatpush1.msra.mxu0 0.0
    %1958 = vmatprep.subr.mxu0 0.0
    %1959 = vmatpush1.msra.mxu0 0.0
    %1960 = vmatprep.subr.mxu0 0.0
    %1961 = vmatpush1.msra.mxu0 0.0
    %1962 = vmatprep.subr.mxu0 0.0
    %1963 = vmatpush1.msra.mxu0 0.0
    %1964 = vmatprep.subr.mxu0 0.0
    %1965 = vmatpush1.msra.mxu0 0.0
    %1966 = vmatprep.subr.mxu0 0.0
    %1967 = vmatpush1.msra.mxu0 0.0
    %1968 = vmatprep.subr.mxu0 0.0
    %1969 = vmatpush1.msra.mxu0 0.0
    %1970 = vmatprep.subr.mxu0 0.0
    %1971 = vmatpush1.msra.mxu0 0.0
    %1972 = vmatprep.subr.mxu0 0.0
    %1973 = vmatpush1.msra.mxu0 0.0
    %1974 = vmatprep.subr.mxu0 0.0
    %1975 = vmatpush1.msra.mxu0 0.0
    %1976 = vmatprep.mubr.f32.mxu0 0.0
    %1977 = vmatmul.mubr.f32.gmra.mrb[0].mxu0 %v1768
    %v1978 = vpop.f32.mrb[0].mxu0
    %v1979 = vadd.f32 0.0, %v1978
    %v1980 = vpop.f32.mrb[0].mxu0
    %v1981 = vadd.f32 0.0, %v1980
    %1982 = vdwg.mxu0
    %v1983 = vadd.f32 %v1734, %v1837
    %v1984 = vadd.f32 %v1735, %v1839
    %v1985 = vadd.f32 %v1736, %v1908
    %v1986 = vadd.f32 %v1737, %v1910
    %v1987 = vadd.f32 %v1738, %v1979
    %v1988 = vadd.f32 %v1739, %v1981
    %1989 = vrot.lane.b32.xlu0 %v21, 90
    %v1990 = vpop.permute.xlu0 %1989
    %1991 = vrot.lane.b32.xlu0 %v22, 90
    %v1992 = vpop.permute.xlu0 %1991
    %1993 = vrot.lane.b32.xlu0 %v23, 90
    %v1994 = vpop.permute.xlu0 %1993
    %1995 = vrot.lane.b32.xlu0 %v24, 90
    %v1996 = vpop.permute.xlu0 %1995
    %1997 = vrot.lane.b32.xlu0 %v25, 90
    %v1998 = vpop.permute.xlu0 %1997
    %1999 = vrot.lane.b32.xlu0 %v26, 90
    %v2000 = vpop.permute.xlu0 %1999
    %vm2001 = vcmask 736256
    %v2002 = vsel %vm2001, %v1990, %v1992
    %v2003 = vsel %vm2001, %v1992, %v1994
    %v2004 = vsel %vm2001, %v1994, %v1996
    %v2005 = vsel %vm2001, %v1996, %v1998
    %v2006 = vsel %vm2001, %v1998, %v2000
    %v2013 = vsel %vm2001, %v2000, 0.0
    %s2014 = scalar_lea.vmem %s1, 64
    %v2015 = vld [vmem:[%s2014] sm:$0xff]
    %v2017 = vsel %vm62, %v2015, 0
    %2019 = vmatprep.subr.mxu0 %v2003
    %2020 = vmatpush1.msra.mxu0 %v2002
    %2021 = vmatprep.subr.mxu0 0.0
    %2022 = vmatpush1.msra.mxu0 0.0
    %2023 = vmatprep.subr.mxu0 0.0
    %2024 = vmatpush1.msra.mxu0 0.0
    %2025 = vmatprep.subr.mxu0 0.0
    %2026 = vmatpush1.msra.mxu0 0.0
    %2027 = vmatprep.subr.mxu0 0.0
    %2028 = vmatpush1.msra.mxu0 0.0
    %2029 = vmatprep.subr.mxu0 0.0
    %2030 = vmatpush1.msra.mxu0 0.0
    %2031 = vmatprep.subr.mxu0 0.0
    %2032 = vmatpush1.msra.mxu0 0.0
    %2033 = vmatprep.subr.mxu0 0.0
    %2034 = vmatpush1.msra.mxu0 0.0
    %2035 = vmatprep.subr.mxu0 0.0
    %2036 = vmatpush1.msra.mxu0 0.0
    %2037 = vmatprep.subr.mxu0 0.0
    %2038 = vmatpush1.msra.mxu0 0.0
    %2039 = vmatprep.subr.mxu0 0.0
    %2040 = vmatpush1.msra.mxu0 0.0
    %2041 = vmatprep.subr.mxu0 0.0
    %2042 = vmatpush1.msra.mxu0 0.0
    %2043 = vmatprep.subr.mxu0 0.0
    %2044 = vmatpush1.msra.mxu0 0.0
    %2045 = vmatprep.subr.mxu0 0.0
    %2046 = vmatpush1.msra.mxu0 0.0
    %2047 = vmatprep.subr.mxu0 0.0
    %2048 = vmatpush1.msra.mxu0 0.0
    %2049 = vmatprep.subr.mxu0 0.0
    %2050 = vmatpush1.msra.mxu0 0.0
    %2051 = vmatprep.subr.mxu0 0.0
    %2052 = vmatpush1.msra.mxu0 0.0
    %2053 = vmatprep.subr.mxu0 0.0
    %2054 = vmatpush1.msra.mxu0 0.0
    %2055 = vmatprep.subr.mxu0 0.0
    %2056 = vmatpush1.msra.mxu0 0.0
    %2057 = vmatprep.subr.mxu0 0.0
    %2058 = vmatpush1.msra.mxu0 0.0
    %2059 = vmatprep.subr.mxu0 0.0
    %2060 = vmatpush1.msra.mxu0 0.0
    %2061 = vmatprep.subr.mxu0 0.0
    %2062 = vmatpush1.msra.mxu0 0.0
    %2063 = vmatprep.subr.mxu0 0.0
    %2064 = vmatpush1.msra.mxu0 0.0
    %2065 = vmatprep.subr.mxu0 0.0
    %2066 = vmatpush1.msra.mxu0 0.0
    %2067 = vmatprep.subr.mxu0 0.0
    %2068 = vmatpush1.msra.mxu0 0.0
    %2069 = vmatprep.subr.mxu0 0.0
    %2070 = vmatpush1.msra.mxu0 0.0
    %2071 = vmatprep.subr.mxu0 0.0
    %2072 = vmatpush1.msra.mxu0 0.0
    %2073 = vmatprep.subr.mxu0 0.0
    %2074 = vmatpush1.msra.mxu0 0.0
    %2075 = vmatprep.subr.mxu0 0.0
    %2076 = vmatpush1.msra.mxu0 0.0
    %2077 = vmatprep.subr.mxu0 0.0
    %2078 = vmatpush1.msra.mxu0 0.0
    %2079 = vmatprep.subr.mxu0 0.0
    %2080 = vmatpush1.msra.mxu0 0.0
    %2081 = vmatprep.subr.mxu0 0.0
    %2082 = vmatpush1.msra.mxu0 0.0
    %2083 = vmatprep.mubr.f32.mxu0 0.0
    %2084 = vmatmul.mubr.f32.gmra.mrb[0].mxu0 %v2017
    %v2085 = vpop.f32.mrb[0].mxu0
    %v2086 = vadd.f32 0.0, %v2085
    %v2087 = vpop.f32.mrb[0].mxu0
    %v2088 = vadd.f32 0.0, %v2087
    %2089 = vdwg.mxu0
    %2090 = vmatprep.subr.mxu0 %v2005
    %2091 = vmatpush1.msra.mxu0 %v2004
    %2092 = vmatprep.subr.mxu0 0.0
    %2093 = vmatpush1.msra.mxu0 0.0
    %2094 = vmatprep.subr.mxu0 0.0
    %2095 = vmatpush1.msra.mxu0 0.0
    %2096 = vmatprep.subr.mxu0 0.0
    %2097 = vmatpush1.msra.mxu0 0.0
    %2098 = vmatprep.subr.mxu0 0.0
    %2099 = vmatpush1.msra.mxu0 0.0
    %2100 = vmatprep.subr.mxu0 0.0
    %2101 = vmatpush1.msra.mxu0 0.0
    %2102 = vmatprep.subr.mxu0 0.0
    %2103 = vmatpush1.msra.mxu0 0.0
    %2104 = vmatprep.subr.mxu0 0.0
    %2105 = vmatpush1.msra.mxu0 0.0
    %2106 = vmatprep.subr.mxu0 0.0
    %2107 = vmatpush1.msra.mxu0 0.0
    %2108 = vmatprep.subr.mxu0 0.0
    %2109 = vmatpush1.msra.mxu0 0.0
    %2110 = vmatprep.subr.mxu0 0.0
    %2111 = vmatpush1.msra.mxu0 0.0
    %2112 = vmatprep.subr.mxu0 0.0
    %2113 = vmatpush1.msra.mxu0 0.0
    %2114 = vmatprep.subr.mxu0 0.0
    %2115 = vmatpush1.msra.mxu0 0.0
    %2116 = vmatprep.subr.mxu0 0.0
    %2117 = vmatpush1.msra.mxu0 0.0
    %2118 = vmatprep.subr.mxu0 0.0
    %2119 = vmatpush1.msra.mxu0 0.0
    %2120 = vmatprep.subr.mxu0 0.0
    %2121 = vmatpush1.msra.mxu0 0.0
    %2122 = vmatprep.subr.mxu0 0.0
    %2123 = vmatpush1.msra.mxu0 0.0
    %2124 = vmatprep.subr.mxu0 0.0
    %2125 = vmatpush1.msra.mxu0 0.0
    %2126 = vmatprep.subr.mxu0 0.0
    %2127 = vmatpush1.msra.mxu0 0.0
    %2128 = vmatprep.subr.mxu0 0.0
    %2129 = vmatpush1.msra.mxu0 0.0
    %2130 = vmatprep.subr.mxu0 0.0
    %2131 = vmatpush1.msra.mxu0 0.0
    %2132 = vmatprep.subr.mxu0 0.0
    %2133 = vmatpush1.msra.mxu0 0.0
    %2134 = vmatprep.subr.mxu0 0.0
    %2135 = vmatpush1.msra.mxu0 0.0
    %2136 = vmatprep.subr.mxu0 0.0
    %2137 = vmatpush1.msra.mxu0 0.0
    %2138 = vmatprep.subr.mxu0 0.0
    %2139 = vmatpush1.msra.mxu0 0.0
    %2140 = vmatprep.subr.mxu0 0.0
    %2141 = vmatpush1.msra.mxu0 0.0
    %2142 = vmatprep.subr.mxu0 0.0
    %2143 = vmatpush1.msra.mxu0 0.0
    %2144 = vmatprep.subr.mxu0 0.0
    %2145 = vmatpush1.msra.mxu0 0.0
    %2146 = vmatprep.subr.mxu0 0.0
    %2147 = vmatpush1.msra.mxu0 0.0
    %2148 = vmatprep.subr.mxu0 0.0
    %2149 = vmatpush1.msra.mxu0 0.0
    %2150 = vmatprep.subr.mxu0 0.0
    %2151 = vmatpush1.msra.mxu0 0.0
    %2152 = vmatprep.subr.mxu0 0.0
    %2153 = vmatpush1.msra.mxu0 0.0
    %2154 = vmatprep.mubr.f32.mxu0 0.0
    %2155 = vmatmul.mubr.f32.gmra.mrb[0].mxu0 %v2017
    %v2156 = vpop.f32.mrb[0].mxu0
    %v2157 = vadd.f32 0.0, %v2156
    %v2158 = vpop.f32.mrb[0].mxu0
    %v2159 = vadd.f32 0.0, %v2158
    %2160 = vdwg.mxu0
    %2161 = vmatprep.subr.mxu0 %v2013
    %2162 = vmatpush1.msra.mxu0 %v2006
    %2163 = vmatprep.subr.mxu0 0.0
    %2164 = vmatpush1.msra.mxu0 0.0
    %2165 = vmatprep.subr.mxu0 0.0
    %2166 = vmatpush1.msra.mxu0 0.0
    %2167 = vmatprep.subr.mxu0 0.0
    %2168 = vmatpush1.msra.mxu0 0.0
    %2169 = vmatprep.subr.mxu0 0.0
    %2170 = vmatpush1.msra.mxu0 0.0
    %2171 = vmatprep.subr.mxu0 0.0
    %2172 = vmatpush1.msra.mxu0 0.0
    %2173 = vmatprep.subr.mxu0 0.0
    %2174 = vmatpush1.msra.mxu0 0.0
    %2175 = vmatprep.subr.mxu0 0.0
    %2176 = vmatpush1.msra.mxu0 0.0
    %2177 = vmatprep.subr.mxu0 0.0
    %2178 = vmatpush1.msra.mxu0 0.0
    %2179 = vmatprep.subr.mxu0 0.0
    %2180 = vmatpush1.msra.mxu0 0.0
    %2181 = vmatprep.subr.mxu0 0.0
    %2182 = vmatpush1.msra.mxu0 0.0
    %2183 = vmatprep.subr.mxu0 0.0
    %2184 = vmatpush1.msra.mxu0 0.0
    %2185 = vmatprep.subr.mxu0 0.0
    %2186 = vmatpush1.msra.mxu0 0.0
    %2187 = vmatprep.subr.mxu0 0.0
    %2188 = vmatpush1.msra.mxu0 0.0
    %2189 = vmatprep.subr.mxu0 0.0
    %2190 = vmatpush1.msra.mxu0 0.0
    %2191 = vmatprep.subr.mxu0 0.0
    %2192 = vmatpush1.msra.mxu0 0.0
    %2193 = vmatprep.subr.mxu0 0.0
    %2194 = vmatpush1.msra.mxu0 0.0
    %2195 = vmatprep.subr.mxu0 0.0
    %2196 = vmatpush1.msra.mxu0 0.0
    %2197 = vmatprep.subr.mxu0 0.0
    %2198 = vmatpush1.msra.mxu0 0.0
    %2199 = vmatprep.subr.mxu0 0.0
    %2200 = vmatpush1.msra.mxu0 0.0
    %2201 = vmatprep.subr.mxu0 0.0
    %2202 = vmatpush1.msra.mxu0 0.0
    %2203 = vmatprep.subr.mxu0 0.0
    %2204 = vmatpush1.msra.mxu0 0.0
    %2205 = vmatprep.subr.mxu0 0.0
    %2206 = vmatpush1.msra.mxu0 0.0
    %2207 = vmatprep.subr.mxu0 0.0
    %2208 = vmatpush1.msra.mxu0 0.0
    %2209 = vmatprep.subr.mxu0 0.0
    %2210 = vmatpush1.msra.mxu0 0.0
    %2211 = vmatprep.subr.mxu0 0.0
    %2212 = vmatpush1.msra.mxu0 0.0
    %2213 = vmatprep.subr.mxu0 0.0
    %2214 = vmatpush1.msra.mxu0 0.0
    %2215 = vmatprep.subr.mxu0 0.0
    %2216 = vmatpush1.msra.mxu0 0.0
    %2217 = vmatprep.subr.mxu0 0.0
    %2218 = vmatpush1.msra.mxu0 0.0
    %2219 = vmatprep.subr.mxu0 0.0
    %2220 = vmatpush1.msra.mxu0 0.0
    %2221 = vmatprep.subr.mxu0 0.0
    %2222 = vmatpush1.msra.mxu0 0.0
    %2223 = vmatprep.subr.mxu0 0.0
    %2224 = vmatpush1.msra.mxu0 0.0
    %2225 = vmatprep.mubr.f32.mxu0 0.0
    %2226 = vmatmul.mubr.f32.gmra.mrb[0].mxu0 %v2017
    %v2227 = vpop.f32.mrb[0].mxu0
    %v2228 = vadd.f32 0.0, %v2227
    %v2229 = vpop.f32.mrb[0].mxu0
    %v2230 = vadd.f32 0.0, %v2229
    %2231 = vdwg.mxu0
    %v2232 = vadd.f32 %v1983, %v2086
    %v2233 = vadd.f32 %v1984, %v2088
    %v2234 = vadd.f32 %v1985, %v2157
    %v2235 = vadd.f32 %v1986, %v2159
    %v2236 = vadd.f32 %v1987, %v2228
    %v2237 = vadd.f32 %v1988, %v2230
    %2239 = vset.pattern.permute.xlu0 0
    %2240 = vperm.xlu0 %2239, %v27
    %v2241 = vpop.permute.xlu0 %2240
    %v2243 = vadd.f32 %v2232, %v2241
    %v2244 = vadd.f32 %v2233, %v2241
    %v2245 = vadd.f32 %v2234, %v2241
    %v2246 = vadd.f32 %v2235, %v2241
    %v2247 = vadd.f32 %v2236, %v2241
    %v2248 = vadd.f32 %v2237, %v2241
    %vm2249 = vcmp.ge.f32.partialorder %v2243, 0.0
    %vm2250 = vcmp.ge.f32.partialorder %v2244, 0.0
    %vm2251 = vcmp.ge.f32.partialorder %v2245, 0.0
    %vm2252 = vcmp.ge.f32.partialorder %v2246, 0.0
    %vm2253 = vcmp.ge.f32.partialorder %v2247, 0.0
    %vm2254 = vcmp.ge.f32.partialorder %v2248, 0.0
    %v2255 = vmul.f32 %v2243, 0.01
    %v2256 = vmul.f32 %v2244, 0.01
    %v2257 = vmul.f32 %v2245, 0.01
    %v2258 = vmul.f32 %v2246, 0.01
    %v2259 = vmul.f32 %v2247, 0.01
    %v2260 = vmul.f32 %v2248, 0.01
    %v2261 = vsel %vm2249, %v2243, %v2255
    %v2262 = vsel %vm2250, %v2244, %v2256
    %v2263 = vsel %vm2251, %v2245, %v2257
    %v2264 = vsel %vm2252, %v2246, %v2258
    %v2265 = vsel %vm2253, %v2247, %v2259
    %v2266 = vsel %vm2254, %v2248, %v2260
    %v2267 = vld [vmem:[%s4] sm:$0x3f]
    %v2269 = vlaneseq
    %v2270 = vshrl.u32 %v2269, 7
    %v2271 = vsub.s32 0, %v2270
    %v2272 = vrot.slane %v2267, %v2271
    %v2273 = vlaneseq
    %v2274 = vshrl.u32 %v2273, 7
    %v2275 = vsub.s32 1, %v2274
    %v2276 = vrot.slane %v2267, %v2275
    %v2277 = vlaneseq
    %v2278 = vshrl.u32 %v2277, 7
    %v2279 = vsub.s32 2, %v2278
    %v2280 = vrot.slane %v2267, %v2279
    %v2281 = vlaneseq
    %v2282 = vshrl.u32 %v2281, 7
    %v2283 = vsub.s32 3, %v2282
    %v2284 = vrot.slane %v2267, %v2283
    %v2285 = vlaneseq
    %v2286 = vshrl.u32 %v2285, 7
    %v2287 = vsub.s32 4, %v2286
    %v2288 = vrot.slane %v2267, %v2287
    %v2289 = vlaneseq
    %v2290 = vshrl.u32 %v2289, 7
    %v2291 = vsub.s32 5, %v2290
    %v2292 = vrot.slane %v2267, %v2291
    %v2299 = vmul.f32 %v2261, %v2272
    %v2300 = vmul.f32 %v2262, %v2276
    %v2301 = vmul.f32 %v2263, %v2280
    %v2302 = vmul.f32 %v2264, %v2284
    %v2303 = vmul.f32 %v2265, %v2288
    %v2304 = vmul.f32 %v2266, %v2292
    %2311 = vrot.lane.b32.xlu0 %v2299, 19
    %v2312 = vpop.permute.xlu0 %2311
    %2313 = vrot.lane.b32.xlu0 %v2300, 19
    %v2314 = vpop.permute.xlu0 %2313
    %2315 = vrot.lane.b32.xlu0 %v2301, 19
    %v2316 = vpop.permute.xlu0 %2315
    %2317 = vrot.lane.b32.xlu0 %v2302, 19
    %v2318 = vpop.permute.xlu0 %2317
    %2319 = vrot.lane.b32.xlu0 %v2303, 19
    %v2320 = vpop.permute.xlu0 %2319
    %2321 = vrot.lane.b32.xlu0 %v2304, 19
    %v2322 = vpop.permute.xlu0 %2321
    %vm2323 = vcmask 154624
    %v2324 = vsel %vm2323, %v2312, %v2314
    %v2325 = vsel %vm2323, %v2314, %v2316
    %v2326 = vsel %vm2323, %v2316, %v2318
    %v2327 = vsel %vm2323, %v2318, %v2320
    %v2328 = vsel %vm2323, %v2320, %v2322
    %v2335 = vsel %vm2323, 0.0, %v2312
    %v2336 = vld [vmem:[%s2] sm:$0xff]
    %v2337 = vld [vmem:[%s2 + $0x8] sm:$0xff]
    %v2338 = vld [vmem:[%s2 + $0x10] sm:$0xff]
    %v2339 = vld [vmem:[%s2 + $0x18] sm:$0xff]
    %v2340 = vld [vmem:[%s2 + $0x20] sm:$0xff]
    %v2341 = vld [vmem:[%s2 + $0x28] sm:$0xff]
    %v2342 = vld [vmem:[%s2 + $0x30] sm:$0xff]
    %v2343 = vld [vmem:[%s2 + $0x38] sm:$0xff]
    %v2344 = vld [vmem:[%s2 + $0x40] sm:$0xff]
    %s2345 = scalar_lea.vmem %s3, 8
    %v2346 = vld [vmem:[%s2345] sm:$0xff]
    %2348 = vrot.lane.b32.xlu0 %v2335, 127
    %v2349 = vpop.permute.xlu0 %2348
    %2350 = vrot.lane.b32.xlu0 %v2324, 127
    %v2351 = vpop.permute.xlu0 %2350
    %2352 = vrot.lane.b32.xlu0 %v2325, 127
    %v2353 = vpop.permute.xlu0 %2352
    %2354 = vrot.lane.b32.xlu0 %v2326, 127
    %v2355 = vpop.permute.xlu0 %2354
    %2356 = vrot.lane.b32.xlu0 %v2327, 127
    %v2357 = vpop.permute.xlu0 %2356
    %2358 = vrot.lane.b32.xlu0 %v2328, 127
    %v2359 = vpop.permute.xlu0 %2358
    %v2360 = vsel %vm47, %v2349, %v2351
    %v2361 = vsel %vm47, %v2351, %v2353
    %v2362 = vsel %vm47, %v2353, %v2355
    %v2363 = vsel %vm47, %v2355, %v2357
    %v2364 = vsel %vm47, %v2357, %v2359
    %v2371 = vsel %vm47, %v2359, 0.0
    %v2373 = vsel %vm62, %v2337, 0
    %2375 = vmatprep.subr.mxu0 %v2361
    %2376 = vmatpush1.msra.mxu0 %v2360
    %2377 = vmatprep.subr.mxu0 0.0
    %2378 = vmatpush1.msra.mxu0 0.0
    %2379 = vmatprep.subr.mxu0 0.0
    %2380 = vmatpush1.msra.mxu0 0.0
    %2381 = vmatprep.subr.mxu0 0.0
    %2382 = vmatpush1.msra.mxu0 0.0
    %2383 = vmatprep.subr.mxu0 0.0
    %2384 = vmatpush1.msra.mxu0 0.0
    %2385 = vmatprep.subr.mxu0 0.0
    %2386 = vmatpush1.msra.mxu0 0.0
    %2387 = vmatprep.subr.mxu0 0.0
    %2388 = vmatpush1.msra.mxu0 0.0
    %2389 = vmatprep.subr.mxu0 0.0
    %2390 = vmatpush1.msra.mxu0 0.0
    %2391 = vmatprep.subr.mxu0 0.0
    %2392 = vmatpush1.msra.mxu0 0.0
    %2393 = vmatprep.subr.mxu0 0.0
    %2394 = vmatpush1.msra.mxu0 0.0
    %2395 = vmatprep.subr.mxu0 0.0
    %2396 = vmatpush1.msra.mxu0 0.0
    %2397 = vmatprep.subr.mxu0 0.0
    %2398 = vmatpush1.msra.mxu0 0.0
    %2399 = vmatprep.subr.mxu0 0.0
    %2400 = vmatpush1.msra.mxu0 0.0
    %2401 = vmatprep.subr.mxu0 0.0
    %2402 = vmatpush1.msra.mxu0 0.0
    %2403 = vmatprep.subr.mxu0 0.0
    %2404 = vmatpush1.msra.mxu0 0.0
    %2405 = vmatprep.subr.mxu0 0.0
    %2406 = vmatpush1.msra.mxu0 0.0
    %2407 = vmatprep.subr.mxu0 0.0
    %2408 = vmatpush1.msra.mxu0 0.0
    %2409 = vmatprep.subr.mxu0 0.0
    %2410 = vmatpush1.msra.mxu0 0.0
    %2411 = vmatprep.subr.mxu0 0.0
    %2412 = vmatpush1.msra.mxu0 0.0
    %2413 = vmatprep.subr.mxu0 0.0
    %2414 = vmatpush1.msra.mxu0 0.0
    %2415 = vmatprep.subr.mxu0 0.0
    %2416 = vmatpush1.msra.mxu0 0.0
    %2417 = vmatprep.subr.mxu0 0.0
    %2418 = vmatpush1.msra.mxu0 0.0
    %2419 = vmatprep.subr.mxu0 0.0
    %2420 = vmatpush1.msra.mxu0 0.0
    %2421 = vmatprep.subr.mxu0 0.0
    %2422 = vmatpush1.msra.mxu0 0.0
    %2423 = vmatprep.subr.mxu0 0.0
    %2424 = vmatpush1.msra.mxu0 0.0
    %2425 = vmatprep.subr.mxu0 0.0
    %2426 = vmatpush1.msra.mxu0 0.0
    %2427 = vmatprep.subr.mxu0 0.0
    %2428 = vmatpush1.msra.mxu0 0.0
    %2429 = vmatprep.subr.mxu0 0.0
    %2430 = vmatpush1.msra.mxu0 0.0
    %2431 = vmatprep.subr.mxu0 0.0
    %2432 = vmatpush1.msra.mxu0 0.0
    %2433 = vmatprep.subr.mxu0 0.0
    %2434 = vmatpush1.msra.mxu0 0.0
    %2435 = vmatprep.subr.mxu0 0.0
    %2436 = vmatpush1.msra.mxu0 0.0
    %2437 = vmatprep.subr.mxu0 0.0
    %2438 = vmatpush1.msra.mxu0 0.0
    %2439 = vmatprep.mubr.f32.mxu0 0.0
    %2440 = vmatmul.mubr.f32.gmra.mrb[0].mxu0 %v2373
    %v2441 = vpop.f32.mrb[0].mxu0
    %v2442 = vadd.f32 0.0, %v2441
    %v2443 = vpop.f32.mrb[0].mxu0
    %v2444 = vadd.f32 0.0, %v2443
    %2445 = vdwg.mxu0
    %2446 = vmatprep.subr.mxu0 %v2363
    %2447 = vmatpush1.msra.mxu0 %v2362
    %2448 = vmatprep.subr.mxu0 0.0
    %2449 = vmatpush1.msra.mxu0 0.0
    %2450 = vmatprep.subr.mxu0 0.0
    %2451 = vmatpush1.msra.mxu0 0.0
    %2452 = vmatprep.subr.mxu0 0.0
    %2453 = vmatpush1.msra.mxu0 0.0
    %2454 = vmatprep.subr.mxu0 0.0
    %2455 = vmatpush1.msra.mxu0 0.0
    %2456 = vmatprep.subr.mxu0 0.0
    %2457 = vmatpush1.msra.mxu0 0.0
    %2458 = vmatprep.subr.mxu0 0.0
    %2459 = vmatpush1.msra.mxu0 0.0
    %2460 = vmatprep.subr.mxu0 0.0
    %2461 = vmatpush1.msra.mxu0 0.0
    %2462 = vmatprep.subr.mxu0 0.0
    %2463 = vmatpush1.msra.mxu0 0.0
    %2464 = vmatprep.subr.mxu0 0.0
    %2465 = vmatpush1.msra.mxu0 0.0
    %2466 = vmatprep.subr.mxu0 0.0
    %2467 = vmatpush1.msra.mxu0 0.0
    %2468 = vmatprep.subr.mxu0 0.0
    %2469 = vmatpush1.msra.mxu0 0.0
    %2470 = vmatprep.subr.mxu0 0.0
    %2471 = vmatpush1.msra.mxu0 0.0
    %2472 = vmatprep.subr.mxu0 0.0
    %2473 = vmatpush1.msra.mxu0 0.0
    %2474 = vmatprep.subr.mxu0 0.0
    %2475 = vmatpush1.msra.mxu0 0.0
    %2476 = vmatprep.subr.mxu0 0.0
    %2477 = vmatpush1.msra.mxu0 0.0
    %2478 = vmatprep.subr.mxu0 0.0
    %2479 = vmatpush1.msra.mxu0 0.0
    %2480 = vmatprep.subr.mxu0 0.0
    %2481 = vmatpush1.msra.mxu0 0.0
    %2482 = vmatprep.subr.mxu0 0.0
    %2483 = vmatpush1.msra.mxu0 0.0
    %2484 = vmatprep.subr.mxu0 0.0
    %2485 = vmatpush1.msra.mxu0 0.0
    %2486 = vmatprep.subr.mxu0 0.0
    %2487 = vmatpush1.msra.mxu0 0.0
    %2488 = vmatprep.subr.mxu0 0.0
    %2489 = vmatpush1.msra.mxu0 0.0
    %2490 = vmatprep.subr.mxu0 0.0
    %2491 = vmatpush1.msra.mxu0 0.0
    %2492 = vmatprep.subr.mxu0 0.0
    %2493 = vmatpush1.msra.mxu0 0.0
    %2494 = vmatprep.subr.mxu0 0.0
    %2495 = vmatpush1.msra.mxu0 0.0
    %2496 = vmatprep.subr.mxu0 0.0
    %2497 = vmatpush1.msra.mxu0 0.0
    %2498 = vmatprep.subr.mxu0 0.0
    %2499 = vmatpush1.msra.mxu0 0.0
    %2500 = vmatprep.subr.mxu0 0.0
    %2501 = vmatpush1.msra.mxu0 0.0
    %2502 = vmatprep.subr.mxu0 0.0
    %2503 = vmatpush1.msra.mxu0 0.0
    %2504 = vmatprep.subr.mxu0 0.0
    %2505 = vmatpush1.msra.mxu0 0.0
    %2506 = vmatprep.subr.mxu0 0.0
    %2507 = vmatpush1.msra.mxu0 0.0
    %2508 = vmatprep.subr.mxu0 0.0
    %2509 = vmatpush1.msra.mxu0 0.0
    %2510 = vmatprep.mubr.f32.mxu0 0.0
    %2511 = vmatmul.mubr.f32.gmra.mrb[0].mxu0 %v2373
    %v2512 = vpop.f32.mrb[0].mxu0
    %v2513 = vadd.f32 0.0, %v2512
    %v2514 = vpop.f32.mrb[0].mxu0
    %v2515 = vadd.f32 0.0, %v2514
    %2516 = vdwg.mxu0
    %2517 = vmatprep.subr.mxu0 %v2371
    %2518 = vmatpush1.msra.mxu0 %v2364
    %2519 = vmatprep.subr.mxu0 0.0
    %2520 = vmatpush1.msra.mxu0 0.0
    %2521 = vmatprep.subr.mxu0 0.0
    %2522 = vmatpush1.msra.mxu0 0.0
    %2523 = vmatprep.subr.mxu0 0.0
    %2524 = vmatpush1.msra.mxu0 0.0
    %2525 = vmatprep.subr.mxu0 0.0
    %2526 = vmatpush1.msra.mxu0 0.0
    %2527 = vmatprep.subr.mxu0 0.0
    %2528 = vmatpush1.msra.mxu0 0.0
    %2529 = vmatprep.subr.mxu0 0.0
    %2530 = vmatpush1.msra.mxu0 0.0
    %2531 = vmatprep.subr.mxu0 0.0
    %2532 = vmatpush1.msra.mxu0 0.0
    %2533 = vmatprep.subr.mxu0 0.0
    %2534 = vmatpush1.msra.mxu0 0.0
    %2535 = vmatprep.subr.mxu0 0.0
    %2536 = vmatpush1.msra.mxu0 0.0
    %2537 = vmatprep.subr.mxu0 0.0
    %2538 = vmatpush1.msra.mxu0 0.0
    %2539 = vmatprep.subr.mxu0 0.0
    %2540 = vmatpush1.msra.mxu0 0.0
    %2541 = vmatprep.subr.mxu0 0.0
    %2542 = vmatpush1.msra.mxu0 0.0
    %2543 = vmatprep.subr.mxu0 0.0
    %2544 = vmatpush1.msra.mxu0 0.0
    %2545 = vmatprep.subr.mxu0 0.0
    %2546 = vmatpush1.msra.mxu0 0.0
    %2547 = vmatprep.subr.mxu0 0.0
    %2548 = vmatpush1.msra.mxu0 0.0
    %2549 = vmatprep.subr.mxu0 0.0
    %2550 = vmatpush1.msra.mxu0 0.0
    %2551 = vmatprep.subr.mxu0 0.0
    %2552 = vmatpush1.msra.mxu0 0.0
    %2553 = vmatprep.subr.mxu0 0.0
    %2554 = vmatpush1.msra.mxu0 0.0
    %2555 = vmatprep.subr.mxu0 0.0
    %2556 = vmatpush1.msra.mxu0 0.0
    %2557 = vmatprep.subr.mxu0 0.0
    %2558 = vmatpush1.msra.mxu0 0.0
    %2559 = vmatprep.subr.mxu0 0.0
    %2560 = vmatpush1.msra.mxu0 0.0
    %2561 = vmatprep.subr.mxu0 0.0
    %2562 = vmatpush1.msra.mxu0 0.0
    %2563 = vmatprep.subr.mxu0 0.0
    %2564 = vmatpush1.msra.mxu0 0.0
    %2565 = vmatprep.subr.mxu0 0.0
    %2566 = vmatpush1.msra.mxu0 0.0
    %2567 = vmatprep.subr.mxu0 0.0
    %2568 = vmatpush1.msra.mxu0 0.0
    %2569 = vmatprep.subr.mxu0 0.0
    %2570 = vmatpush1.msra.mxu0 0.0
    %2571 = vmatprep.subr.mxu0 0.0
    %2572 = vmatpush1.msra.mxu0 0.0
    %2573 = vmatprep.subr.mxu0 0.0
    %2574 = vmatpush1.msra.mxu0 0.0
    %2575 = vmatprep.subr.mxu0 0.0
    %2576 = vmatpush1.msra.mxu0 0.0
    %2577 = vmatprep.subr.mxu0 0.0
    %2578 = vmatpush1.msra.mxu0 0.0
    %2579 = vmatprep.subr.mxu0 0.0
    %2580 = vmatpush1.msra.mxu0 0.0
    %2581 = vmatprep.mubr.f32.mxu0 0.0
    %2582 = vmatmul.mubr.f32.gmra.mrb[0].mxu0 %v2373
    %v2583 = vpop.f32.mrb[0].mxu0
    %v2584 = vadd.f32 0.0, %v2583
    %v2585 = vpop.f32.mrb[0].mxu0
    %v2586 = vadd.f32 0.0, %v2585
    %2587 = vdwg.mxu0
    %v2589 = vsel %vm62, %v2336, 0
    %2591 = vmatprep.subr.mxu0 %v2324
    %2592 = vmatpush1.msra.mxu0 %v2335
    %2593 = vmatprep.subr.mxu0 0.0
    %2594 = vmatpush1.msra.mxu0 0.0
    %2595 = vmatprep.subr.mxu0 0.0
    %2596 = vmatpush1.msra.mxu0 0.0
    %2597 = vmatprep.subr.mxu0 0.0
    %2598 = vmatpush1.msra.mxu0 0.0
    %2599 = vmatprep.subr.mxu0 0.0
    %2600 = vmatpush1.msra.mxu0 0.0
    %2601 = vmatprep.subr.mxu0 0.0
    %2602 = vmatpush1.msra.mxu0 0.0
    %2603 = vmatprep.subr.mxu0 0.0
    %2604 = vmatpush1.msra.mxu0 0.0
    %2605 = vmatprep.subr.mxu0 0.0
    %2606 = vmatpush1.msra.mxu0 0.0
    %2607 = vmatprep.subr.mxu0 0.0
    %2608 = vmatpush1.msra.mxu0 0.0
    %2609 = vmatprep.subr.mxu0 0.0
    %2610 = vmatpush1.msra.mxu0 0.0
    %2611 = vmatprep.subr.mxu0 0.0
    %2612 = vmatpush1.msra.mxu0 0.0
    %2613 = vmatprep.subr.mxu0 0.0
    %2614 = vmatpush1.msra.mxu0 0.0
    %2615 = vmatprep.subr.mxu0 0.0
    %2616 = vmatpush1.msra.mxu0 0.0
    %2617 = vmatprep.subr.mxu0 0.0
    %2618 = vmatpush1.msra.mxu0 0.0
    %2619 = vmatprep.subr.mxu0 0.0
    %2620 = vmatpush1.msra.mxu0 0.0
    %2621 = vmatprep.subr.mxu0 0.0
    %2622 = vmatpush1.msra.mxu0 0.0
    %2623 = vmatprep.subr.mxu0 0.0
    %2624 = vmatpush1.msra.mxu0 0.0
    %2625 = vmatprep.subr.mxu0 0.0
    %2626 = vmatpush1.msra.mxu0 0.0
    %2627 = vmatprep.subr.mxu0 0.0
    %2628 = vmatpush1.msra.mxu0 0.0
    %2629 = vmatprep.subr.mxu0 0.0
    %2630 = vmatpush1.msra.mxu0 0.0
    %2631 = vmatprep.subr.mxu0 0.0
    %2632 = vmatpush1.msra.mxu0 0.0
    %2633 = vmatprep.subr.mxu0 0.0
    %2634 = vmatpush1.msra.mxu0 0.0
    %2635 = vmatprep.subr.mxu0 0.0
    %2636 = vmatpush1.msra.mxu0 0.0
    %2637 = vmatprep.subr.mxu0 0.0
    %2638 = vmatpush1.msra.mxu0 0.0
    %2639 = vmatprep.subr.mxu0 0.0
    %2640 = vmatpush1.msra.mxu0 0.0
    %2641 = vmatprep.subr.mxu0 0.0
    %2642 = vmatpush1.msra.mxu0 0.0
    %2643 = vmatprep.subr.mxu0 0.0
    %2644 = vmatpush1.msra.mxu0 0.0
    %2645 = vmatprep.subr.mxu0 0.0
    %2646 = vmatpush1.msra.mxu0 0.0
    %2647 = vmatprep.subr.mxu0 0.0
    %2648 = vmatpush1.msra.mxu0 0.0
    %2649 = vmatprep.subr.mxu0 0.0
    %2650 = vmatpush1.msra.mxu0 0.0
    %2651 = vmatprep.subr.mxu0 0.0
    %2652 = vmatpush1.msra.mxu0 0.0
    %2653 = vmatprep.subr.mxu0 0.0
    %2654 = vmatpush1.msra.mxu0 0.0
    %2655 = vmatprep.mubr.f32.mxu0 0.0
    %2656 = vmatmul.mubr.f32.gmra.mrb[0].mxu0 %v2589
    %v2657 = vpop.f32.mrb[0].mxu0
    %v2658 = vadd.f32 %v2442, %v2657
    %v2659 = vpop.f32.mrb[0].mxu0
    %v2660 = vadd.f32 %v2444, %v2659
    %2661 = vdwg.mxu0
    %2662 = vmatprep.subr.mxu0 %v2326
    %2663 = vmatpush1.msra.mxu0 %v2325
    %2664 = vmatprep.subr.mxu0 0.0
    %2665 = vmatpush1.msra.mxu0 0.0
    %2666 = vmatprep.subr.mxu0 0.0
    %2667 = vmatpush1.msra.mxu0 0.0
    %2668 = vmatprep.subr.mxu0 0.0
    %2669 = vmatpush1.msra.mxu0 0.0
    %2670 = vmatprep.subr.mxu0 0.0
    %2671 = vmatpush1.msra.mxu0 0.0
    %2672 = vmatprep.subr.mxu0 0.0
    %2673 = vmatpush1.msra.mxu0 0.0
    %2674 = vmatprep.subr.mxu0 0.0
    %2675 = vmatpush1.msra.mxu0 0.0
    %2676 = vmatprep.subr.mxu0 0.0
    %2677 = vmatpush1.msra.mxu0 0.0
    %2678 = vmatprep.subr.mxu0 0.0
    %2679 = vmatpush1.msra.mxu0 0.0
    %2680 = vmatprep.subr.mxu0 0.0
    %2681 = vmatpush1.msra.mxu0 0.0
    %2682 = vmatprep.subr.mxu0 0.0
    %2683 = vmatpush1.msra.mxu0 0.0
    %2684 = vmatprep.subr.mxu0 0.0
    %2685 = vmatpush1.msra.mxu0 0.0
    %2686 = vmatprep.subr.mxu0 0.0
    %2687 = vmatpush1.msra.mxu0 0.0
    %2688 = vmatprep.subr.mxu0 0.0
    %2689 = vmatpush1.msra.mxu0 0.0
    %2690 = vmatprep.subr.mxu0 0.0
    %2691 = vmatpush1.msra.mxu0 0.0
    %2692 = vmatprep.subr.mxu0 0.0
    %2693 = vmatpush1.msra.mxu0 0.0
    %2694 = vmatprep.subr.mxu0 0.0
    %2695 = vmatpush1.msra.mxu0 0.0
    %2696 = vmatprep.subr.mxu0 0.0
    %2697 = vmatpush1.msra.mxu0 0.0
    %2698 = vmatprep.subr.mxu0 0.0
    %2699 = vmatpush1.msra.mxu0 0.0
    %2700 = vmatprep.subr.mxu0 0.0
    %2701 = vmatpush1.msra.mxu0 0.0
    %2702 = vmatprep.subr.mxu0 0.0
    %2703 = vmatpush1.msra.mxu0 0.0
    %2704 = vmatprep.subr.mxu0 0.0
    %2705 = vmatpush1.msra.mxu0 0.0
    %2706 = vmatprep.subr.mxu0 0.0
    %2707 = vmatpush1.msra.mxu0 0.0
    %2708 = vmatprep.subr.mxu0 0.0
    %2709 = vmatpush1.msra.mxu0 0.0
    %2710 = vmatprep.subr.mxu0 0.0
    %2711 = vmatpush1.msra.mxu0 0.0
    %2712 = vmatprep.subr.mxu0 0.0
    %2713 = vmatpush1.msra.mxu0 0.0
    %2714 = vmatprep.subr.mxu0 0.0
    %2715 = vmatpush1.msra.mxu0 0.0
    %2716 = vmatprep.subr.mxu0 0.0
    %2717 = vmatpush1.msra.mxu0 0.0
    %2718 = vmatprep.subr.mxu0 0.0
    %2719 = vmatpush1.msra.mxu0 0.0
    %2720 = vmatprep.subr.mxu0 0.0
    %2721 = vmatpush1.msra.mxu0 0.0
    %2722 = vmatprep.subr.mxu0 0.0
    %2723 = vmatpush1.msra.mxu0 0.0
    %2724 = vmatprep.subr.mxu0 0.0
    %2725 = vmatpush1.msra.mxu0 0.0
    %2726 = vmatprep.mubr.f32.mxu0 0.0
    %2727 = vmatmul.mubr.f32.gmra.mrb[0].mxu0 %v2589
    %v2728 = vpop.f32.mrb[0].mxu0
    %v2729 = vadd.f32 %v2513, %v2728
    %v2730 = vpop.f32.mrb[0].mxu0
    %v2731 = vadd.f32 %v2515, %v2730
    %2732 = vdwg.mxu0
    %2733 = vmatprep.subr.mxu0 %v2328
    %2734 = vmatpush1.msra.mxu0 %v2327
    %2735 = vmatprep.subr.mxu0 0.0
    %2736 = vmatpush1.msra.mxu0 0.0
    %2737 = vmatprep.subr.mxu0 0.0
    %2738 = vmatpush1.msra.mxu0 0.0
    %2739 = vmatprep.subr.mxu0 0.0
    %2740 = vmatpush1.msra.mxu0 0.0
    %2741 = vmatprep.subr.mxu0 0.0
    %2742 = vmatpush1.msra.mxu0 0.0
    %2743 = vmatprep.subr.mxu0 0.0
    %2744 = vmatpush1.msra.mxu0 0.0
    %2745 = vmatprep.subr.mxu0 0.0
    %2746 = vmatpush1.msra.mxu0 0.0
    %2747 = vmatprep.subr.mxu0 0.0
    %2748 = vmatpush1.msra.mxu0 0.0
    %2749 = vmatprep.subr.mxu0 0.0
    %2750 = vmatpush1.msra.mxu0 0.0
    %2751 = vmatprep.subr.mxu0 0.0
    %2752 = vmatpush1.msra.mxu0 0.0
    %2753 = vmatprep.subr.mxu0 0.0
    %2754 = vmatpush1.msra.mxu0 0.0
    %2755 = vmatprep.subr.mxu0 0.0
    %2756 = vmatpush1.msra.mxu0 0.0
    %2757 = vmatprep.subr.mxu0 0.0
    %2758 = vmatpush1.msra.mxu0 0.0
    %2759 = vmatprep.subr.mxu0 0.0
    %2760 = vmatpush1.msra.mxu0 0.0
    %2761 = vmatprep.subr.mxu0 0.0
    %2762 = vmatpush1.msra.mxu0 0.0
    %2763 = vmatprep.subr.mxu0 0.0
    %2764 = vmatpush1.msra.mxu0 0.0
    %2765 = vmatprep.subr.mxu0 0.0
    %2766 = vmatpush1.msra.mxu0 0.0
    %2767 = vmatprep.subr.mxu0 0.0
    %2768 = vmatpush1.msra.mxu0 0.0
    %2769 = vmatprep.subr.mxu0 0.0
    %2770 = vmatpush1.msra.mxu0 0.0
    %2771 = vmatprep.subr.mxu0 0.0
    %2772 = vmatpush1.msra.mxu0 0.0
    %2773 = vmatprep.subr.mxu0 0.0
    %2774 = vmatpush1.msra.mxu0 0.0
    %2775 = vmatprep.subr.mxu0 0.0
    %2776 = vmatpush1.msra.mxu0 0.0
    %2777 = vmatprep.subr.mxu0 0.0
    %2778 = vmatpush1.msra.mxu0 0.0
    %2779 = vmatprep.subr.mxu0 0.0
    %2780 = vmatpush1.msra.mxu0 0.0
    %2781 = vmatprep.subr.mxu0 0.0
    %2782 = vmatpush1.msra.mxu0 0.0
    %2783 = vmatprep.subr.mxu0 0.0
    %2784 = vmatpush1.msra.mxu0 0.0
    %2785 = vmatprep.subr.mxu0 0.0
    %2786 = vmatpush1.msra.mxu0 0.0
    %2787 = vmatprep.subr.mxu0 0.0
    %2788 = vmatpush1.msra.mxu0 0.0
    %2789 = vmatprep.subr.mxu0 0.0
    %2790 = vmatpush1.msra.mxu0 0.0
    %2791 = vmatprep.subr.mxu0 0.0
    %2792 = vmatpush1.msra.mxu0 0.0
    %2793 = vmatprep.subr.mxu0 0.0
    %2794 = vmatpush1.msra.mxu0 0.0
    %2795 = vmatprep.subr.mxu0 0.0
    %2796 = vmatpush1.msra.mxu0 0.0
    %2797 = vmatprep.mubr.f32.mxu0 0.0
    %2798 = vmatmul.mubr.f32.gmra.mrb[0].mxu0 %v2589
    %v2799 = vpop.f32.mrb[0].mxu0
    %v2800 = vadd.f32 %v2584, %v2799
    %v2801 = vpop.f32.mrb[0].mxu0
    %v2802 = vadd.f32 %v2586, %v2801
    %2803 = vdwg.mxu0
    %2804 = vrot.lane.b32.xlu0 %v2335, 126
    %v2805 = vpop.permute.xlu0 %2804
    %2806 = vrot.lane.b32.xlu0 %v2324, 126
    %v2807 = vpop.permute.xlu0 %2806
    %2808 = vrot.lane.b32.xlu0 %v2325, 126
    %v2809 = vpop.permute.xlu0 %2808
    %2810 = vrot.lane.b32.xlu0 %v2326, 126
    %v2811 = vpop.permute.xlu0 %2810
    %2812 = vrot.lane.b32.xlu0 %v2327, 126
    %v2813 = vpop.permute.xlu0 %2812
    %2814 = vrot.lane.b32.xlu0 %v2328, 126
    %v2815 = vpop.permute.xlu0 %2814
    %v2816 = vsel %vm507, %v2805, %v2807
    %v2817 = vsel %vm507, %v2807, %v2809
    %v2818 = vsel %vm507, %v2809, %v2811
    %v2819 = vsel %vm507, %v2811, %v2813
    %v2820 = vsel %vm507, %v2813, %v2815
    %v2827 = vsel %vm507, %v2815, 0.0
    %v2829 = vsel %vm62, %v2338, 0
    %2831 = vmatprep.subr.mxu0 %v2817
    %2832 = vmatpush1.msra.mxu0 %v2816
    %2833 = vmatprep.subr.mxu0 0.0
    %2834 = vmatpush1.msra.mxu0 0.0
    %2835 = vmatprep.subr.mxu0 0.0
    %2836 = vmatpush1.msra.mxu0 0.0
    %2837 = vmatprep.subr.mxu0 0.0
    %2838 = vmatpush1.msra.mxu0 0.0
    %2839 = vmatprep.subr.mxu0 0.0
    %2840 = vmatpush1.msra.mxu0 0.0
    %2841 = vmatprep.subr.mxu0 0.0
    %2842 = vmatpush1.msra.mxu0 0.0
    %2843 = vmatprep.subr.mxu0 0.0
    %2844 = vmatpush1.msra.mxu0 0.0
    %2845 = vmatprep.subr.mxu0 0.0
    %2846 = vmatpush1.msra.mxu0 0.0
    %2847 = vmatprep.subr.mxu0 0.0
    %2848 = vmatpush1.msra.mxu0 0.0
    %2849 = vmatprep.subr.mxu0 0.0
    %2850 = vmatpush1.msra.mxu0 0.0
    %2851 = vmatprep.subr.mxu0 0.0
    %2852 = vmatpush1.msra.mxu0 0.0
    %2853 = vmatprep.subr.mxu0 0.0
    %2854 = vmatpush1.msra.mxu0 0.0
    %2855 = vmatprep.subr.mxu0 0.0
    %2856 = vmatpush1.msra.mxu0 0.0
    %2857 = vmatprep.subr.mxu0 0.0
    %2858 = vmatpush1.msra.mxu0 0.0
    %2859 = vmatprep.subr.mxu0 0.0
    %2860 = vmatpush1.msra.mxu0 0.0
    %2861 = vmatprep.subr.mxu0 0.0
    %2862 = vmatpush1.msra.mxu0 0.0
    %2863 = vmatprep.subr.mxu0 0.0
    %2864 = vmatpush1.msra.mxu0 0.0
    %2865 = vmatprep.subr.mxu0 0.0
    %2866 = vmatpush1.msra.mxu0 0.0
    %2867 = vmatprep.subr.mxu0 0.0
    %2868 = vmatpush1.msra.mxu0 0.0
    %2869 = vmatprep.subr.mxu0 0.0
    %2870 = vmatpush1.msra.mxu0 0.0
    %2871 = vmatprep.subr.mxu0 0.0
    %2872 = vmatpush1.msra.mxu0 0.0
    %2873 = vmatprep.subr.mxu0 0.0
    %2874 = vmatpush1.msra.mxu0 0.0
    %2875 = vmatprep.subr.mxu0 0.0
    %2876 = vmatpush1.msra.mxu0 0.0
    %2877 = vmatprep.subr.mxu0 0.0
    %2878 = vmatpush1.msra.mxu0 0.0
    %2879 = vmatprep.subr.mxu0 0.0
    %2880 = vmatpush1.msra.mxu0 0.0
    %2881 = vmatprep.subr.mxu0 0.0
    %2882 = vmatpush1.msra.mxu0 0.0
    %2883 = vmatprep.subr.mxu0 0.0
    %2884 = vmatpush1.msra.mxu0 0.0
    %2885 = vmatprep.subr.mxu0 0.0
    %2886 = vmatpush1.msra.mxu0 0.0
    %2887 = vmatprep.subr.mxu0 0.0
    %2888 = vmatpush1.msra.mxu0 0.0
    %2889 = vmatprep.subr.mxu0 0.0
    %2890 = vmatpush1.msra.mxu0 0.0
    %2891 = vmatprep.subr.mxu0 0.0
    %2892 = vmatpush1.msra.mxu0 0.0
    %2893 = vmatprep.subr.mxu0 0.0
    %2894 = vmatpush1.msra.mxu0 0.0
    %2895 = vmatprep.mubr.f32.mxu0 0.0
    %2896 = vmatmul.mubr.f32.gmra.mrb[0].mxu0 %v2829
    %v2897 = vpop.f32.mrb[0].mxu0
    %v2898 = vadd.f32 0.0, %v2897
    %v2899 = vpop.f32.mrb[0].mxu0
    %v2900 = vadd.f32 0.0, %v2899
    %2901 = vdwg.mxu0
    %2902 = vmatprep.subr.mxu0 %v2819
    %2903 = vmatpush1.msra.mxu0 %v2818
    %2904 = vmatprep.subr.mxu0 0.0
    %2905 = vmatpush1.msra.mxu0 0.0
    %2906 = vmatprep.subr.mxu0 0.0
    %2907 = vmatpush1.msra.mxu0 0.0
    %2908 = vmatprep.subr.mxu0 0.0
    %2909 = vmatpush1.msra.mxu0 0.0
    %2910 = vmatprep.subr.mxu0 0.0
    %2911 = vmatpush1.msra.mxu0 0.0
    %2912 = vmatprep.subr.mxu0 0.0
    %2913 = vmatpush1.msra.mxu0 0.0
    %2914 = vmatprep.subr.mxu0 0.0
    %2915 = vmatpush1.msra.mxu0 0.0
    %2916 = vmatprep.subr.mxu0 0.0
    %2917 = vmatpush1.msra.mxu0 0.0
    %2918 = vmatprep.subr.mxu0 0.0
    %2919 = vmatpush1.msra.mxu0 0.0
    %2920 = vmatprep.subr.mxu0 0.0
    %2921 = vmatpush1.msra.mxu0 0.0
    %2922 = vmatprep.subr.mxu0 0.0
    %2923 = vmatpush1.msra.mxu0 0.0
    %2924 = vmatprep.subr.mxu0 0.0
    %2925 = vmatpush1.msra.mxu0 0.0
    %2926 = vmatprep.subr.mxu0 0.0
    %2927 = vmatpush1.msra.mxu0 0.0
    %2928 = vmatprep.subr.mxu0 0.0
    %2929 = vmatpush1.msra.mxu0 0.0
    %2930 = vmatprep.subr.mxu0 0.0
    %2931 = vmatpush1.msra.mxu0 0.0
    %2932 = vmatprep.subr.mxu0 0.0
    %2933 = vmatpush1.msra.mxu0 0.0
    %2934 = vmatprep.subr.mxu0 0.0
    %2935 = vmatpush1.msra.mxu0 0.0
    %2936 = vmatprep.subr.mxu0 0.0
    %2937 = vmatpush1.msra.mxu0 0.0
    %2938 = vmatprep.subr.mxu0 0.0
    %2939 = vmatpush1.msra.mxu0 0.0
    %2940 = vmatprep.subr.mxu0 0.0
    %2941 = vmatpush1.msra.mxu0 0.0
    %2942 = vmatprep.subr.mxu0 0.0
    %2943 = vmatpush1.msra.mxu0 0.0
    %2944 = vmatprep.subr.mxu0 0.0
    %2945 = vmatpush1.msra.mxu0 0.0
    %2946 = vmatprep.subr.mxu0 0.0
    %2947 = vmatpush1.msra.mxu0 0.0
    %2948 = vmatprep.subr.mxu0 0.0
    %2949 = vmatpush1.msra.mxu0 0.0
    %2950 = vmatprep.subr.mxu0 0.0
    %2951 = vmatpush1.msra.mxu0 0.0
    %2952 = vmatprep.subr.mxu0 0.0
    %2953 = vmatpush1.msra.mxu0 0.0
    %2954 = vmatprep.subr.mxu0 0.0
    %2955 = vmatpush1.msra.mxu0 0.0
    %2956 = vmatprep.subr.mxu0 0.0
    %2957 = vmatpush1.msra.mxu0 0.0
    %2958 = vmatprep.subr.mxu0 0.0
    %2959 = vmatpush1.msra.mxu0 0.0
    %2960 = vmatprep.subr.mxu0 0.0
    %2961 = vmatpush1.msra.mxu0 0.0
    %2962 = vmatprep.subr.mxu0 0.0
    %2963 = vmatpush1.msra.mxu0 0.0
    %2964 = vmatprep.subr.mxu0 0.0
    %2965 = vmatpush1.msra.mxu0 0.0
    %2966 = vmatprep.mubr.f32.mxu0 0.0
    %2967 = vmatmul.mubr.f32.gmra.mrb[0].mxu0 %v2829
    %v2968 = vpop.f32.mrb[0].mxu0
    %v2969 = vadd.f32 0.0, %v2968
    %v2970 = vpop.f32.mrb[0].mxu0
    %v2971 = vadd.f32 0.0, %v2970
    %2972 = vdwg.mxu0
    %2973 = vmatprep.subr.mxu0 %v2827
    %2974 = vmatpush1.msra.mxu0 %v2820
    %2975 = vmatprep.subr.mxu0 0.0
    %2976 = vmatpush1.msra.mxu0 0.0
    %2977 = vmatprep.subr.mxu0 0.0
    %2978 = vmatpush1.msra.mxu0 0.0
    %2979 = vmatprep.subr.mxu0 0.0
    %2980 = vmatpush1.msra.mxu0 0.0
    %2981 = vmatprep.subr.mxu0 0.0
    %2982 = vmatpush1.msra.mxu0 0.0
    %2983 = vmatprep.subr.mxu0 0.0
    %2984 = vmatpush1.msra.mxu0 0.0
    %2985 = vmatprep.subr.mxu0 0.0
    %2986 = vmatpush1.msra.mxu0 0.0
    %2987 = vmatprep.subr.mxu0 0.0
    %2988 = vmatpush1.msra.mxu0 0.0
    %2989 = vmatprep.subr.mxu0 0.0
    %2990 = vmatpush1.msra.mxu0 0.0
    %2991 = vmatprep.subr.mxu0 0.0
    %2992 = vmatpush1.msra.mxu0 0.0
    %2993 = vmatprep.subr.mxu0 0.0
    %2994 = vmatpush1.msra.mxu0 0.0
    %2995 = vmatprep.subr.mxu0 0.0
    %2996 = vmatpush1.msra.mxu0 0.0
    %2997 = vmatprep.subr.mxu0 0.0
    %2998 = vmatpush1.msra.mxu0 0.0
    %2999 = vmatprep.subr.mxu0 0.0
    %3000 = vmatpush1.msra.mxu0 0.0
    %3001 = vmatprep.subr.mxu0 0.0
    %3002 = vmatpush1.msra.mxu0 0.0
    %3003 = vmatprep.subr.mxu0 0.0
    %3004 = vmatpush1.msra.mxu0 0.0
    %3005 = vmatprep.subr.mxu0 0.0
    %3006 = vmatpush1.msra.mxu0 0.0
    %3007 = vmatprep.subr.mxu0 0.0
    %3008 = vmatpush1.msra.mxu0 0.0
    %3009 = vmatprep.subr.mxu0 0.0
    %3010 = vmatpush1.msra.mxu0 0.0
    %3011 = vmatprep.subr.mxu0 0.0
    %3012 = vmatpush1.msra.mxu0 0.0
    %3013 = vmatprep.subr.mxu0 0.0
    %3014 = vmatpush1.msra.mxu0 0.0
    %3015 = vmatprep.subr.mxu0 0.0
    %3016 = vmatpush1.msra.mxu0 0.0
    %3017 = vmatprep.subr.mxu0 0.0
    %3018 = vmatpush1.msra.mxu0 0.0
    %3019 = vmatprep.subr.mxu0 0.0
    %3020 = vmatpush1.msra.mxu0 0.0
    %3021 = vmatprep.subr.mxu0 0.0
    %3022 = vmatpush1.msra.mxu0 0.0
    %3023 = vmatprep.subr.mxu0 0.0
    %3024 = vmatpush1.msra.mxu0 0.0
    %3025 = vmatprep.subr.mxu0 0.0
    %3026 = vmatpush1.msra.mxu0 0.0
    %3027 = vmatprep.subr.mxu0 0.0
    %3028 = vmatpush1.msra.mxu0 0.0
    %3029 = vmatprep.subr.mxu0 0.0
    %3030 = vmatpush1.msra.mxu0 0.0
    %3031 = vmatprep.subr.mxu0 0.0
    %3032 = vmatpush1.msra.mxu0 0.0
    %3033 = vmatprep.subr.mxu0 0.0
    %3034 = vmatpush1.msra.mxu0 0.0
    %3035 = vmatprep.subr.mxu0 0.0
    %3036 = vmatpush1.msra.mxu0 0.0
    %3037 = vmatprep.mubr.f32.mxu0 0.0
    %3038 = vmatmul.mubr.f32.gmra.mrb[0].mxu0 %v2829
    %v3039 = vpop.f32.mrb[0].mxu0
    %v3040 = vadd.f32 0.0, %v3039
    %v3041 = vpop.f32.mrb[0].mxu0
    %v3042 = vadd.f32 0.0, %v3041
    %3043 = vdwg.mxu0
    %v3044 = vadd.f32 %v2658, %v2898
    %v3045 = vadd.f32 %v2660, %v2900
    %v3046 = vadd.f32 %v2729, %v2969
    %v3047 = vadd.f32 %v2731, %v2971
    %v3048 = vadd.f32 %v2800, %v3040
    %v3049 = vadd.f32 %v2802, %v3042
    %3050 = vrot.lane.b32.xlu0 %v2335, 110
    %v3051 = vpop.permute.xlu0 %3050
    %3052 = vrot.lane.b32.xlu0 %v2324, 110
    %v3053 = vpop.permute.xlu0 %3052
    %3054 = vrot.lane.b32.xlu0 %v2325, 110
    %v3055 = vpop.permute.xlu0 %3054
    %3056 = vrot.lane.b32.xlu0 %v2326, 110
    %v3057 = vpop.permute.xlu0 %3056
    %3058 = vrot.lane.b32.xlu0 %v2327, 110
    %v3059 = vpop.permute.xlu0 %3058
    %3060 = vrot.lane.b32.xlu0 %v2328, 110
    %v3061 = vpop.permute.xlu0 %3060
    %v3062 = vsel %vm756, %v3051, %v3053
    %v3063 = vsel %vm756, %v3053, %v3055
    %v3064 = vsel %vm756, %v3055, %v3057
    %v3065 = vsel %vm756, %v3057, %v3059
    %v3066 = vsel %vm756, %v3059, %v3061
    %v3073 = vsel %vm756, %v3061, 0.0
    %v3075 = vsel %vm62, %v2339, 0
    %3077 = vmatprep.subr.mxu0 %v3063
    %3078 = vmatpush1.msra.mxu0 %v3062
    %3079 = vmatprep.subr.mxu0 0.0
    %3080 = vmatpush1.msra.mxu0 0.0
    %3081 = vmatprep.subr.mxu0 0.0
    %3082 = vmatpush1.msra.mxu0 0.0
    %3083 = vmatprep.subr.mxu0 0.0
    %3084 = vmatpush1.msra.mxu0 0.0
    %3085 = vmatprep.subr.mxu0 0.0
    %3086 = vmatpush1.msra.mxu0 0.0
    %3087 = vmatprep.subr.mxu0 0.0
    %3088 = vmatpush1.msra.mxu0 0.0
    %3089 = vmatprep.subr.mxu0 0.0
    %3090 = vmatpush1.msra.mxu0 0.0
    %3091 = vmatprep.subr.mxu0 0.0
    %3092 = vmatpush1.msra.mxu0 0.0
    %3093 = vmatprep.subr.mxu0 0.0
    %3094 = vmatpush1.msra.mxu0 0.0
    %3095 = vmatprep.subr.mxu0 0.0
    %3096 = vmatpush1.msra.mxu0 0.0
    %3097 = vmatprep.subr.mxu0 0.0
    %3098 = vmatpush1.msra.mxu0 0.0
    %3099 = vmatprep.subr.mxu0 0.0
    %3100 = vmatpush1.msra.mxu0 0.0
    %3101 = vmatprep.subr.mxu0 0.0
    %3102 = vmatpush1.msra.mxu0 0.0
    %3103 = vmatprep.subr.mxu0 0.0
    %3104 = vmatpush1.msra.mxu0 0.0
    %3105 = vmatprep.subr.mxu0 0.0
    %3106 = vmatpush1.msra.mxu0 0.0
    %3107 = vmatprep.subr.mxu0 0.0
    %3108 = vmatpush1.msra.mxu0 0.0
    %3109 = vmatprep.subr.mxu0 0.0
    %3110 = vmatpush1.msra.mxu0 0.0
    %3111 = vmatprep.subr.mxu0 0.0
    %3112 = vmatpush1.msra.mxu0 0.0
    %3113 = vmatprep.subr.mxu0 0.0
    %3114 = vmatpush1.msra.mxu0 0.0
    %3115 = vmatprep.subr.mxu0 0.0
    %3116 = vmatpush1.msra.mxu0 0.0
    %3117 = vmatprep.subr.mxu0 0.0
    %3118 = vmatpush1.msra.mxu0 0.0
    %3119 = vmatprep.subr.mxu0 0.0
    %3120 = vmatpush1.msra.mxu0 0.0
    %3121 = vmatprep.subr.mxu0 0.0
    %3122 = vmatpush1.msra.mxu0 0.0
    %3123 = vmatprep.subr.mxu0 0.0
    %3124 = vmatpush1.msra.mxu0 0.0
    %3125 = vmatprep.subr.mxu0 0.0
    %3126 = vmatpush1.msra.mxu0 0.0
    %3127 = vmatprep.subr.mxu0 0.0
    %3128 = vmatpush1.msra.mxu0 0.0
    %3129 = vmatprep.subr.mxu0 0.0
    %3130 = vmatpush1.msra.mxu0 0.0
    %3131 = vmatprep.subr.mxu0 0.0
    %3132 = vmatpush1.msra.mxu0 0.0
    %3133 = vmatprep.subr.mxu0 0.0
    %3134 = vmatpush1.msra.mxu0 0.0
    %3135 = vmatprep.subr.mxu0 0.0
    %3136 = vmatpush1.msra.mxu0 0.0
    %3137 = vmatprep.subr.mxu0 0.0
    %3138 = vmatpush1.msra.mxu0 0.0
    %3139 = vmatprep.subr.mxu0 0.0
    %3140 = vmatpush1.msra.mxu0 0.0
    %3141 = vmatprep.mubr.f32.mxu0 0.0
    %3142 = vmatmul.mubr.f32.gmra.mrb[0].mxu0 %v3075
    %v3143 = vpop.f32.mrb[0].mxu0
    %v3144 = vadd.f32 0.0, %v3143
    %v3145 = vpop.f32.mrb[0].mxu0
    %v3146 = vadd.f32 0.0, %v3145
    %3147 = vdwg.mxu0
    %3148 = vmatprep.subr.mxu0 %v3065
    %3149 = vmatpush1.msra.mxu0 %v3064
    %3150 = vmatprep.subr.mxu0 0.0
    %3151 = vmatpush1.msra.mxu0 0.0
    %3152 = vmatprep.subr.mxu0 0.0
    %3153 = vmatpush1.msra.mxu0 0.0
    %3154 = vmatprep.subr.mxu0 0.0
    %3155 = vmatpush1.msra.mxu0 0.0
    %3156 = vmatprep.subr.mxu0 0.0
    %3157 = vmatpush1.msra.mxu0 0.0
    %3158 = vmatprep.subr.mxu0 0.0
    %3159 = vmatpush1.msra.mxu0 0.0
    %3160 = vmatprep.subr.mxu0 0.0
    %3161 = vmatpush1.msra.mxu0 0.0
    %3162 = vmatprep.subr.mxu0 0.0
    %3163 = vmatpush1.msra.mxu0 0.0
    %3164 = vmatprep.subr.mxu0 0.0
    %3165 = vmatpush1.msra.mxu0 0.0
    %3166 = vmatprep.subr.mxu0 0.0
    %3167 = vmatpush1.msra.mxu0 0.0
    %3168 = vmatprep.subr.mxu0 0.0
    %3169 = vmatpush1.msra.mxu0 0.0
    %3170 = vmatprep.subr.mxu0 0.0
    %3171 = vmatpush1.msra.mxu0 0.0
    %3172 = vmatprep.subr.mxu0 0.0
    %3173 = vmatpush1.msra.mxu0 0.0
    %3174 = vmatprep.subr.mxu0 0.0
    %3175 = vmatpush1.msra.mxu0 0.0
    %3176 = vmatprep.subr.mxu0 0.0
    %3177 = vmatpush1.msra.mxu0 0.0
    %3178 = vmatprep.subr.mxu0 0.0
    %3179 = vmatpush1.msra.mxu0 0.0
    %3180 = vmatprep.subr.mxu0 0.0
    %3181 = vmatpush1.msra.mxu0 0.0
    %3182 = vmatprep.subr.mxu0 0.0
    %3183 = vmatpush1.msra.mxu0 0.0
    %3184 = vmatprep.subr.mxu0 0.0
    %3185 = vmatpush1.msra.mxu0 0.0
    %3186 = vmatprep.subr.mxu0 0.0
    %3187 = vmatpush1.msra.mxu0 0.0
    %3188 = vmatprep.subr.mxu0 0.0
    %3189 = vmatpush1.msra.mxu0 0.0
    %3190 = vmatprep.subr.mxu0 0.0
    %3191 = vmatpush1.msra.mxu0 0.0
    %3192 = vmatprep.subr.mxu0 0.0
    %3193 = vmatpush1.msra.mxu0 0.0
    %3194 = vmatprep.subr.mxu0 0.0
    %3195 = vmatpush1.msra.mxu0 0.0
    %3196 = vmatprep.subr.mxu0 0.0
    %3197 = vmatpush1.msra.mxu0 0.0
    %3198 = vmatprep.subr.mxu0 0.0
    %3199 = vmatpush1.msra.mxu0 0.0
    %3200 = vmatprep.subr.mxu0 0.0
    %3201 = vmatpush1.msra.mxu0 0.0
    %3202 = vmatprep.subr.mxu0 0.0
    %3203 = vmatpush1.msra.mxu0 0.0
    %3204 = vmatprep.subr.mxu0 0.0
    %3205 = vmatpush1.msra.mxu0 0.0
    %3206 = vmatprep.subr.mxu0 0.0
    %3207 = vmatpush1.msra.mxu0 0.0
    %3208 = vmatprep.subr.mxu0 0.0
    %3209 = vmatpush1.msra.mxu0 0.0
    %3210 = vmatprep.subr.mxu0 0.0
    %3211 = vmatpush1.msra.mxu0 0.0
    %3212 = vmatprep.mubr.f32.mxu0 0.0
    %3213 = vmatmul.mubr.f32.gmra.mrb[0].mxu0 %v3075
    %v3214 = vpop.f32.mrb[0].mxu0
    %v3215 = vadd.f32 0.0, %v3214
    %v3216 = vpop.f32.mrb[0].mxu0
    %v3217 = vadd.f32 0.0, %v3216
    %3218 = vdwg.mxu0
    %3219 = vmatprep.subr.mxu0 %v3073
    %3220 = vmatpush1.msra.mxu0 %v3066
    %3221 = vmatprep.subr.mxu0 0.0
    %3222 = vmatpush1.msra.mxu0 0.0
    %3223 = vmatprep.subr.mxu0 0.0
    %3224 = vmatpush1.msra.mxu0 0.0
    %3225 = vmatprep.subr.mxu0 0.0
    %3226 = vmatpush1.msra.mxu0 0.0
    %3227 = vmatprep.subr.mxu0 0.0
    %3228 = vmatpush1.msra.mxu0 0.0
    %3229 = vmatprep.subr.mxu0 0.0
    %3230 = vmatpush1.msra.mxu0 0.0
    %3231 = vmatprep.subr.mxu0 0.0
    %3232 = vmatpush1.msra.mxu0 0.0
    %3233 = vmatprep.subr.mxu0 0.0
    %3234 = vmatpush1.msra.mxu0 0.0
    %3235 = vmatprep.subr.mxu0 0.0
    %3236 = vmatpush1.msra.mxu0 0.0
    %3237 = vmatprep.subr.mxu0 0.0
    %3238 = vmatpush1.msra.mxu0 0.0
    %3239 = vmatprep.subr.mxu0 0.0
    %3240 = vmatpush1.msra.mxu0 0.0
    %3241 = vmatprep.subr.mxu0 0.0
    %3242 = vmatpush1.msra.mxu0 0.0
    %3243 = vmatprep.subr.mxu0 0.0
    %3244 = vmatpush1.msra.mxu0 0.0
    %3245 = vmatprep.subr.mxu0 0.0
    %3246 = vmatpush1.msra.mxu0 0.0
    %3247 = vmatprep.subr.mxu0 0.0
    %3248 = vmatpush1.msra.mxu0 0.0
    %3249 = vmatprep.subr.mxu0 0.0
    %3250 = vmatpush1.msra.mxu0 0.0
    %3251 = vmatprep.subr.mxu0 0.0
    %3252 = vmatpush1.msra.mxu0 0.0
    %3253 = vmatprep.subr.mxu0 0.0
    %3254 = vmatpush1.msra.mxu0 0.0
    %3255 = vmatprep.subr.mxu0 0.0
    %3256 = vmatpush1.msra.mxu0 0.0
    %3257 = vmatprep.subr.mxu0 0.0
    %3258 = vmatpush1.msra.mxu0 0.0
    %3259 = vmatprep.subr.mxu0 0.0
    %3260 = vmatpush1.msra.mxu0 0.0
    %3261 = vmatprep.subr.mxu0 0.0
    %3262 = vmatpush1.msra.mxu0 0.0
    %3263 = vmatprep.subr.mxu0 0.0
    %3264 = vmatpush1.msra.mxu0 0.0
    %3265 = vmatprep.subr.mxu0 0.0
    %3266 = vmatpush1.msra.mxu0 0.0
    %3267 = vmatprep.subr.mxu0 0.0
    %3268 = vmatpush1.msra.mxu0 0.0
    %3269 = vmatprep.subr.mxu0 0.0
    %3270 = vmatpush1.msra.mxu0 0.0
    %3271 = vmatprep.subr.mxu0 0.0
    %3272 = vmatpush1.msra.mxu0 0.0
    %3273 = vmatprep.subr.mxu0 0.0
    %3274 = vmatpush1.msra.mxu0 0.0
    %3275 = vmatprep.subr.mxu0 0.0
    %3276 = vmatpush1.msra.mxu0 0.0
    %3277 = vmatprep.subr.mxu0 0.0
    %3278 = vmatpush1.msra.mxu0 0.0
    %3279 = vmatprep.subr.mxu0 0.0
    %3280 = vmatpush1.msra.mxu0 0.0
    %3281 = vmatprep.subr.mxu0 0.0
    %3282 = vmatpush1.msra.mxu0 0.0
    %3283 = vmatprep.mubr.f32.mxu0 0.0
    %3284 = vmatmul.mubr.f32.gmra.mrb[0].mxu0 %v3075
    %v3285 = vpop.f32.mrb[0].mxu0
    %v3286 = vadd.f32 0.0, %v3285
    %v3287 = vpop.f32.mrb[0].mxu0
    %v3288 = vadd.f32 0.0, %v3287
    %3289 = vdwg.mxu0
    %v3290 = vadd.f32 %v3044, %v3144
    %v3291 = vadd.f32 %v3045, %v3146
    %v3292 = vadd.f32 %v3046, %v3215
    %v3293 = vadd.f32 %v3047, %v3217
    %v3294 = vadd.f32 %v3048, %v3286
    %v3295 = vadd.f32 %v3049, %v3288
    %3296 = vrot.lane.b32.xlu0 %v2335, 109
    %v3297 = vpop.permute.xlu0 %3296
    %3298 = vrot.lane.b32.xlu0 %v2324, 109
    %v3299 = vpop.permute.xlu0 %3298
    %3300 = vrot.lane.b32.xlu0 %v2325, 109
    %v3301 = vpop.permute.xlu0 %3300
    %3302 = vrot.lane.b32.xlu0 %v2326, 109
    %v3303 = vpop.permute.xlu0 %3302
    %3304 = vrot.lane.b32.xlu0 %v2327, 109
    %v3305 = vpop.permute.xlu0 %3304
    %3306 = vrot.lane.b32.xlu0 %v2328, 109
    %v3307 = vpop.permute.xlu0 %3306
    %v3308 = vsel %vm1005, %v3297, %v3299
    %v3309 = vsel %vm1005, %v3299, %v3301
    %v3310 = vsel %vm1005, %v3301, %v3303
    %v3311 = vsel %vm1005, %v3303, %v3305
    %v3312 = vsel %vm1005, %v3305, %v3307
    %v3319 = vsel %vm1005, %v3307, 0.0
    %v3321 = vsel %vm62, %v2340, 0
    %3323 = vmatprep.subr.mxu0 %v3309
    %3324 = vmatpush1.msra.mxu0 %v3308
    %3325 = vmatprep.subr.mxu0 0.0
    %3326 = vmatpush1.msra.mxu0 0.0
    %3327 = vmatprep.subr.mxu0 0.0
    %3328 = vmatpush1.msra.mxu0 0.0
    %3329 = vmatprep.subr.mxu0 0.0
    %3330 = vmatpush1.msra.mxu0 0.0
    %3331 = vmatprep.subr.mxu0 0.0
    %3332 = vmatpush1.msra.mxu0 0.0
    %3333 = vmatprep.subr.mxu0 0.0
    %3334 = vmatpush1.msra.mxu0 0.0
    %3335 = vmatprep.subr.mxu0 0.0
    %3336 = vmatpush1.msra.mxu0 0.0
    %3337 = vmatprep.subr.mxu0 0.0
    %3338 = vmatpush1.msra.mxu0 0.0
    %3339 = vmatprep.subr.mxu0 0.0
    %3340 = vmatpush1.msra.mxu0 0.0
    %3341 = vmatprep.subr.mxu0 0.0
    %3342 = vmatpush1.msra.mxu0 0.0
    %3343 = vmatprep.subr.mxu0 0.0
    %3344 = vmatpush1.msra.mxu0 0.0
    %3345 = vmatprep.subr.mxu0 0.0
    %3346 = vmatpush1.msra.mxu0 0.0
    %3347 = vmatprep.subr.mxu0 0.0
    %3348 = vmatpush1.msra.mxu0 0.0
    %3349 = vmatprep.subr.mxu0 0.0
    %3350 = vmatpush1.msra.mxu0 0.0
    %3351 = vmatprep.subr.mxu0 0.0
    %3352 = vmatpush1.msra.mxu0 0.0
    %3353 = vmatprep.subr.mxu0 0.0
    %3354 = vmatpush1.msra.mxu0 0.0
    %3355 = vmatprep.subr.mxu0 0.0
    %3356 = vmatpush1.msra.mxu0 0.0
    %3357 = vmatprep.subr.mxu0 0.0
    %3358 = vmatpush1.msra.mxu0 0.0
    %3359 = vmatprep.subr.mxu0 0.0
    %3360 = vmatpush1.msra.mxu0 0.0
    %3361 = vmatprep.subr.mxu0 0.0
    %3362 = vmatpush1.msra.mxu0 0.0
    %3363 = vmatprep.subr.mxu0 0.0
    %3364 = vmatpush1.msra.mxu0 0.0
    %3365 = vmatprep.subr.mxu0 0.0
    %3366 = vmatpush1.msra.mxu0 0.0
    %3367 = vmatprep.subr.mxu0 0.0
    %3368 = vmatpush1.msra.mxu0 0.0
    %3369 = vmatprep.subr.mxu0 0.0
    %3370 = vmatpush1.msra.mxu0 0.0
    %3371 = vmatprep.subr.mxu0 0.0
    %3372 = vmatpush1.msra.mxu0 0.0
    %3373 = vmatprep.subr.mxu0 0.0
    %3374 = vmatpush1.msra.mxu0 0.0
    %3375 = vmatprep.subr.mxu0 0.0
    %3376 = vmatpush1.msra.mxu0 0.0
    %3377 = vmatprep.subr.mxu0 0.0
    %3378 = vmatpush1.msra.mxu0 0.0
    %3379 = vmatprep.subr.mxu0 0.0
    %3380 = vmatpush1.msra.mxu0 0.0
    %3381 = vmatprep.subr.mxu0 0.0
    %3382 = vmatpush1.msra.mxu0 0.0
    %3383 = vmatprep.subr.mxu0 0.0
    %3384 = vmatpush1.msra.mxu0 0.0
    %3385 = vmatprep.subr.mxu0 0.0
    %3386 = vmatpush1.msra.mxu0 0.0
    %3387 = vmatprep.mubr.f32.mxu0 0.0
    %3388 = vmatmul.mubr.f32.gmra.mrb[0].mxu0 %v3321
    %v3389 = vpop.f32.mrb[0].mxu0
    %v3390 = vadd.f32 0.0, %v3389
    %v3391 = vpop.f32.mrb[0].mxu0
    %v3392 = vadd.f32 0.0, %v3391
    %3393 = vdwg.mxu0
    %3394 = vmatprep.subr.mxu0 %v3311
    %3395 = vmatpush1.msra.mxu0 %v3310
    %3396 = vmatprep.subr.mxu0 0.0
    %3397 = vmatpush1.msra.mxu0 0.0
    %3398 = vmatprep.subr.mxu0 0.0
    %3399 = vmatpush1.msra.mxu0 0.0
    %3400 = vmatprep.subr.mxu0 0.0
    %3401 = vmatpush1.msra.mxu0 0.0
    %3402 = vmatprep.subr.mxu0 0.0
    %3403 = vmatpush1.msra.mxu0 0.0
    %3404 = vmatprep.subr.mxu0 0.0
    %3405 = vmatpush1.msra.mxu0 0.0
    %3406 = vmatprep.subr.mxu0 0.0
    %3407 = vmatpush1.msra.mxu0 0.0
    %3408 = vmatprep.subr.mxu0 0.0
    %3409 = vmatpush1.msra.mxu0 0.0
    %3410 = vmatprep.subr.mxu0 0.0
    %3411 = vmatpush1.msra.mxu0 0.0
    %3412 = vmatprep.subr.mxu0 0.0
    %3413 = vmatpush1.msra.mxu0 0.0
    %3414 = vmatprep.subr.mxu0 0.0
    %3415 = vmatpush1.msra.mxu0 0.0
    %3416 = vmatprep.subr.mxu0 0.0
    %3417 = vmatpush1.msra.mxu0 0.0
    %3418 = vmatprep.subr.mxu0 0.0
    %3419 = vmatpush1.msra.mxu0 0.0
    %3420 = vmatprep.subr.mxu0 0.0
    %3421 = vmatpush1.msra.mxu0 0.0
    %3422 = vmatprep.subr.mxu0 0.0
    %3423 = vmatpush1.msra.mxu0 0.0
    %3424 = vmatprep.subr.mxu0 0.0
    %3425 = vmatpush1.msra.mxu0 0.0
    %3426 = vmatprep.subr.mxu0 0.0
    %3427 = vmatpush1.msra.mxu0 0.0
    %3428 = vmatprep.subr.mxu0 0.0
    %3429 = vmatpush1.msra.mxu0 0.0
    %3430 = vmatprep.subr.mxu0 0.0
    %3431 = vmatpush1.msra.mxu0 0.0
    %3432 = vmatprep.subr.mxu0 0.0
    %3433 = vmatpush1.msra.mxu0 0.0
    %3434 = vmatprep.subr.mxu0 0.0
    %3435 = vmatpush1.msra.mxu0 0.0
    %3436 = vmatprep.subr.mxu0 0.0
    %3437 = vmatpush1.msra.mxu0 0.0
    %3438 = vmatprep.subr.mxu0 0.0
    %3439 = vmatpush1.msra.mxu0 0.0
    %3440 = vmatprep.subr.mxu0 0.0
    %3441 = vmatpush1.msra.mxu0 0.0
    %3442 = vmatprep.subr.mxu0 0.0
    %3443 = vmatpush1.msra.mxu0 0.0
    %3444 = vmatprep.subr.mxu0 0.0
    %3445 = vmatpush1.msra.mxu0 0.0
    %3446 = vmatprep.subr.mxu0 0.0
    %3447 = vmatpush1.msra.mxu0 0.0
    %3448 = vmatprep.subr.mxu0 0.0
    %3449 = vmatpush1.msra.mxu0 0.0
    %3450 = vmatprep.subr.mxu0 0.0
    %3451 = vmatpush1.msra.mxu0 0.0
    %3452 = vmatprep.subr.mxu0 0.0
    %3453 = vmatpush1.msra.mxu0 0.0
    %3454 = vmatprep.subr.mxu0 0.0
    %3455 = vmatpush1.msra.mxu0 0.0
    %3456 = vmatprep.subr.mxu0 0.0
    %3457 = vmatpush1.msra.mxu0 0.0
    %3458 = vmatprep.mubr.f32.mxu0 0.0
    %3459 = vmatmul.mubr.f32.gmra.mrb[0].mxu0 %v3321
    %v3460 = vpop.f32.mrb[0].mxu0
    %v3461 = vadd.f32 0.0, %v3460
    %v3462 = vpop.f32.mrb[0].mxu0
    %v3463 = vadd.f32 0.0, %v3462
    %3464 = vdwg.mxu0
    %3465 = vmatprep.subr.mxu0 %v3319
    %3466 = vmatpush1.msra.mxu0 %v3312
    %3467 = vmatprep.subr.mxu0 0.0
    %3468 = vmatpush1.msra.mxu0 0.0
    %3469 = vmatprep.subr.mxu0 0.0
    %3470 = vmatpush1.msra.mxu0 0.0
    %3471 = vmatprep.subr.mxu0 0.0
    %3472 = vmatpush1.msra.mxu0 0.0
    %3473 = vmatprep.subr.mxu0 0.0
    %3474 = vmatpush1.msra.mxu0 0.0
    %3475 = vmatprep.subr.mxu0 0.0
    %3476 = vmatpush1.msra.mxu0 0.0
    %3477 = vmatprep.subr.mxu0 0.0
    %3478 = vmatpush1.msra.mxu0 0.0
    %3479 = vmatprep.subr.mxu0 0.0
    %3480 = vmatpush1.msra.mxu0 0.0
    %3481 = vmatprep.subr.mxu0 0.0
    %3482 = vmatpush1.msra.mxu0 0.0
    %3483 = vmatprep.subr.mxu0 0.0
    %3484 = vmatpush1.msra.mxu0 0.0
    %3485 = vmatprep.subr.mxu0 0.0
    %3486 = vmatpush1.msra.mxu0 0.0
    %3487 = vmatprep.subr.mxu0 0.0
    %3488 = vmatpush1.msra.mxu0 0.0
    %3489 = vmatprep.subr.mxu0 0.0
    %3490 = vmatpush1.msra.mxu0 0.0
    %3491 = vmatprep.subr.mxu0 0.0
    %3492 = vmatpush1.msra.mxu0 0.0
    %3493 = vmatprep.subr.mxu0 0.0
    %3494 = vmatpush1.msra.mxu0 0.0
    %3495 = vmatprep.subr.mxu0 0.0
    %3496 = vmatpush1.msra.mxu0 0.0
    %3497 = vmatprep.subr.mxu0 0.0
    %3498 = vmatpush1.msra.mxu0 0.0
    %3499 = vmatprep.subr.mxu0 0.0
    %3500 = vmatpush1.msra.mxu0 0.0
    %3501 = vmatprep.subr.mxu0 0.0
    %3502 = vmatpush1.msra.mxu0 0.0
    %3503 = vmatprep.subr.mxu0 0.0
    %3504 = vmatpush1.msra.mxu0 0.0
    %3505 = vmatprep.subr.mxu0 0.0
    %3506 = vmatpush1.msra.mxu0 0.0
    %3507 = vmatprep.subr.mxu0 0.0
    %3508 = vmatpush1.msra.mxu0 0.0
    %3509 = vmatprep.subr.mxu0 0.0
    %3510 = vmatpush1.msra.mxu0 0.0
    %3511 = vmatprep.subr.mxu0 0.0
    %3512 = vmatpush1.msra.mxu0 0.0
    %3513 = vmatprep.subr.mxu0 0.0
    %3514 = vmatpush1.msra.mxu0 0.0
    %3515 = vmatprep.subr.mxu0 0.0
    %3516 = vmatpush1.msra.mxu0 0.0
    %3517 = vmatprep.subr.mxu0 0.0
    %3518 = vmatpush1.msra.mxu0 0.0
    %3519 = vmatprep.subr.mxu0 0.0
    %3520 = vmatpush1.msra.mxu0 0.0
    %3521 = vmatprep.subr.mxu0 0.0
    %3522 = vmatpush1.msra.mxu0 0.0
    %3523 = vmatprep.subr.mxu0 0.0
    %3524 = vmatpush1.msra.mxu0 0.0
    %3525 = vmatprep.subr.mxu0 0.0
    %3526 = vmatpush1.msra.mxu0 0.0
    %3527 = vmatprep.subr.mxu0 0.0
    %3528 = vmatpush1.msra.mxu0 0.0
    %3529 = vmatprep.mubr.f32.mxu0 0.0
    %3530 = vmatmul.mubr.f32.gmra.mrb[0].mxu0 %v3321
    %v3531 = vpop.f32.mrb[0].mxu0
    %v3532 = vadd.f32 0.0, %v3531
    %v3533 = vpop.f32.mrb[0].mxu0
    %v3534 = vadd.f32 0.0, %v3533
    %3535 = vdwg.mxu0
    %v3536 = vadd.f32 %v3290, %v3390
    %v3537 = vadd.f32 %v3291, %v3392
    %v3538 = vadd.f32 %v3292, %v3461
    %v3539 = vadd.f32 %v3293, %v3463
    %v3540 = vadd.f32 %v3294, %v3532
    %v3541 = vadd.f32 %v3295, %v3534
    %3542 = vrot.lane.b32.xlu0 %v2335, 108
    %v3543 = vpop.permute.xlu0 %3542
    %3544 = vrot.lane.b32.xlu0 %v2324, 108
    %v3545 = vpop.permute.xlu0 %3544
    %3546 = vrot.lane.b32.xlu0 %v2325, 108
    %v3547 = vpop.permute.xlu0 %3546
    %3548 = vrot.lane.b32.xlu0 %v2326, 108
    %v3549 = vpop.permute.xlu0 %3548
    %3550 = vrot.lane.b32.xlu0 %v2327, 108
    %v3551 = vpop.permute.xlu0 %3550
    %3552 = vrot.lane.b32.xlu0 %v2328, 108
    %v3553 = vpop.permute.xlu0 %3552
    %v3554 = vsel %vm1254, %v3543, %v3545
    %v3555 = vsel %vm1254, %v3545, %v3547
    %v3556 = vsel %vm1254, %v3547, %v3549
    %v3557 = vsel %vm1254, %v3549, %v3551
    %v3558 = vsel %vm1254, %v3551, %v3553
    %v3565 = vsel %vm1254, %v3553, 0.0
    %v3567 = vsel %vm62, %v2341, 0
    %3569 = vmatprep.subr.mxu0 %v3555
    %3570 = vmatpush1.msra.mxu0 %v3554
    %3571 = vmatprep.subr.mxu0 0.0
    %3572 = vmatpush1.msra.mxu0 0.0
    %3573 = vmatprep.subr.mxu0 0.0
    %3574 = vmatpush1.msra.mxu0 0.0
    %3575 = vmatprep.subr.mxu0 0.0
    %3576 = vmatpush1.msra.mxu0 0.0
    %3577 = vmatprep.subr.mxu0 0.0
    %3578 = vmatpush1.msra.mxu0 0.0
    %3579 = vmatprep.subr.mxu0 0.0
    %3580 = vmatpush1.msra.mxu0 0.0
    %3581 = vmatprep.subr.mxu0 0.0
    %3582 = vmatpush1.msra.mxu0 0.0
    %3583 = vmatprep.subr.mxu0 0.0
    %3584 = vmatpush1.msra.mxu0 0.0
    %3585 = vmatprep.subr.mxu0 0.0
    %3586 = vmatpush1.msra.mxu0 0.0
    %3587 = vmatprep.subr.mxu0 0.0
    %3588 = vmatpush1.msra.mxu0 0.0
    %3589 = vmatprep.subr.mxu0 0.0
    %3590 = vmatpush1.msra.mxu0 0.0
    %3591 = vmatprep.subr.mxu0 0.0
    %3592 = vmatpush1.msra.mxu0 0.0
    %3593 = vmatprep.subr.mxu0 0.0
    %3594 = vmatpush1.msra.mxu0 0.0
    %3595 = vmatprep.subr.mxu0 0.0
    %3596 = vmatpush1.msra.mxu0 0.0
    %3597 = vmatprep.subr.mxu0 0.0
    %3598 = vmatpush1.msra.mxu0 0.0
    %3599 = vmatprep.subr.mxu0 0.0
    %3600 = vmatpush1.msra.mxu0 0.0
    %3601 = vmatprep.subr.mxu0 0.0
    %3602 = vmatpush1.msra.mxu0 0.0
    %3603 = vmatprep.subr.mxu0 0.0
    %3604 = vmatpush1.msra.mxu0 0.0
    %3605 = vmatprep.subr.mxu0 0.0
    %3606 = vmatpush1.msra.mxu0 0.0
    %3607 = vmatprep.subr.mxu0 0.0
    %3608 = vmatpush1.msra.mxu0 0.0
    %3609 = vmatprep.subr.mxu0 0.0
    %3610 = vmatpush1.msra.mxu0 0.0
    %3611 = vmatprep.subr.mxu0 0.0
    %3612 = vmatpush1.msra.mxu0 0.0
    %3613 = vmatprep.subr.mxu0 0.0
    %3614 = vmatpush1.msra.mxu0 0.0
    %3615 = vmatprep.subr.mxu0 0.0
    %3616 = vmatpush1.msra.mxu0 0.0
    %3617 = vmatprep.subr.mxu0 0.0
    %3618 = vmatpush1.msra.mxu0 0.0
    %3619 = vmatprep.subr.mxu0 0.0
    %3620 = vmatpush1.msra.mxu0 0.0
    %3621 = vmatprep.subr.mxu0 0.0
    %3622 = vmatpush1.msra.mxu0 0.0
    %3623 = vmatprep.subr.mxu0 0.0
    %3624 = vmatpush1.msra.mxu0 0.0
    %3625 = vmatprep.subr.mxu0 0.0
    %3626 = vmatpush1.msra.mxu0 0.0
    %3627 = vmatprep.subr.mxu0 0.0
    %3628 = vmatpush1.msra.mxu0 0.0
    %3629 = vmatprep.subr.mxu0 0.0
    %3630 = vmatpush1.msra.mxu0 0.0
    %3631 = vmatprep.subr.mxu0 0.0
    %3632 = vmatpush1.msra.mxu0 0.0
    %3633 = vmatprep.mubr.f32.mxu0 0.0
    %3634 = vmatmul.mubr.f32.gmra.mrb[0].mxu0 %v3567
    %v3635 = vpop.f32.mrb[0].mxu0
    %v3636 = vadd.f32 0.0, %v3635
    %v3637 = vpop.f32.mrb[0].mxu0
    %v3638 = vadd.f32 0.0, %v3637
    %3639 = vdwg.mxu0
    %3640 = vmatprep.subr.mxu0 %v3557
    %3641 = vmatpush1.msra.mxu0 %v3556
    %3642 = vmatprep.subr.mxu0 0.0
    %3643 = vmatpush1.msra.mxu0 0.0
    %3644 = vmatprep.subr.mxu0 0.0
    %3645 = vmatpush1.msra.mxu0 0.0
    %3646 = vmatprep.subr.mxu0 0.0
    %3647 = vmatpush1.msra.mxu0 0.0
    %3648 = vmatprep.subr.mxu0 0.0
    %3649 = vmatpush1.msra.mxu0 0.0
    %3650 = vmatprep.subr.mxu0 0.0
    %3651 = vmatpush1.msra.mxu0 0.0
    %3652 = vmatprep.subr.mxu0 0.0
    %3653 = vmatpush1.msra.mxu0 0.0
    %3654 = vmatprep.subr.mxu0 0.0
    %3655 = vmatpush1.msra.mxu0 0.0
    %3656 = vmatprep.subr.mxu0 0.0
    %3657 = vmatpush1.msra.mxu0 0.0
    %3658 = vmatprep.subr.mxu0 0.0
    %3659 = vmatpush1.msra.mxu0 0.0
    %3660 = vmatprep.subr.mxu0 0.0
    %3661 = vmatpush1.msra.mxu0 0.0
    %3662 = vmatprep.subr.mxu0 0.0
    %3663 = vmatpush1.msra.mxu0 0.0
    %3664 = vmatprep.subr.mxu0 0.0
    %3665 = vmatpush1.msra.mxu0 0.0
    %3666 = vmatprep.subr.mxu0 0.0
    %3667 = vmatpush1.msra.mxu0 0.0
    %3668 = vmatprep.subr.mxu0 0.0
    %3669 = vmatpush1.msra.mxu0 0.0
    %3670 = vmatprep.subr.mxu0 0.0
    %3671 = vmatpush1.msra.mxu0 0.0
    %3672 = vmatprep.subr.mxu0 0.0
    %3673 = vmatpush1.msra.mxu0 0.0
    %3674 = vmatprep.subr.mxu0 0.0
    %3675 = vmatpush1.msra.mxu0 0.0
    %3676 = vmatprep.subr.mxu0 0.0
    %3677 = vmatpush1.msra.mxu0 0.0
    %3678 = vmatprep.subr.mxu0 0.0
    %3679 = vmatpush1.msra.mxu0 0.0
    %3680 = vmatprep.subr.mxu0 0.0
    %3681 = vmatpush1.msra.mxu0 0.0
    %3682 = vmatprep.subr.mxu0 0.0
    %3683 = vmatpush1.msra.mxu0 0.0
    %3684 = vmatprep.subr.mxu0 0.0
    %3685 = vmatpush1.msra.mxu0 0.0
    %3686 = vmatprep.subr.mxu0 0.0
    %3687 = vmatpush1.msra.mxu0 0.0
    %3688 = vmatprep.subr.mxu0 0.0
    %3689 = vmatpush1.msra.mxu0 0.0
    %3690 = vmatprep.subr.mxu0 0.0
    %3691 = vmatpush1.msra.mxu0 0.0
    %3692 = vmatprep.subr.mxu0 0.0
    %3693 = vmatpush1.msra.mxu0 0.0
    %3694 = vmatprep.subr.mxu0 0.0
    %3695 = vmatpush1.msra.mxu0 0.0
    %3696 = vmatprep.subr.mxu0 0.0
    %3697 = vmatpush1.msra.mxu0 0.0
    %3698 = vmatprep.subr.mxu0 0.0
    %3699 = vmatpush1.msra.mxu0 0.0
    %3700 = vmatprep.subr.mxu0 0.0
    %3701 = vmatpush1.msra.mxu0 0.0
    %3702 = vmatprep.subr.mxu0 0.0
    %3703 = vmatpush1.msra.mxu0 0.0
    %3704 = vmatprep.mubr.f32.mxu0 0.0
    %3705 = vmatmul.mubr.f32.gmra.mrb[0].mxu0 %v3567
    %v3706 = vpop.f32.mrb[0].mxu0
    %v3707 = vadd.f32 0.0, %v3706
    %v3708 = vpop.f32.mrb[0].mxu0
    %v3709 = vadd.f32 0.0, %v3708
    %3710 = vdwg.mxu0
    %3711 = vmatprep.subr.mxu0 %v3565
    %3712 = vmatpush1.msra.mxu0 %v3558
    %3713 = vmatprep.subr.mxu0 0.0
    %3714 = vmatpush1.msra.mxu0 0.0
    %3715 = vmatprep.subr.mxu0 0.0
    %3716 = vmatpush1.msra.mxu0 0.0
    %3717 = vmatprep.subr.mxu0 0.0
    %3718 = vmatpush1.msra.mxu0 0.0
    %3719 = vmatprep.subr.mxu0 0.0
    %3720 = vmatpush1.msra.mxu0 0.0
    %3721 = vmatprep.subr.mxu0 0.0
    %3722 = vmatpush1.msra.mxu0 0.0
    %3723 = vmatprep.subr.mxu0 0.0
    %3724 = vmatpush1.msra.mxu0 0.0
    %3725 = vmatprep.subr.mxu0 0.0
    %3726 = vmatpush1.msra.mxu0 0.0
    %3727 = vmatprep.subr.mxu0 0.0
    %3728 = vmatpush1.msra.mxu0 0.0
    %3729 = vmatprep.subr.mxu0 0.0
    %3730 = vmatpush1.msra.mxu0 0.0
    %3731 = vmatprep.subr.mxu0 0.0
    %3732 = vmatpush1.msra.mxu0 0.0
    %3733 = vmatprep.subr.mxu0 0.0
    %3734 = vmatpush1.msra.mxu0 0.0
    %3735 = vmatprep.subr.mxu0 0.0
    %3736 = vmatpush1.msra.mxu0 0.0
    %3737 = vmatprep.subr.mxu0 0.0
    %3738 = vmatpush1.msra.mxu0 0.0
    %3739 = vmatprep.subr.mxu0 0.0
    %3740 = vmatpush1.msra.mxu0 0.0
    %3741 = vmatprep.subr.mxu0 0.0
    %3742 = vmatpush1.msra.mxu0 0.0
    %3743 = vmatprep.subr.mxu0 0.0
    %3744 = vmatpush1.msra.mxu0 0.0
    %3745 = vmatprep.subr.mxu0 0.0
    %3746 = vmatpush1.msra.mxu0 0.0
    %3747 = vmatprep.subr.mxu0 0.0
    %3748 = vmatpush1.msra.mxu0 0.0
    %3749 = vmatprep.subr.mxu0 0.0
    %3750 = vmatpush1.msra.mxu0 0.0
    %3751 = vmatprep.subr.mxu0 0.0
    %3752 = vmatpush1.msra.mxu0 0.0
    %3753 = vmatprep.subr.mxu0 0.0
    %3754 = vmatpush1.msra.mxu0 0.0
    %3755 = vmatprep.subr.mxu0 0.0
    %3756 = vmatpush1.msra.mxu0 0.0
    %3757 = vmatprep.subr.mxu0 0.0
    %3758 = vmatpush1.msra.mxu0 0.0
    %3759 = vmatprep.subr.mxu0 0.0
    %3760 = vmatpush1.msra.mxu0 0.0
    %3761 = vmatprep.subr.mxu0 0.0
    %3762 = vmatpush1.msra.mxu0 0.0
    %3763 = vmatprep.subr.mxu0 0.0
    %3764 = vmatpush1.msra.mxu0 0.0
    %3765 = vmatprep.subr.mxu0 0.0
    %3766 = vmatpush1.msra.mxu0 0.0
    %3767 = vmatprep.subr.mxu0 0.0
    %3768 = vmatpush1.msra.mxu0 0.0
    %3769 = vmatprep.subr.mxu0 0.0
    %3770 = vmatpush1.msra.mxu0 0.0
    %3771 = vmatprep.subr.mxu0 0.0
    %3772 = vmatpush1.msra.mxu0 0.0
    %3773 = vmatprep.subr.mxu0 0.0
    %3774 = vmatpush1.msra.mxu0 0.0
    %3775 = vmatprep.mubr.f32.mxu0 0.0
    %3776 = vmatmul.mubr.f32.gmra.mrb[0].mxu0 %v3567
    %v3777 = vpop.f32.mrb[0].mxu0
    %v3778 = vadd.f32 0.0, %v3777
    %v3779 = vpop.f32.mrb[0].mxu0
    %v3780 = vadd.f32 0.0, %v3779
    %3781 = vdwg.mxu0
    %v3782 = vadd.f32 %v3536, %v3636
    %v3783 = vadd.f32 %v3537, %v3638
    %v3784 = vadd.f32 %v3538, %v3707
    %v3785 = vadd.f32 %v3539, %v3709
    %v3786 = vadd.f32 %v3540, %v3778
    %v3787 = vadd.f32 %v3541, %v3780
    %3788 = vrot.lane.b32.xlu0 %v2335, 92
    %v3789 = vpop.permute.xlu0 %3788
    %3790 = vrot.lane.b32.xlu0 %v2324, 92
    %v3791 = vpop.permute.xlu0 %3790
    %3792 = vrot.lane.b32.xlu0 %v2325, 92
    %v3793 = vpop.permute.xlu0 %3792
    %3794 = vrot.lane.b32.xlu0 %v2326, 92
    %v3795 = vpop.permute.xlu0 %3794
    %3796 = vrot.lane.b32.xlu0 %v2327, 92
    %v3797 = vpop.permute.xlu0 %3796
    %3798 = vrot.lane.b32.xlu0 %v2328, 92
    %v3799 = vpop.permute.xlu0 %3798
    %v3800 = vsel %vm1503, %v3789, %v3791
    %v3801 = vsel %vm1503, %v3791, %v3793
    %v3802 = vsel %vm1503, %v3793, %v3795
    %v3803 = vsel %vm1503, %v3795, %v3797
    %v3804 = vsel %vm1503, %v3797, %v3799
    %v3811 = vsel %vm1503, %v3799, 0.0
    %v3813 = vsel %vm62, %v2342, 0
    %3815 = vmatprep.subr.mxu0 %v3801
    %3816 = vmatpush1.msra.mxu0 %v3800
    %3817 = vmatprep.subr.mxu0 0.0
    %3818 = vmatpush1.msra.mxu0 0.0
    %3819 = vmatprep.subr.mxu0 0.0
    %3820 = vmatpush1.msra.mxu0 0.0
    %3821 = vmatprep.subr.mxu0 0.0
    %3822 = vmatpush1.msra.mxu0 0.0
    %3823 = vmatprep.subr.mxu0 0.0
    %3824 = vmatpush1.msra.mxu0 0.0
    %3825 = vmatprep.subr.mxu0 0.0
    %3826 = vmatpush1.msra.mxu0 0.0
    %3827 = vmatprep.subr.mxu0 0.0
    %3828 = vmatpush1.msra.mxu0 0.0
    %3829 = vmatprep.subr.mxu0 0.0
    %3830 = vmatpush1.msra.mxu0 0.0
    %3831 = vmatprep.subr.mxu0 0.0
    %3832 = vmatpush1.msra.mxu0 0.0
    %3833 = vmatprep.subr.mxu0 0.0
    %3834 = vmatpush1.msra.mxu0 0.0
    %3835 = vmatprep.subr.mxu0 0.0
    %3836 = vmatpush1.msra.mxu0 0.0
    %3837 = vmatprep.subr.mxu0 0.0
    %3838 = vmatpush1.msra.mxu0 0.0
    %3839 = vmatprep.subr.mxu0 0.0
    %3840 = vmatpush1.msra.mxu0 0.0
    %3841 = vmatprep.subr.mxu0 0.0
    %3842 = vmatpush1.msra.mxu0 0.0
    %3843 = vmatprep.subr.mxu0 0.0
    %3844 = vmatpush1.msra.mxu0 0.0
    %3845 = vmatprep.subr.mxu0 0.0
    %3846 = vmatpush1.msra.mxu0 0.0
    %3847 = vmatprep.subr.mxu0 0.0
    %3848 = vmatpush1.msra.mxu0 0.0
    %3849 = vmatprep.subr.mxu0 0.0
    %3850 = vmatpush1.msra.mxu0 0.0
    %3851 = vmatprep.subr.mxu0 0.0
    %3852 = vmatpush1.msra.mxu0 0.0
    %3853 = vmatprep.subr.mxu0 0.0
    %3854 = vmatpush1.msra.mxu0 0.0
    %3855 = vmatprep.subr.mxu0 0.0
    %3856 = vmatpush1.msra.mxu0 0.0
    %3857 = vmatprep.subr.mxu0 0.0
    %3858 = vmatpush1.msra.mxu0 0.0
    %3859 = vmatprep.subr.mxu0 0.0
    %3860 = vmatpush1.msra.mxu0 0.0
    %3861 = vmatprep.subr.mxu0 0.0
    %3862 = vmatpush1.msra.mxu0 0.0
    %3863 = vmatprep.subr.mxu0 0.0
    %3864 = vmatpush1.msra.mxu0 0.0
    %3865 = vmatprep.subr.mxu0 0.0
    %3866 = vmatpush1.msra.mxu0 0.0
    %3867 = vmatprep.subr.mxu0 0.0
    %3868 = vmatpush1.msra.mxu0 0.0
    %3869 = vmatprep.subr.mxu0 0.0
    %3870 = vmatpush1.msra.mxu0 0.0
    %3871 = vmatprep.subr.mxu0 0.0
    %3872 = vmatpush1.msra.mxu0 0.0
    %3873 = vmatprep.subr.mxu0 0.0
    %3874 = vmatpush1.msra.mxu0 0.0
    %3875 = vmatprep.subr.mxu0 0.0
    %3876 = vmatpush1.msra.mxu0 0.0
    %3877 = vmatprep.subr.mxu0 0.0
    %3878 = vmatpush1.msra.mxu0 0.0
    %3879 = vmatprep.mubr.f32.mxu0 0.0
    %3880 = vmatmul.mubr.f32.gmra.mrb[0].mxu0 %v3813
    %v3881 = vpop.f32.mrb[0].mxu0
    %v3882 = vadd.f32 0.0, %v3881
    %v3883 = vpop.f32.mrb[0].mxu0
    %v3884 = vadd.f32 0.0, %v3883
    %3885 = vdwg.mxu0
    %3886 = vmatprep.subr.mxu0 %v3803
    %3887 = vmatpush1.msra.mxu0 %v3802
    %3888 = vmatprep.subr.mxu0 0.0
    %3889 = vmatpush1.msra.mxu0 0.0
    %3890 = vmatprep.subr.mxu0 0.0
    %3891 = vmatpush1.msra.mxu0 0.0
    %3892 = vmatprep.subr.mxu0 0.0
    %3893 = vmatpush1.msra.mxu0 0.0
    %3894 = vmatprep.subr.mxu0 0.0
    %3895 = vmatpush1.msra.mxu0 0.0
    %3896 = vmatprep.subr.mxu0 0.0
    %3897 = vmatpush1.msra.mxu0 0.0
    %3898 = vmatprep.subr.mxu0 0.0
    %3899 = vmatpush1.msra.mxu0 0.0
    %3900 = vmatprep.subr.mxu0 0.0
    %3901 = vmatpush1.msra.mxu0 0.0
    %3902 = vmatprep.subr.mxu0 0.0
    %3903 = vmatpush1.msra.mxu0 0.0
    %3904 = vmatprep.subr.mxu0 0.0
    %3905 = vmatpush1.msra.mxu0 0.0
    %3906 = vmatprep.subr.mxu0 0.0
    %3907 = vmatpush1.msra.mxu0 0.0
    %3908 = vmatprep.subr.mxu0 0.0
    %3909 = vmatpush1.msra.mxu0 0.0
    %3910 = vmatprep.subr.mxu0 0.0
    %3911 = vmatpush1.msra.mxu0 0.0
    %3912 = vmatprep.subr.mxu0 0.0
    %3913 = vmatpush1.msra.mxu0 0.0
    %3914 = vmatprep.subr.mxu0 0.0
    %3915 = vmatpush1.msra.mxu0 0.0
    %3916 = vmatprep.subr.mxu0 0.0
    %3917 = vmatpush1.msra.mxu0 0.0
    %3918 = vmatprep.subr.mxu0 0.0
    %3919 = vmatpush1.msra.mxu0 0.0
    %3920 = vmatprep.subr.mxu0 0.0
    %3921 = vmatpush1.msra.mxu0 0.0
    %3922 = vmatprep.subr.mxu0 0.0
    %3923 = vmatpush1.msra.mxu0 0.0
    %3924 = vmatprep.subr.mxu0 0.0
    %3925 = vmatpush1.msra.mxu0 0.0
    %3926 = vmatprep.subr.mxu0 0.0
    %3927 = vmatpush1.msra.mxu0 0.0
    %3928 = vmatprep.subr.mxu0 0.0
    %3929 = vmatpush1.msra.mxu0 0.0
    %3930 = vmatprep.subr.mxu0 0.0
    %3931 = vmatpush1.msra.mxu0 0.0
    %3932 = vmatprep.subr.mxu0 0.0
    %3933 = vmatpush1.msra.mxu0 0.0
    %3934 = vmatprep.subr.mxu0 0.0
    %3935 = vmatpush1.msra.mxu0 0.0
    %3936 = vmatprep.subr.mxu0 0.0
    %3937 = vmatpush1.msra.mxu0 0.0
    %3938 = vmatprep.subr.mxu0 0.0
    %3939 = vmatpush1.msra.mxu0 0.0
    %3940 = vmatprep.subr.mxu0 0.0
    %3941 = vmatpush1.msra.mxu0 0.0
    %3942 = vmatprep.subr.mxu0 0.0
    %3943 = vmatpush1.msra.mxu0 0.0
    %3944 = vmatprep.subr.mxu0 0.0
    %3945 = vmatpush1.msra.mxu0 0.0
    %3946 = vmatprep.subr.mxu0 0.0
    %3947 = vmatpush1.msra.mxu0 0.0
    %3948 = vmatprep.subr.mxu0 0.0
    %3949 = vmatpush1.msra.mxu0 0.0
    %3950 = vmatprep.mubr.f32.mxu0 0.0
    %3951 = vmatmul.mubr.f32.gmra.mrb[0].mxu0 %v3813
    %v3952 = vpop.f32.mrb[0].mxu0
    %v3953 = vadd.f32 0.0, %v3952
    %v3954 = vpop.f32.mrb[0].mxu0
    %v3955 = vadd.f32 0.0, %v3954
    %3956 = vdwg.mxu0
    %3957 = vmatprep.subr.mxu0 %v3811
    %3958 = vmatpush1.msra.mxu0 %v3804
    %3959 = vmatprep.subr.mxu0 0.0
    %3960 = vmatpush1.msra.mxu0 0.0
    %3961 = vmatprep.subr.mxu0 0.0
    %3962 = vmatpush1.msra.mxu0 0.0
    %3963 = vmatprep.subr.mxu0 0.0
    %3964 = vmatpush1.msra.mxu0 0.0
    %3965 = vmatprep.subr.mxu0 0.0
    %3966 = vmatpush1.msra.mxu0 0.0
    %3967 = vmatprep.subr.mxu0 0.0
    %3968 = vmatpush1.msra.mxu0 0.0
    %3969 = vmatprep.subr.mxu0 0.0
    %3970 = vmatpush1.msra.mxu0 0.0
    %3971 = vmatprep.subr.mxu0 0.0
    %3972 = vmatpush1.msra.mxu0 0.0
    %3973 = vmatprep.subr.mxu0 0.0
    %3974 = vmatpush1.msra.mxu0 0.0
    %3975 = vmatprep.subr.mxu0 0.0
    %3976 = vmatpush1.msra.mxu0 0.0
    %3977 = vmatprep.subr.mxu0 0.0
    %3978 = vmatpush1.msra.mxu0 0.0
    %3979 = vmatprep.subr.mxu0 0.0
    %3980 = vmatpush1.msra.mxu0 0.0
    %3981 = vmatprep.subr.mxu0 0.0
    %3982 = vmatpush1.msra.mxu0 0.0
    %3983 = vmatprep.subr.mxu0 0.0
    %3984 = vmatpush1.msra.mxu0 0.0
    %3985 = vmatprep.subr.mxu0 0.0
    %3986 = vmatpush1.msra.mxu0 0.0
    %3987 = vmatprep.subr.mxu0 0.0
    %3988 = vmatpush1.msra.mxu0 0.0
    %3989 = vmatprep.subr.mxu0 0.0
    %3990 = vmatpush1.msra.mxu0 0.0
    %3991 = vmatprep.subr.mxu0 0.0
    %3992 = vmatpush1.msra.mxu0 0.0
    %3993 = vmatprep.subr.mxu0 0.0
    %3994 = vmatpush1.msra.mxu0 0.0
    %3995 = vmatprep.subr.mxu0 0.0
    %3996 = vmatpush1.msra.mxu0 0.0
    %3997 = vmatprep.subr.mxu0 0.0
    %3998 = vmatpush1.msra.mxu0 0.0
    %3999 = vmatprep.subr.mxu0 0.0
    %4000 = vmatpush1.msra.mxu0 0.0
    %4001 = vmatprep.subr.mxu0 0.0
    %4002 = vmatpush1.msra.mxu0 0.0
    %4003 = vmatprep.subr.mxu0 0.0
    %4004 = vmatpush1.msra.mxu0 0.0
    %4005 = vmatprep.subr.mxu0 0.0
    %4006 = vmatpush1.msra.mxu0 0.0
    %4007 = vmatprep.subr.mxu0 0.0
    %4008 = vmatpush1.msra.mxu0 0.0
    %4009 = vmatprep.subr.mxu0 0.0
    %4010 = vmatpush1.msra.mxu0 0.0
    %4011 = vmatprep.subr.mxu0 0.0
    %4012 = vmatpush1.msra.mxu0 0.0
    %4013 = vmatprep.subr.mxu0 0.0
    %4014 = vmatpush1.msra.mxu0 0.0
    %4015 = vmatprep.subr.mxu0 0.0
    %4016 = vmatpush1.msra.mxu0 0.0
    %4017 = vmatprep.subr.mxu0 0.0
    %4018 = vmatpush1.msra.mxu0 0.0
    %4019 = vmatprep.subr.mxu0 0.0
    %4020 = vmatpush1.msra.mxu0 0.0
    %4021 = vmatprep.mubr.f32.mxu0 0.0
    %4022 = vmatmul.mubr.f32.gmra.mrb[0].mxu0 %v3813
    %v4023 = vpop.f32.mrb[0].mxu0
    %v4024 = vadd.f32 0.0, %v4023
    %v4025 = vpop.f32.mrb[0].mxu0
    %v4026 = vadd.f32 0.0, %v4025
    %4027 = vdwg.mxu0
    %v4028 = vadd.f32 %v3782, %v3882
    %v4029 = vadd.f32 %v3783, %v3884
    %v4030 = vadd.f32 %v3784, %v3953
    %v4031 = vadd.f32 %v3785, %v3955
    %v4032 = vadd.f32 %v3786, %v4024
    %v4033 = vadd.f32 %v3787, %v4026
    %4034 = vrot.lane.b32.xlu0 %v2335, 91
    %v4035 = vpop.permute.xlu0 %4034
    %4036 = vrot.lane.b32.xlu0 %v2324, 91
    %v4037 = vpop.permute.xlu0 %4036
    %4038 = vrot.lane.b32.xlu0 %v2325, 91
    %v4039 = vpop.permute.xlu0 %4038
    %4040 = vrot.lane.b32.xlu0 %v2326, 91
    %v4041 = vpop.permute.xlu0 %4040
    %4042 = vrot.lane.b32.xlu0 %v2327, 91
    %v4043 = vpop.permute.xlu0 %4042
    %4044 = vrot.lane.b32.xlu0 %v2328, 91
    %v4045 = vpop.permute.xlu0 %4044
    %v4046 = vsel %vm1752, %v4035, %v4037
    %v4047 = vsel %vm1752, %v4037, %v4039
    %v4048 = vsel %vm1752, %v4039, %v4041
    %v4049 = vsel %vm1752, %v4041, %v4043
    %v4050 = vsel %vm1752, %v4043, %v4045
    %v4057 = vsel %vm1752, %v4045, 0.0
    %v4059 = vsel %vm62, %v2343, 0
    %4061 = vmatprep.subr.mxu0 %v4047
    %4062 = vmatpush1.msra.mxu0 %v4046
    %4063 = vmatprep.subr.mxu0 0.0
    %4064 = vmatpush1.msra.mxu0 0.0
    %4065 = vmatprep.subr.mxu0 0.0
    %4066 = vmatpush1.msra.mxu0 0.0
    %4067 = vmatprep.subr.mxu0 0.0
    %4068 = vmatpush1.msra.mxu0 0.0
    %4069 = vmatprep.subr.mxu0 0.0
    %4070 = vmatpush1.msra.mxu0 0.0
    %4071 = vmatprep.subr.mxu0 0.0
    %4072 = vmatpush1.msra.mxu0 0.0
    %4073 = vmatprep.subr.mxu0 0.0
    %4074 = vmatpush1.msra.mxu0 0.0
    %4075 = vmatprep.subr.mxu0 0.0
    %4076 = vmatpush1.msra.mxu0 0.0
    %4077 = vmatprep.subr.mxu0 0.0
    %4078 = vmatpush1.msra.mxu0 0.0
    %4079 = vmatprep.subr.mxu0 0.0
    %4080 = vmatpush1.msra.mxu0 0.0
    %4081 = vmatprep.subr.mxu0 0.0
    %4082 = vmatpush1.msra.mxu0 0.0
    %4083 = vmatprep.subr.mxu0 0.0
    %4084 = vmatpush1.msra.mxu0 0.0
    %4085 = vmatprep.subr.mxu0 0.0
    %4086 = vmatpush1.msra.mxu0 0.0
    %4087 = vmatprep.subr.mxu0 0.0
    %4088 = vmatpush1.msra.mxu0 0.0
    %4089 = vmatprep.subr.mxu0 0.0
    %4090 = vmatpush1.msra.mxu0 0.0
    %4091 = vmatprep.subr.mxu0 0.0
    %4092 = vmatpush1.msra.mxu0 0.0
    %4093 = vmatprep.subr.mxu0 0.0
    %4094 = vmatpush1.msra.mxu0 0.0
    %4095 = vmatprep.subr.mxu0 0.0
    %4096 = vmatpush1.msra.mxu0 0.0
    %4097 = vmatprep.subr.mxu0 0.0
    %4098 = vmatpush1.msra.mxu0 0.0
    %4099 = vmatprep.subr.mxu0 0.0
    %4100 = vmatpush1.msra.mxu0 0.0
    %4101 = vmatprep.subr.mxu0 0.0
    %4102 = vmatpush1.msra.mxu0 0.0
    %4103 = vmatprep.subr.mxu0 0.0
    %4104 = vmatpush1.msra.mxu0 0.0
    %4105 = vmatprep.subr.mxu0 0.0
    %4106 = vmatpush1.msra.mxu0 0.0
    %4107 = vmatprep.subr.mxu0 0.0
    %4108 = vmatpush1.msra.mxu0 0.0
    %4109 = vmatprep.subr.mxu0 0.0
    %4110 = vmatpush1.msra.mxu0 0.0
    %4111 = vmatprep.subr.mxu0 0.0
    %4112 = vmatpush1.msra.mxu0 0.0
    %4113 = vmatprep.subr.mxu0 0.0
    %4114 = vmatpush1.msra.mxu0 0.0
    %4115 = vmatprep.subr.mxu0 0.0
    %4116 = vmatpush1.msra.mxu0 0.0
    %4117 = vmatprep.subr.mxu0 0.0
    %4118 = vmatpush1.msra.mxu0 0.0
    %4119 = vmatprep.subr.mxu0 0.0
    %4120 = vmatpush1.msra.mxu0 0.0
    %4121 = vmatprep.subr.mxu0 0.0
    %4122 = vmatpush1.msra.mxu0 0.0
    %4123 = vmatprep.subr.mxu0 0.0
    %4124 = vmatpush1.msra.mxu0 0.0
    %4125 = vmatprep.mubr.f32.mxu0 0.0
    %4126 = vmatmul.mubr.f32.gmra.mrb[0].mxu0 %v4059
    %v4127 = vpop.f32.mrb[0].mxu0
    %v4128 = vadd.f32 0.0, %v4127
    %v4129 = vpop.f32.mrb[0].mxu0
    %v4130 = vadd.f32 0.0, %v4129
    %4131 = vdwg.mxu0
    %4132 = vmatprep.subr.mxu0 %v4049
    %4133 = vmatpush1.msra.mxu0 %v4048
    %4134 = vmatprep.subr.mxu0 0.0
    %4135 = vmatpush1.msra.mxu0 0.0
    %4136 = vmatprep.subr.mxu0 0.0
    %4137 = vmatpush1.msra.mxu0 0.0
    %4138 = vmatprep.subr.mxu0 0.0
    %4139 = vmatpush1.msra.mxu0 0.0
    %4140 = vmatprep.subr.mxu0 0.0
    %4141 = vmatpush1.msra.mxu0 0.0
    %4142 = vmatprep.subr.mxu0 0.0
    %4143 = vmatpush1.msra.mxu0 0.0
    %4144 = vmatprep.subr.mxu0 0.0
    %4145 = vmatpush1.msra.mxu0 0.0
    %4146 = vmatprep.subr.mxu0 0.0
    %4147 = vmatpush1.msra.mxu0 0.0
    %4148 = vmatprep.subr.mxu0 0.0
    %4149 = vmatpush1.msra.mxu0 0.0
    %4150 = vmatprep.subr.mxu0 0.0
    %4151 = vmatpush1.msra.mxu0 0.0
    %4152 = vmatprep.subr.mxu0 0.0
    %4153 = vmatpush1.msra.mxu0 0.0
    %4154 = vmatprep.subr.mxu0 0.0
    %4155 = vmatpush1.msra.mxu0 0.0
    %4156 = vmatprep.subr.mxu0 0.0
    %4157 = vmatpush1.msra.mxu0 0.0
    %4158 = vmatprep.subr.mxu0 0.0
    %4159 = vmatpush1.msra.mxu0 0.0
    %4160 = vmatprep.subr.mxu0 0.0
    %4161 = vmatpush1.msra.mxu0 0.0
    %4162 = vmatprep.subr.mxu0 0.0
    %4163 = vmatpush1.msra.mxu0 0.0
    %4164 = vmatprep.subr.mxu0 0.0
    %4165 = vmatpush1.msra.mxu0 0.0
    %4166 = vmatprep.subr.mxu0 0.0
    %4167 = vmatpush1.msra.mxu0 0.0
    %4168 = vmatprep.subr.mxu0 0.0
    %4169 = vmatpush1.msra.mxu0 0.0
    %4170 = vmatprep.subr.mxu0 0.0
    %4171 = vmatpush1.msra.mxu0 0.0
    %4172 = vmatprep.subr.mxu0 0.0
    %4173 = vmatpush1.msra.mxu0 0.0
    %4174 = vmatprep.subr.mxu0 0.0
    %4175 = vmatpush1.msra.mxu0 0.0
    %4176 = vmatprep.subr.mxu0 0.0
    %4177 = vmatpush1.msra.mxu0 0.0
    %4178 = vmatprep.subr.mxu0 0.0
    %4179 = vmatpush1.msra.mxu0 0.0
    %4180 = vmatprep.subr.mxu0 0.0
    %4181 = vmatpush1.msra.mxu0 0.0
    %4182 = vmatprep.subr.mxu0 0.0
    %4183 = vmatpush1.msra.mxu0 0.0
    %4184 = vmatprep.subr.mxu0 0.0
    %4185 = vmatpush1.msra.mxu0 0.0
    %4186 = vmatprep.subr.mxu0 0.0
    %4187 = vmatpush1.msra.mxu0 0.0
    %4188 = vmatprep.subr.mxu0 0.0
    %4189 = vmatpush1.msra.mxu0 0.0
    %4190 = vmatprep.subr.mxu0 0.0
    %4191 = vmatpush1.msra.mxu0 0.0
    %4192 = vmatprep.subr.mxu0 0.0
    %4193 = vmatpush1.msra.mxu0 0.0
    %4194 = vmatprep.subr.mxu0 0.0
    %4195 = vmatpush1.msra.mxu0 0.0
    %4196 = vmatprep.mubr.f32.mxu0 0.0
    %4197 = vmatmul.mubr.f32.gmra.mrb[0].mxu0 %v4059
    %v4198 = vpop.f32.mrb[0].mxu0
    %v4199 = vadd.f32 0.0, %v4198
    %v4200 = vpop.f32.mrb[0].mxu0
    %v4201 = vadd.f32 0.0, %v4200
    %4202 = vdwg.mxu0
    %4203 = vmatprep.subr.mxu0 %v4057
    %4204 = vmatpush1.msra.mxu0 %v4050
    %4205 = vmatprep.subr.mxu0 0.0
    %4206 = vmatpush1.msra.mxu0 0.0
    %4207 = vmatprep.subr.mxu0 0.0
    %4208 = vmatpush1.msra.mxu0 0.0
    %4209 = vmatprep.subr.mxu0 0.0
    %4210 = vmatpush1.msra.mxu0 0.0
    %4211 = vmatprep.subr.mxu0 0.0
    %4212 = vmatpush1.msra.mxu0 0.0
    %4213 = vmatprep.subr.mxu0 0.0
    %4214 = vmatpush1.msra.mxu0 0.0
    %4215 = vmatprep.subr.mxu0 0.0
    %4216 = vmatpush1.msra.mxu0 0.0
    %4217 = vmatprep.subr.mxu0 0.0
    %4218 = vmatpush1.msra.mxu0 0.0
    %4219 = vmatprep.subr.mxu0 0.0
    %4220 = vmatpush1.msra.mxu0 0.0
    %4221 = vmatprep.subr.mxu0 0.0
    %4222 = vmatpush1.msra.mxu0 0.0
    %4223 = vmatprep.subr.mxu0 0.0
    %4224 = vmatpush1.msra.mxu0 0.0
    %4225 = vmatprep.subr.mxu0 0.0
    %4226 = vmatpush1.msra.mxu0 0.0
    %4227 = vmatprep.subr.mxu0 0.0
    %4228 = vmatpush1.msra.mxu0 0.0
    %4229 = vmatprep.subr.mxu0 0.0
    %4230 = vmatpush1.msra.mxu0 0.0
    %4231 = vmatprep.subr.mxu0 0.0
    %4232 = vmatpush1.msra.mxu0 0.0
    %4233 = vmatprep.subr.mxu0 0.0
    %4234 = vmatpush1.msra.mxu0 0.0
    %4235 = vmatprep.subr.mxu0 0.0
    %4236 = vmatpush1.msra.mxu0 0.0
    %4237 = vmatprep.subr.mxu0 0.0
    %4238 = vmatpush1.msra.mxu0 0.0
    %4239 = vmatprep.subr.mxu0 0.0
    %4240 = vmatpush1.msra.mxu0 0.0
    %4241 = vmatprep.subr.mxu0 0.0
    %4242 = vmatpush1.msra.mxu0 0.0
    %4243 = vmatprep.subr.mxu0 0.0
    %4244 = vmatpush1.msra.mxu0 0.0
    %4245 = vmatprep.subr.mxu0 0.0
    %4246 = vmatpush1.msra.mxu0 0.0
    %4247 = vmatprep.subr.mxu0 0.0
    %4248 = vmatpush1.msra.mxu0 0.0
    %4249 = vmatprep.subr.mxu0 0.0
    %4250 = vmatpush1.msra.mxu0 0.0
    %4251 = vmatprep.subr.mxu0 0.0
    %4252 = vmatpush1.msra.mxu0 0.0
    %4253 = vmatprep.subr.mxu0 0.0
    %4254 = vmatpush1.msra.mxu0 0.0
    %4255 = vmatprep.subr.mxu0 0.0
    %4256 = vmatpush1.msra.mxu0 0.0
    %4257 = vmatprep.subr.mxu0 0.0
    %4258 = vmatpush1.msra.mxu0 0.0
    %4259 = vmatprep.subr.mxu0 0.0
    %4260 = vmatpush1.msra.mxu0 0.0
    %4261 = vmatprep.subr.mxu0 0.0
    %4262 = vmatpush1.msra.mxu0 0.0
    %4263 = vmatprep.subr.mxu0 0.0
    %4264 = vmatpush1.msra.mxu0 0.0
    %4265 = vmatprep.subr.mxu0 0.0
    %4266 = vmatpush1.msra.mxu0 0.0
    %4267 = vmatprep.mubr.f32.mxu0 0.0
    %4268 = vmatmul.mubr.f32.gmra.mrb[0].mxu0 %v4059
    %v4269 = vpop.f32.mrb[0].mxu0
    %v4270 = vadd.f32 0.0, %v4269
    %v4271 = vpop.f32.mrb[0].mxu0
    %v4272 = vadd.f32 0.0, %v4271
    %4273 = vdwg.mxu0
    %v4274 = vadd.f32 %v4028, %v4128
    %v4275 = vadd.f32 %v4029, %v4130
    %v4276 = vadd.f32 %v4030, %v4199
    %v4277 = vadd.f32 %v4031, %v4201
    %v4278 = vadd.f32 %v4032, %v4270
    %v4279 = vadd.f32 %v4033, %v4272
    %4280 = vrot.lane.b32.xlu0 %v2335, 90
    %v4281 = vpop.permute.xlu0 %4280
    %4282 = vrot.lane.b32.xlu0 %v2324, 90
    %v4283 = vpop.permute.xlu0 %4282
    %4284 = vrot.lane.b32.xlu0 %v2325, 90
    %v4285 = vpop.permute.xlu0 %4284
    %4286 = vrot.lane.b32.xlu0 %v2326, 90
    %v4287 = vpop.permute.xlu0 %4286
    %4288 = vrot.lane.b32.xlu0 %v2327, 90
    %v4289 = vpop.permute.xlu0 %4288
    %4290 = vrot.lane.b32.xlu0 %v2328, 90
    %v4291 = vpop.permute.xlu0 %4290
    %v4292 = vsel %vm2001, %v4281, %v4283
    %v4293 = vsel %vm2001, %v4283, %v4285
    %v4294 = vsel %vm2001, %v4285, %v4287
    %v4295 = vsel %vm2001, %v4287, %v4289
    %v4296 = vsel %vm2001, %v4289, %v4291
    %v4303 = vsel %vm2001, %v4291, 0.0
    %v4305 = vsel %vm62, %v2344, 0
    %4307 = vmatprep.subr.mxu0 %v4293
    %4308 = vmatpush1.msra.mxu0 %v4292
    %4309 = vmatprep.subr.mxu0 0.0
    %4310 = vmatpush1.msra.mxu0 0.0
    %4311 = vmatprep.subr.mxu0 0.0
    %4312 = vmatpush1.msra.mxu0 0.0
    %4313 = vmatprep.subr.mxu0 0.0
    %4314 = vmatpush1.msra.mxu0 0.0
    %4315 = vmatprep.subr.mxu0 0.0
    %4316 = vmatpush1.msra.mxu0 0.0
    %4317 = vmatprep.subr.mxu0 0.0
    %4318 = vmatpush1.msra.mxu0 0.0
    %4319 = vmatprep.subr.mxu0 0.0
    %4320 = vmatpush1.msra.mxu0 0.0
    %4321 = vmatprep.subr.mxu0 0.0
    %4322 = vmatpush1.msra.mxu0 0.0
    %4323 = vmatprep.subr.mxu0 0.0
    %4324 = vmatpush1.msra.mxu0 0.0
    %4325 = vmatprep.subr.mxu0 0.0
    %4326 = vmatpush1.msra.mxu0 0.0
    %4327 = vmatprep.subr.mxu0 0.0
    %4328 = vmatpush1.msra.mxu0 0.0
    %4329 = vmatprep.subr.mxu0 0.0
    %4330 = vmatpush1.msra.mxu0 0.0
    %4331 = vmatprep.subr.mxu0 0.0
    %4332 = vmatpush1.msra.mxu0 0.0
    %4333 = vmatprep.subr.mxu0 0.0
    %4334 = vmatpush1.msra.mxu0 0.0
    %4335 = vmatprep.subr.mxu0 0.0
    %4336 = vmatpush1.msra.mxu0 0.0
    %4337 = vmatprep.subr.mxu0 0.0
    %4338 = vmatpush1.msra.mxu0 0.0
    %4339 = vmatprep.subr.mxu0 0.0
    %4340 = vmatpush1.msra.mxu0 0.0
    %4341 = vmatprep.subr.mxu0 0.0
    %4342 = vmatpush1.msra.mxu0 0.0
    %4343 = vmatprep.subr.mxu0 0.0
    %4344 = vmatpush1.msra.mxu0 0.0
    %4345 = vmatprep.subr.mxu0 0.0
    %4346 = vmatpush1.msra.mxu0 0.0
    %4347 = vmatprep.subr.mxu0 0.0
    %4348 = vmatpush1.msra.mxu0 0.0
    %4349 = vmatprep.subr.mxu0 0.0
    %4350 = vmatpush1.msra.mxu0 0.0
    %4351 = vmatprep.subr.mxu0 0.0
    %4352 = vmatpush1.msra.mxu0 0.0
    %4353 = vmatprep.subr.mxu0 0.0
    %4354 = vmatpush1.msra.mxu0 0.0
    %4355 = vmatprep.subr.mxu0 0.0
    %4356 = vmatpush1.msra.mxu0 0.0
    %4357 = vmatprep.subr.mxu0 0.0
    %4358 = vmatpush1.msra.mxu0 0.0
    %4359 = vmatprep.subr.mxu0 0.0
    %4360 = vmatpush1.msra.mxu0 0.0
    %4361 = vmatprep.subr.mxu0 0.0
    %4362 = vmatpush1.msra.mxu0 0.0
    %4363 = vmatprep.subr.mxu0 0.0
    %4364 = vmatpush1.msra.mxu0 0.0
    %4365 = vmatprep.subr.mxu0 0.0
    %4366 = vmatpush1.msra.mxu0 0.0
    %4367 = vmatprep.subr.mxu0 0.0
    %4368 = vmatpush1.msra.mxu0 0.0
    %4369 = vmatprep.subr.mxu0 0.0
    %4370 = vmatpush1.msra.mxu0 0.0
    %4371 = vmatprep.mubr.f32.mxu0 0.0
    %4372 = vmatmul.mubr.f32.gmra.mrb[0].mxu0 %v4305
    %v4373 = vpop.f32.mrb[0].mxu0
    %v4374 = vadd.f32 0.0, %v4373
    %v4375 = vpop.f32.mrb[0].mxu0
    %v4376 = vadd.f32 0.0, %v4375
    %4377 = vdwg.mxu0
    %4378 = vmatprep.subr.mxu0 %v4295
    %4379 = vmatpush1.msra.mxu0 %v4294
    %4380 = vmatprep.subr.mxu0 0.0
    %4381 = vmatpush1.msra.mxu0 0.0
    %4382 = vmatprep.subr.mxu0 0.0
    %4383 = vmatpush1.msra.mxu0 0.0
    %4384 = vmatprep.subr.mxu0 0.0
    %4385 = vmatpush1.msra.mxu0 0.0
    %4386 = vmatprep.subr.mxu0 0.0
    %4387 = vmatpush1.msra.mxu0 0.0
    %4388 = vmatprep.subr.mxu0 0.0
    %4389 = vmatpush1.msra.mxu0 0.0
    %4390 = vmatprep.subr.mxu0 0.0
    %4391 = vmatpush1.msra.mxu0 0.0
    %4392 = vmatprep.subr.mxu0 0.0
    %4393 = vmatpush1.msra.mxu0 0.0
    %4394 = vmatprep.subr.mxu0 0.0
    %4395 = vmatpush1.msra.mxu0 0.0
    %4396 = vmatprep.subr.mxu0 0.0
    %4397 = vmatpush1.msra.mxu0 0.0
    %4398 = vmatprep.subr.mxu0 0.0
    %4399 = vmatpush1.msra.mxu0 0.0
    %4400 = vmatprep.subr.mxu0 0.0
    %4401 = vmatpush1.msra.mxu0 0.0
    %4402 = vmatprep.subr.mxu0 0.0
    %4403 = vmatpush1.msra.mxu0 0.0
    %4404 = vmatprep.subr.mxu0 0.0
    %4405 = vmatpush1.msra.mxu0 0.0
    %4406 = vmatprep.subr.mxu0 0.0
    %4407 = vmatpush1.msra.mxu0 0.0
    %4408 = vmatprep.subr.mxu0 0.0
    %4409 = vmatpush1.msra.mxu0 0.0
    %4410 = vmatprep.subr.mxu0 0.0
    %4411 = vmatpush1.msra.mxu0 0.0
    %4412 = vmatprep.subr.mxu0 0.0
    %4413 = vmatpush1.msra.mxu0 0.0
    %4414 = vmatprep.subr.mxu0 0.0
    %4415 = vmatpush1.msra.mxu0 0.0
    %4416 = vmatprep.subr.mxu0 0.0
    %4417 = vmatpush1.msra.mxu0 0.0
    %4418 = vmatprep.subr.mxu0 0.0
    %4419 = vmatpush1.msra.mxu0 0.0
    %4420 = vmatprep.subr.mxu0 0.0
    %4421 = vmatpush1.msra.mxu0 0.0
    %4422 = vmatprep.subr.mxu0 0.0
    %4423 = vmatpush1.msra.mxu0 0.0
    %4424 = vmatprep.subr.mxu0 0.0
    %4425 = vmatpush1.msra.mxu0 0.0
    %4426 = vmatprep.subr.mxu0 0.0
    %4427 = vmatpush1.msra.mxu0 0.0
    %4428 = vmatprep.subr.mxu0 0.0
    %4429 = vmatpush1.msra.mxu0 0.0
    %4430 = vmatprep.subr.mxu0 0.0
    %4431 = vmatpush1.msra.mxu0 0.0
    %4432 = vmatprep.subr.mxu0 0.0
    %4433 = vmatpush1.msra.mxu0 0.0
    %4434 = vmatprep.subr.mxu0 0.0
    %4435 = vmatpush1.msra.mxu0 0.0
    %4436 = vmatprep.subr.mxu0 0.0
    %4437 = vmatpush1.msra.mxu0 0.0
    %4438 = vmatprep.subr.mxu0 0.0
    %4439 = vmatpush1.msra.mxu0 0.0
    %4440 = vmatprep.subr.mxu0 0.0
    %4441 = vmatpush1.msra.mxu0 0.0
    %4442 = vmatprep.mubr.f32.mxu0 0.0
    %4443 = vmatmul.mubr.f32.gmra.mrb[0].mxu0 %v4305
    %v4444 = vpop.f32.mrb[0].mxu0
    %v4445 = vadd.f32 0.0, %v4444
    %v4446 = vpop.f32.mrb[0].mxu0
    %v4447 = vadd.f32 0.0, %v4446
    %4448 = vdwg.mxu0
    %4449 = vmatprep.subr.mxu0 %v4303
    %4450 = vmatpush1.msra.mxu0 %v4296
    %4451 = vmatprep.subr.mxu0 0.0
    %4452 = vmatpush1.msra.mxu0 0.0
    %4453 = vmatprep.subr.mxu0 0.0
    %4454 = vmatpush1.msra.mxu0 0.0
    %4455 = vmatprep.subr.mxu0 0.0
    %4456 = vmatpush1.msra.mxu0 0.0
    %4457 = vmatprep.subr.mxu0 0.0
    %4458 = vmatpush1.msra.mxu0 0.0
    %4459 = vmatprep.subr.mxu0 0.0
    %4460 = vmatpush1.msra.mxu0 0.0
    %4461 = vmatprep.subr.mxu0 0.0
    %4462 = vmatpush1.msra.mxu0 0.0
    %4463 = vmatprep.subr.mxu0 0.0
    %4464 = vmatpush1.msra.mxu0 0.0
    %4465 = vmatprep.subr.mxu0 0.0
    %4466 = vmatpush1.msra.mxu0 0.0
    %4467 = vmatprep.subr.mxu0 0.0
    %4468 = vmatpush1.msra.mxu0 0.0
    %4469 = vmatprep.subr.mxu0 0.0
    %4470 = vmatpush1.msra.mxu0 0.0
    %4471 = vmatprep.subr.mxu0 0.0
    %4472 = vmatpush1.msra.mxu0 0.0
    %4473 = vmatprep.subr.mxu0 0.0
    %4474 = vmatpush1.msra.mxu0 0.0
    %4475 = vmatprep.subr.mxu0 0.0
    %4476 = vmatpush1.msra.mxu0 0.0
    %4477 = vmatprep.subr.mxu0 0.0
    %4478 = vmatpush1.msra.mxu0 0.0
    %4479 = vmatprep.subr.mxu0 0.0
    %4480 = vmatpush1.msra.mxu0 0.0
    %4481 = vmatprep.subr.mxu0 0.0
    %4482 = vmatpush1.msra.mxu0 0.0
    %4483 = vmatprep.subr.mxu0 0.0
    %4484 = vmatpush1.msra.mxu0 0.0
    %4485 = vmatprep.subr.mxu0 0.0
    %4486 = vmatpush1.msra.mxu0 0.0
    %4487 = vmatprep.subr.mxu0 0.0
    %4488 = vmatpush1.msra.mxu0 0.0
    %4489 = vmatprep.subr.mxu0 0.0
    %4490 = vmatpush1.msra.mxu0 0.0
    %4491 = vmatprep.subr.mxu0 0.0
    %4492 = vmatpush1.msra.mxu0 0.0
    %4493 = vmatprep.subr.mxu0 0.0
    %4494 = vmatpush1.msra.mxu0 0.0
    %4495 = vmatprep.subr.mxu0 0.0
    %4496 = vmatpush1.msra.mxu0 0.0
    %4497 = vmatprep.subr.mxu0 0.0
    %4498 = vmatpush1.msra.mxu0 0.0
    %4499 = vmatprep.subr.mxu0 0.0
    %4500 = vmatpush1.msra.mxu0 0.0
    %4501 = vmatprep.subr.mxu0 0.0
    %4502 = vmatpush1.msra.mxu0 0.0
    %4503 = vmatprep.subr.mxu0 0.0
    %4504 = vmatpush1.msra.mxu0 0.0
    %4505 = vmatprep.subr.mxu0 0.0
    %4506 = vmatpush1.msra.mxu0 0.0
    %4507 = vmatprep.subr.mxu0 0.0
    %4508 = vmatpush1.msra.mxu0 0.0
    %4509 = vmatprep.subr.mxu0 0.0
    %4510 = vmatpush1.msra.mxu0 0.0
    %4511 = vmatprep.subr.mxu0 0.0
    %4512 = vmatpush1.msra.mxu0 0.0
    %4513 = vmatprep.mubr.f32.mxu0 0.0
    %4514 = vmatmul.mubr.f32.gmra.mrb[0].mxu0 %v4305
    %v4515 = vpop.f32.mrb[0].mxu0
    %v4516 = vadd.f32 0.0, %v4515
    %v4517 = vpop.f32.mrb[0].mxu0
    %v4518 = vadd.f32 0.0, %v4517
    %4519 = vdwg.mxu0
    %v4520 = vadd.f32 %v4274, %v4374
    %v4521 = vadd.f32 %v4275, %v4376
    %v4522 = vadd.f32 %v4276, %v4445
    %v4523 = vadd.f32 %v4277, %v4447
    %v4524 = vadd.f32 %v4278, %v4516
    %v4525 = vadd.f32 %v4279, %v4518
    %4527 = vset.pattern.permute.xlu0 0
    %4528 = vperm.xlu0 %4527, %v2346
    %v4529 = vpop.permute.xlu0 %4528
    %v4531 = vadd.f32 %v4520, %v4529
    %v4532 = vadd.f32 %v4521, %v4529
    %v4533 = vadd.f32 %v4522, %v4529
    %v4534 = vadd.f32 %v4523, %v4529
    %v4535 = vadd.f32 %v4524, %v4529
    %v4536 = vadd.f32 %v4525, %v4529
    %vm4537 = vcmp.ge.f32.partialorder %v4531, 0.0
    %vm4538 = vcmp.ge.f32.partialorder %v4532, 0.0
    %vm4539 = vcmp.ge.f32.partialorder %v4533, 0.0
    %vm4540 = vcmp.ge.f32.partialorder %v4534, 0.0
    %vm4541 = vcmp.ge.f32.partialorder %v4535, 0.0
    %vm4542 = vcmp.ge.f32.partialorder %v4536, 0.0
    %v4543 = vmul.f32 %v4531, 0.01
    %v4544 = vmul.f32 %v4532, 0.01
    %v4545 = vmul.f32 %v4533, 0.01
    %v4546 = vmul.f32 %v4534, 0.01
    %v4547 = vmul.f32 %v4535, 0.01
    %v4548 = vmul.f32 %v4536, 0.01
    %v4549 = vsel %vm4537, %v4531, %v4543
    %v4550 = vsel %vm4538, %v4532, %v4544
    %v4551 = vsel %vm4539, %v4533, %v4545
    %v4552 = vsel %vm4540, %v4534, %v4546
    %v4553 = vsel %vm4541, %v4535, %v4547
    %v4554 = vsel %vm4542, %v4536, %v4548
    %4555 = vst [vmem:[#allocation2] sm:$0xff] %v4549
    %4556 = vst [vmem:[#allocation2 + $0x8] sm:$0xff] %v4550
    %4557 = vst [vmem:[#allocation2 + $0x10] sm:$0xff] %v4551
    %4558 = vst [vmem:[#allocation2 + $0x18] sm:$0xff] %v4552
    %4559 = vst [vmem:[#allocation2 + $0x20] sm:$0xff] %v4553
    %4560 = vst [vmem:[#allocation2 + $0x28] sm:$0xff] %v4554
    // Predicated region
    $region22: #{tpu_custom_call.1} parent=1 // pred_check
      _
    $region23: #{tpu_custom_call.1} parent=1 // pred_check_branch
      %4562 = sbr.rel (0) target = $region25
    $region24: #{tpu_custom_call.1} parent=1 // pred_region
      %s4564 = ssub.s32 768, 768
      %4565 = vsyncadd [#allocation3], %s4564
      %s4567 = sshll.u32 [#allocation2], 4
      %s4568 = int_to_ptr.vmem [resolvable:$true] %s4567
      %4570 = dma.vmem_to_hbm [thread:$0]  %s4568, 768, %s5, [#allocation3]
    $region25: #{tpu_custom_call.1} parent=1 // pred_fallthru
      _
    // Predicated region
    $region26: #{tpu_custom_call.1} parent=1 // pred_check
      _
    $region27: #{tpu_custom_call.1} parent=1 // pred_check_branch
      %4572 = sbr.rel (0) target = $region29
    $region28: #{tpu_custom_call.1} parent=1 // pred_region
      %4573 = dma.done [#allocation3], 768
    $region29: #{tpu_custom_call.1} parent=1 // pred_fallthru
      _
    %4574 = vsyncpa [#allocation3], 1

</llo_original>
